<compile_context>
chip_gen: v5e
topology: v5e:2x2
jax: 0.10.0
libtpu: 0.0.40
codegen_flags: <defaults>
</compile_context>

<pallas_src>
import functools

import jax
import jax.numpy as jnp
from jax import lax
from jax.experimental import pallas as pl
from jax.experimental.pallas import tpu as pltpu

LANES = 128   # lane width / channel padding target
WOFF = 16     # bf16-sublane-aligned left halo offset inside the scratch buffers


def _round_up(x, m):
    return ((x + m - 1) // m) * m


def vgg_chain_kernel(x_ref, w_ref, b_ref, o_ref, buf_a, buf_b):
    # x_ref : (1, H, W, Cp)          f32  channel-padded input image
    # w_ref : (L*3, 3*Cp, Cp)        bf16 per-layer, per-kw, kh-fused weights
    # b_ref : (L, 1, Cp)             f32  biases
    # o_ref : (1, H, W, Cp)          f32  output image (channel padded)
    # buf_a, buf_b: (H+2, W+2*WOFF, Cp) bf16 VMEM ping-pong activation buffers;
    #   the logical HxW activation lives at [1:H+1, WOFF:WOFF+W], the zero
    #   frame around it implements conv padding=1 for every fused layer.
    H = o_ref.shape[1]
    W = o_ref.shape[2]
    Cp = o_ref.shape[3]
    L = b_ref.shape[0]

    # Zero only the halo frame (interiors are always fully overwritten before
    # being read): 2 full-width rows + 2 aligned 16-column stripes per buffer.
    zrow = jnp.zeros((1, W + 2 * WOFF, Cp), dtype=jnp.bfloat16)
    zcol = jnp.zeros((H + 2, WOFF, Cp), dtype=jnp.bfloat16)
    for buf in (buf_a, buf_b):
        buf[0:1] = zrow
        buf[H + 1:H + 2] = zrow
        buf[:, 0:WOFF, :] = zcol
        buf[:, WOFF + W:, :] = zcol

    # Place the input in the aligned interior of buf_a (row offset 1 is a
    # leading dim; col offset WOFF=16 and width W are bf16-sublane aligned).
    buf_a[1:H + 1, WOFF:WOFF + W, :] = x_ref[0].astype(jnp.bfloat16)

    bufs = (buf_a, buf_b)
    for l in range(L):                      # static unroll over fused layers
        src = bufs[l % 2]
        # f32 accumulator starts from the broadcast bias.
        acc = jnp.broadcast_to(b_ref[l], (H * W, Cp)).astype(jnp.float32)
        for kw in range(3):
            # One sublane-direction shift per kw (unaligned only for kw=0,2).
            shifted = src[:, WOFF - 1 + kw:WOFF - 1 + kw + W, :]   # (H+2, W, Cp)
            # kh shifts are free leading-dim offsets; fuse them along K so the
            # MXU sees K = 3*Cp instead of Cp.
            lhs = jnp.concatenate(
                [shifted[kh:kh + H].reshape(H * W, Cp) for kh in range(3)],
                axis=1)                                            # (H*W, 3*Cp) bf16
            acc = acc + jnp.dot(lhs, w_ref[l * 3 + kw],
                                preferred_element_type=jnp.float32)
        act = jnp.maximum(acc, 0.0)                                # ReLU in f32
        if l == L - 1:
            # Lane-dense f32 output store.
            o_ref[0] = act.reshape(H, W, Cp).astype(o_ref.dtype)
        else:
            # Aligned full-tile bf16 store of the next layer's input interior.
            bufs[(l + 1) % 2][1:H + 1, WOFF:WOFF + W, :] = (
                act.reshape(H, W, Cp).astype(jnp.bfloat16))


def vgg_chain(x_nhwc_cp, w_packed, b_packed):
    """x: (N,H,W,Cp) f32; w_packed: (L*3,3*Cp,Cp) bf16; b_packed: (L,1,Cp) f32."""
    N, H, W, Cp = x_nhwc_cp.shape
    L = b_packed.shape[0]
    assert W % 16 == 0 and Cp % LANES == 0, "W must be a multiple of 16, Cp of 128"
    assert w_packed.shape == (L * 3, 3 * Cp, Cp)

    flops = 2 * N * H * W * 9 * Cp * Cp * L
    bytes_accessed = (N * H * W * Cp * 4          # input
                      + w_packed.size * 2         # bf16 weights
                      + b_packed.size * 4         # biases
                      + N * H * W * Cp * 4)       # output

    return pl.pallas_call(
        vgg_chain_kernel,
        out_shape=jax.ShapeDtypeStruct((N, H, W, Cp), jnp.float32),
        grid=(N,),
        in_specs=[
            pl.BlockSpec((1, H, W, Cp), lambda n: (n, 0, 0, 0)),
            # Grid-invariant blocks (constant index_map). For realistic Cp on
            # v7x, add pipeline_mode=pl.Buffered(1) to single-buffer them.
            pl.BlockSpec((L * 3, 3 * Cp, Cp), lambda n: (0, 0, 0)),
            pl.BlockSpec((L, 1, Cp), lambda n: (0, 0, 0)),
        ],
        out_specs=pl.BlockSpec((1, H, W, Cp), lambda n: (n, 0, 0, 0)),
        scratch_shapes=[
            pltpu.VMEM((H + 2, W + 2 * WOFF, Cp), jnp.bfloat16),
            pltpu.VMEM((H + 2, W + 2 * WOFF, Cp), jnp.bfloat16),
        ],
        compiler_params=pltpu.CompilerParams(
            dimension_semantics=("parallel",),
            # 48 MiB: above the 16/32 MiB defaults (v5e/v6e have 128 MiB
            # physical), and still a safe cap for v7x's 64 MiB VMEM.
            vmem_limit_bytes=48 * 1024 * 1024),
        cost_estimate=pl.CostEstimate(
            flops=flops, transcendentals=0, bytes_accessed=bytes_accessed),
    )(x_nhwc_cp, w_packed, b_packed)


def pack_params(params, cp):
    """Stack per-layer HWIO weights/biases into lane-padded, kh-fused operands.

    Weight layout: w_all[l*3 + kw, kh*cp + cin, cout] = w[kh, kw, cin, cout],
    matching the (H*W, 3*cp) kh-concatenated LHS built inside the kernel.
    """
    L = len(params)
    w_all = jnp.zeros((L * 3, 3 * cp, cp), dtype=jnp.bfloat16)
    b_all = jnp.zeros((L, 1, cp), dtype=jnp.float32)
    for l, (w, b) in enumerate(params):
        _, _, cin, cout = w.shape
        wb = w.astype(jnp.bfloat16)
        for kw in range(3):
            for kh in range(3):
                w_all = w_all.at[l * 3 + kw, kh * cp:kh * cp + cin, :cout].set(
                    wb[kh, kw])
        b_all = b_all.at[l, 0, :cout].set(b.astype(jnp.float32))
    return w_all, b_all


@functools.partial(jax.jit, static_argnums=(3,))
def vgg_block_forward(x_nchw, w_packed, b_packed, out_channels):
    """x_nchw: (N, C, H, W) like PyTorch. Returns (N, out_channels, H, W) f32."""
    n, cin, h, w = x_nchw.shape
    cp = w_packed.shape[2]
    x = jnp.transpose(x_nchw, (0, 2, 3, 1)).astype(jnp.float32)   # NCHW->NHWC
    x = jnp.pad(x, ((0, 0), (0, 0), (0, 0), (0, cp - cin)))       # lane-pad channels
    out = vgg_chain(x, w_packed, b_packed)                        # (N,H,W,Cp) f32
    return jnp.transpose(out[..., :out_channels], (0, 3, 1, 2))   # NHWC->NCHW


def init_vgg_block_params(key, in_channels, out_channels, num_convs,
                          dtype=jnp.float32):
    """Deterministic init, PyTorch-Conv2d-style uniform bounds. HWIO weights."""
    params = []
    cin = in_channels
    for _ in range(num_convs):
        key, kw_key, kb_key = jax.random.split(key, 3)
        fan_in = cin * 3 * 3
        bound = 1.0 / (fan_in ** 0.5)
        w = jax.random.uniform(kw_key, (3, 3, cin, out_channels),
                               dtype=dtype, minval=-bound, maxval=bound)
        b = jax.random.uniform(kb_key, (out_channels,),
                               dtype=dtype, minval=-bound, maxval=bound)
        params.append((w, b))
        cin = out_channels
    return params


def reference_forward(x_nchw, params):
    """Pure-JAX f32 reference (lax.conv) for correctness checking."""
    x = x_nchw
    for (w_hwio, b) in params:
        w_oihw = jnp.transpose(w_hwio, (3, 2, 0, 1))
        x = lax.conv_general_dilated(
            x, w_oihw, window_strides=(1, 1), padding="SAME",
            dimension_numbers=("NCHW", "OIHW", "NCHW"))
        x = jnp.maximum(x + b[None, :, None, None], 0.0)
    return x


if __name__ == "__main__":
    key = jax.random.PRNGKey(0)
    key, xk = jax.random.split(key)

    N, Cin, H, W = 2, 4, 16, 16
    Cout = 8
    num_convs = 2

    x = jax.random.normal(xk, (N, Cin, H, W), dtype=jnp.float32)
    params = init_vgg_block_params(key, Cin, Cout, num_convs)

    cp = _round_up(max(Cin, Cout, LANES), LANES)
    w_packed, b_packed = pack_params(params, cp)

    out = jax.block_until_ready(vgg_block_forward(x, w_packed, b_packed, Cout))

    ref = reference_forward(x, params)
    assert out.shape == (N, Cout, H, W), out.shape
    # bf16 MXU operands / bf16 inter-layer activations (f32 accumulation)
    # => compare at bf16-level tolerance.
    assert jnp.allclose(out, ref, atol=5e-2, rtol=5e-2), (
        "max abs err = %f" % float(jnp.max(jnp.abs(out - ref))))

    print("KERNEL_OK")
</pallas_src>

<mosaic_0001>
module attributes {stable_mosaic.version = 11 : i64} {
  func.func @vgg_chain_kernel(%arg0: i32, %arg1: memref<1x16x16x128xf32, #tpu.memory_space<vmem>>, %arg2: memref<6x384x128xbf16, #tpu.memory_space<vmem>>, %arg3: memref<2x1x128xf32, #tpu.memory_space<vmem>>, %arg4: memref<1x16x16x128xf32, #tpu.memory_space<vmem>>, %arg5: memref<18x48x128xbf16, #tpu.memory_space<vmem>>, %arg6: memref<18x48x128xbf16, #tpu.memory_space<vmem>>) attributes {dimension_semantics = [#tpu.dimension_semantics<parallel>], iteration_bounds = array<i64: 2>, scalar_prefetch = 0 : i64, scratch_operands = 2 : i64, tpu.core_type = #tpu.core_type<tc>, window_params = [{transform_indices = @transform_0, window_bounds = array<i64: 1, 16, 16, 128>}, {pipeline_mode = #tpu.pipeline_mode<synchronous>, transform_indices = @transform_1, window_bounds = array<i64: 6, 384, 128>}, {pipeline_mode = #tpu.pipeline_mode<synchronous>, transform_indices = @transform_2, window_bounds = array<i64: 2, 1, 128>}, {transform_indices = @transform_3, window_bounds = array<i64: 1, 16, 16, 128>}]} {
    %cst = arith.constant 0.000000e+00 : bf16
    %0 = vector.broadcast %cst : bf16 to vector<1x48x128xbf16>
    %cst_0 = arith.constant 0.000000e+00 : bf16
    %1 = vector.broadcast %cst_0 : bf16 to vector<18x16x128xbf16>
    %c0 = arith.constant 0 : index
    %c0_1 = arith.constant 0 : index
    %c0_2 = arith.constant 0 : index
    %2 = vector.load %arg5[%c0, %c0_1, %c0_2] : memref<18x48x128xbf16, #tpu.memory_space<vmem>>, vector<1x48x128xbf16>
    tpu.vector_store %arg5[%c0, %c0_1, %c0_2], %0 {strides = array<i32>} : memref<18x48x128xbf16, #tpu.memory_space<vmem>>, vector<1x48x128xbf16>,
    %c17 = arith.constant 17 : index
    %c0_3 = arith.constant 0 : index
    %c0_4 = arith.constant 0 : index
    %3 = vector.load %arg5[%c17, %c0_3, %c0_4] : memref<18x48x128xbf16, #tpu.memory_space<vmem>>, vector<1x48x128xbf16>
    tpu.vector_store %arg5[%c17, %c0_3, %c0_4], %0 {strides = array<i32>} : memref<18x48x128xbf16, #tpu.memory_space<vmem>>, vector<1x48x128xbf16>,
    %c0_5 = arith.constant 0 : index
    %c0_6 = arith.constant 0 : index
    %c0_7 = arith.constant 0 : index
    %4 = vector.load %arg5[%c0_5, %c0_6, %c0_7] : memref<18x48x128xbf16, #tpu.memory_space<vmem>>, vector<18x16x128xbf16>
    tpu.vector_store %arg5[%c0_5, %c0_6, %c0_7], %1 {strides = array<i32>} : memref<18x48x128xbf16, #tpu.memory_space<vmem>>, vector<18x16x128xbf16>,
    %c0_8 = arith.constant 0 : index
    %c32 = arith.constant 32 : index
    %c0_9 = arith.constant 0 : index
    %5 = vector.load %arg5[%c0_8, %c32, %c0_9] : memref<18x48x128xbf16, #tpu.memory_space<vmem>>, vector<18x16x128xbf16>
    tpu.vector_store %arg5[%c0_8, %c32, %c0_9], %1 {strides = array<i32>} : memref<18x48x128xbf16, #tpu.memory_space<vmem>>, vector<18x16x128xbf16>,
    %c0_10 = arith.constant 0 : index
    %c0_11 = arith.constant 0 : index
    %c0_12 = arith.constant 0 : index
    %6 = vector.load %arg6[%c0_10, %c0_11, %c0_12] : memref<18x48x128xbf16, #tpu.memory_space<vmem>>, vector<1x48x128xbf16>
    tpu.vector_store %arg6[%c0_10, %c0_11, %c0_12], %0 {strides = array<i32>} : memref<18x48x128xbf16, #tpu.memory_space<vmem>>, vector<1x48x128xbf16>,
    %c17_13 = arith.constant 17 : index
    %c0_14 = arith.constant 0 : index
    %c0_15 = arith.constant 0 : index
    %7 = vector.load %arg6[%c17_13, %c0_14, %c0_15] : memref<18x48x128xbf16, #tpu.memory_space<vmem>>, vector<1x48x128xbf16>
    tpu.vector_store %arg6[%c17_13, %c0_14, %c0_15], %0 {strides = array<i32>} : memref<18x48x128xbf16, #tpu.memory_space<vmem>>, vector<1x48x128xbf16>,
    %c0_16 = arith.constant 0 : index
    %c0_17 = arith.constant 0 : index
    %c0_18 = arith.constant 0 : index
    %8 = vector.load %arg6[%c0_16, %c0_17, %c0_18] : memref<18x48x128xbf16, #tpu.memory_space<vmem>>, vector<18x16x128xbf16>
    tpu.vector_store %arg6[%c0_16, %c0_17, %c0_18], %1 {strides = array<i32>} : memref<18x48x128xbf16, #tpu.memory_space<vmem>>, vector<18x16x128xbf16>,
    %c0_19 = arith.constant 0 : index
    %c32_20 = arith.constant 32 : index
    %c0_21 = arith.constant 0 : index
    %9 = vector.load %arg6[%c0_19, %c32_20, %c0_21] : memref<18x48x128xbf16, #tpu.memory_space<vmem>>, vector<18x16x128xbf16>
    tpu.vector_store %arg6[%c0_19, %c32_20, %c0_21], %1 {strides = array<i32>} : memref<18x48x128xbf16, #tpu.memory_space<vmem>>, vector<18x16x128xbf16>,
    %c0_22 = arith.constant 0 : index
    %c0_23 = arith.constant 0 : index
    %c0_24 = arith.constant 0 : index
    %c0_25 = arith.constant 0 : index
    %10 = vector.load %arg1[%c0_22, %c0_23, %c0_24, %c0_25] : memref<1x16x16x128xf32, #tpu.memory_space<vmem>>, vector<1x16x16x128xf32>
    %11 = vector.shape_cast %10 : vector<1x16x16x128xf32> to vector<16x16x128xf32>
    %12 = arith.truncf %11 : vector<16x16x128xf32> to vector<16x16x128xbf16>
    %c1 = arith.constant 1 : index
    %c16 = arith.constant 16 : index
    %c0_26 = arith.constant 0 : index
    %13 = vector.load %arg5[%c1, %c16, %c0_26] : memref<18x48x128xbf16, #tpu.memory_space<vmem>>, vector<16x16x128xbf16>
    tpu.vector_store %arg5[%c1, %c16, %c0_26], %12 {strides = array<i32>} : memref<18x48x128xbf16, #tpu.memory_space<vmem>>, vector<16x16x128xbf16>,
    %c0_27 = arith.constant 0 : index
    %c0_28 = arith.constant 0 : index
    %c0_29 = arith.constant 0 : index
    %14 = vector.load %arg3[%c0_27, %c0_28, %c0_29] : memref<2x1x128xf32, #tpu.memory_space<vmem>>, vector<1x1x128xf32>
    %15 = vector.shape_cast %14 : vector<1x1x128xf32> to vector<1x128xf32>
    %16 = vector.shape_cast %15 : vector<1x128xf32> to vector<1x128xf32>
    %17 = vector.broadcast %16 : vector<1x128xf32> to vector<256x128xf32>
    %c0_30 = arith.constant 0 : index
    %c15 = arith.constant 15 : index
    %c0_31 = arith.constant 0 : index
    %18 = vector.load %arg5[%c0_30, %c15, %c0_31] : memref<18x48x128xbf16, #tpu.memory_space<vmem>>, vector<18x16x128xbf16>
    %19 = vector.extract_strided_slice %18 {offsets = [0, 0, 0], sizes = [16, 16, 128], strides = [1, 1, 1]} : vector<18x16x128xbf16> to vector<16x16x128xbf16>
    %20 = vector.shape_cast %19 : vector<16x16x128xbf16> to vector<256x128xbf16>
    %21 = vector.extract_strided_slice %18 {offsets = [1, 0, 0], sizes = [16, 16, 128], strides = [1, 1, 1]} : vector<18x16x128xbf16> to vector<16x16x128xbf16>
    %22 = vector.shape_cast %21 : vector<16x16x128xbf16> to vector<256x128xbf16>
    %23 = vector.extract_strided_slice %18 {offsets = [2, 0, 0], sizes = [16, 16, 128], strides = [1, 1, 1]} : vector<18x16x128xbf16> to vector<16x16x128xbf16>
    %24 = vector.shape_cast %23 : vector<16x16x128xbf16> to vector<256x128xbf16>
    %25 = tpu.concatenate %20, %22, %24 in 1 : vector<256x128xbf16>, vector<256x128xbf16>, vector<256x128xbf16> -> vector<256x384xbf16>
    %c0_32 = arith.constant 0 : index
    %c0_33 = arith.constant 0 : index
    %c0_34 = arith.constant 0 : index
    %26 = vector.load %arg2[%c0_32, %c0_33, %c0_34] : memref<6x384x128xbf16, #tpu.memory_space<vmem>>, vector<1x384x128xbf16>
    %27 = vector.shape_cast %26 : vector<1x384x128xbf16> to vector<384x128xbf16>
    %cst_35 = arith.constant dense<0.000000e+00> : vector<256x128xf32>
    %28 = tpu.matmul %25, %27, %cst_35 {dimension_numbers = #tpu.dot_dimension_numbers<[1], [0], [0], [1], [0, 0, 1, 1], [], []>} : vector<256x384xbf16>, vector<384x128xbf16>, vector<256x128xf32> -> vector<256x128xf32>
    %29 = arith.addf %17, %28 : vector<256x128xf32>
    %c0_36 = arith.constant 0 : index
    %c16_37 = arith.constant 16 : index
    %c0_38 = arith.constant 0 : index
    %30 = vector.load %arg5[%c0_36, %c16_37, %c0_38] : memref<18x48x128xbf16, #tpu.memory_space<vmem>>, vector<18x16x128xbf16>
    %31 = vector.extract_strided_slice %30 {offsets = [0, 0, 0], sizes = [16, 16, 128], strides = [1, 1, 1]} : vector<18x16x128xbf16> to vector<16x16x128xbf16>
    %32 = vector.shape_cast %31 : vector<16x16x128xbf16> to vector<256x128xbf16>
    %33 = vector.extract_strided_slice %30 {offsets = [1, 0, 0], sizes = [16, 16, 128], strides = [1, 1, 1]} : vector<18x16x128xbf16> to vector<16x16x128xbf16>
    %34 = vector.shape_cast %33 : vector<16x16x128xbf16> to vector<256x128xbf16>
    %35 = vector.extract_strided_slice %30 {offsets = [2, 0, 0], sizes = [16, 16, 128], strides = [1, 1, 1]} : vector<18x16x128xbf16> to vector<16x16x128xbf16>
    %36 = vector.shape_cast %35 : vector<16x16x128xbf16> to vector<256x128xbf16>
    %37 = tpu.concatenate %32, %34, %36 in 1 : vector<256x128xbf16>, vector<256x128xbf16>, vector<256x128xbf16> -> vector<256x384xbf16>
    %c1_39 = arith.constant 1 : index
    %c0_40 = arith.constant 0 : index
    %c0_41 = arith.constant 0 : index
    %38 = vector.load %arg2[%c1_39, %c0_40, %c0_41] : memref<6x384x128xbf16, #tpu.memory_space<vmem>>, vector<1x384x128xbf16>
    %39 = vector.shape_cast %38 : vector<1x384x128xbf16> to vector<384x128xbf16>
    %cst_42 = arith.constant dense<0.000000e+00> : vector<256x128xf32>
    %40 = tpu.matmul %37, %39, %cst_42 {dimension_numbers = #tpu.dot_dimension_numbers<[1], [0], [0], [1], [0, 0, 1, 1], [], []>} : vector<256x384xbf16>, vector<384x128xbf16>, vector<256x128xf32> -> vector<256x128xf32>
    %41 = arith.addf %29, %40 : vector<256x128xf32>
    %c0_43 = arith.constant 0 : index
    %c17_44 = arith.constant 17 : index
    %c0_45 = arith.constant 0 : index
    %42 = vector.load %arg5[%c0_43, %c17_44, %c0_45] : memref<18x48x128xbf16, #tpu.memory_space<vmem>>, vector<18x16x128xbf16>
    %43 = vector.extract_strided_slice %42 {offsets = [0, 0, 0], sizes = [16, 16, 128], strides = [1, 1, 1]} : vector<18x16x128xbf16> to vector<16x16x128xbf16>
    %44 = vector.shape_cast %43 : vector<16x16x128xbf16> to vector<256x128xbf16>
    %45 = vector.extract_strided_slice %42 {offsets = [1, 0, 0], sizes = [16, 16, 128], strides = [1, 1, 1]} : vector<18x16x128xbf16> to vector<16x16x128xbf16>
    %46 = vector.shape_cast %45 : vector<16x16x128xbf16> to vector<256x128xbf16>
    %47 = vector.extract_strided_slice %42 {offsets = [2, 0, 0], sizes = [16, 16, 128], strides = [1, 1, 1]} : vector<18x16x128xbf16> to vector<16x16x128xbf16>
    %48 = vector.shape_cast %47 : vector<16x16x128xbf16> to vector<256x128xbf16>
    %49 = tpu.concatenate %44, %46, %48 in 1 : vector<256x128xbf16>, vector<256x128xbf16>, vector<256x128xbf16> -> vector<256x384xbf16>
    %c2 = arith.constant 2 : index
    %c0_46 = arith.constant 0 : index
    %c0_47 = arith.constant 0 : index
    %50 = vector.load %arg2[%c2, %c0_46, %c0_47] : memref<6x384x128xbf16, #tpu.memory_space<vmem>>, vector<1x384x128xbf16>
    %51 = vector.shape_cast %50 : vector<1x384x128xbf16> to vector<384x128xbf16>
    %cst_48 = arith.constant dense<0.000000e+00> : vector<256x128xf32>
    %52 = tpu.matmul %49, %51, %cst_48 {dimension_numbers = #tpu.dot_dimension_numbers<[1], [0], [0], [1], [0, 0, 1, 1], [], []>} : vector<256x384xbf16>, vector<384x128xbf16>, vector<256x128xf32> -> vector<256x128xf32>
    %53 = arith.addf %41, %52 : vector<256x128xf32>
    %cst_49 = arith.constant 0.000000e+00 : f32
    %54 = vector.broadcast %cst_49 : f32 to vector<256x128xf32>
    %55 = arith.maximumf %53, %54 : vector<256x128xf32>
    %56 = vector.shape_cast %55 : vector<256x128xf32> to vector<16x16x128xf32>
    %57 = arith.truncf %56 : vector<16x16x128xf32> to vector<16x16x128xbf16>
    %c1_50 = arith.constant 1 : index
    %c16_51 = arith.constant 16 : index
    %c0_52 = arith.constant 0 : index
    %58 = vector.load %arg6[%c1_50, %c16_51, %c0_52] : memref<18x48x128xbf16, #tpu.memory_space<vmem>>, vector<16x16x128xbf16>
    tpu.vector_store %arg6[%c1_50, %c16_51, %c0_52], %57 {strides = array<i32>} : memref<18x48x128xbf16, #tpu.memory_space<vmem>>, vector<16x16x128xbf16>,
    %c1_53 = arith.constant 1 : index
    %c0_54 = arith.constant 0 : index
    %c0_55 = arith.constant 0 : index
    %59 = vector.load %arg3[%c1_53, %c0_54, %c0_55] : memref<2x1x128xf32, #tpu.memory_space<vmem>>, vector<1x1x128xf32>
    %60 = vector.shape_cast %59 : vector<1x1x128xf32> to vector<1x128xf32>
    %61 = vector.shape_cast %60 : vector<1x128xf32> to vector<1x128xf32>
    %62 = vector.broadcast %61 : vector<1x128xf32> to vector<256x128xf32>
    %c0_56 = arith.constant 0 : index
    %c15_57 = arith.constant 15 : index
    %c0_58 = arith.constant 0 : index
    %63 = vector.load %arg6[%c0_56, %c15_57, %c0_58] : memref<18x48x128xbf16, #tpu.memory_space<vmem>>, vector<18x16x128xbf16>
    %64 = vector.extract_strided_slice %63 {offsets = [0, 0, 0], sizes = [16, 16, 128], strides = [1, 1, 1]} : vector<18x16x128xbf16> to vector<16x16x128xbf16>
    %65 = vector.shape_cast %64 : vector<16x16x128xbf16> to vector<256x128xbf16>
    %66 = vector.extract_strided_slice %63 {offsets = [1, 0, 0], sizes = [16, 16, 128], strides = [1, 1, 1]} : vector<18x16x128xbf16> to vector<16x16x128xbf16>
    %67 = vector.shape_cast %66 : vector<16x16x128xbf16> to vector<256x128xbf16>
    %68 = vector.extract_strided_slice %63 {offsets = [2, 0, 0], sizes = [16, 16, 128], strides = [1, 1, 1]} : vector<18x16x128xbf16> to vector<16x16x128xbf16>
    %69 = vector.shape_cast %68 : vector<16x16x128xbf16> to vector<256x128xbf16>
    %70 = tpu.concatenate %65, %67, %69 in 1 : vector<256x128xbf16>, vector<256x128xbf16>, vector<256x128xbf16> -> vector<256x384xbf16>
    %c3 = arith.constant 3 : index
    %c0_59 = arith.constant 0 : index
    %c0_60 = arith.constant 0 : index
    %71 = vector.load %arg2[%c3, %c0_59, %c0_60] : memref<6x384x128xbf16, #tpu.memory_space<vmem>>, vector<1x384x128xbf16>
    %72 = vector.shape_cast %71 : vector<1x384x128xbf16> to vector<384x128xbf16>
    %cst_61 = arith.constant dense<0.000000e+00> : vector<256x128xf32>
    %73 = tpu.matmul %70, %72, %cst_61 {dimension_numbers = #tpu.dot_dimension_numbers<[1], [0], [0], [1], [0, 0, 1, 1], [], []>} : vector<256x384xbf16>, vector<384x128xbf16>, vector<256x128xf32> -> vector<256x128xf32>
    %74 = arith.addf %62, %73 : vector<256x128xf32>
    %c0_62 = arith.constant 0 : index
    %c16_63 = arith.constant 16 : index
    %c0_64 = arith.constant 0 : index
    %75 = vector.load %arg6[%c0_62, %c16_63, %c0_64] : memref<18x48x128xbf16, #tpu.memory_space<vmem>>, vector<18x16x128xbf16>
    %76 = vector.extract_strided_slice %75 {offsets = [0, 0, 0], sizes = [16, 16, 128], strides = [1, 1, 1]} : vector<18x16x128xbf16> to vector<16x16x128xbf16>
    %77 = vector.shape_cast %76 : vector<16x16x128xbf16> to vector<256x128xbf16>
    %78 = vector.extract_strided_slice %75 {offsets = [1, 0, 0], sizes = [16, 16, 128], strides = [1, 1, 1]} : vector<18x16x128xbf16> to vector<16x16x128xbf16>
    %79 = vector.shape_cast %78 : vector<16x16x128xbf16> to vector<256x128xbf16>
    %80 = vector.extract_strided_slice %75 {offsets = [2, 0, 0], sizes = [16, 16, 128], strides = [1, 1, 1]} : vector<18x16x128xbf16> to vector<16x16x128xbf16>
    %81 = vector.shape_cast %80 : vector<16x16x128xbf16> to vector<256x128xbf16>
    %82 = tpu.concatenate %77, %79, %81 in 1 : vector<256x128xbf16>, vector<256x128xbf16>, vector<256x128xbf16> -> vector<256x384xbf16>
    %c4 = arith.constant 4 : index
    %c0_65 = arith.constant 0 : index
    %c0_66 = arith.constant 0 : index
    %83 = vector.load %arg2[%c4, %c0_65, %c0_66] : memref<6x384x128xbf16, #tpu.memory_space<vmem>>, vector<1x384x128xbf16>
    %84 = vector.shape_cast %83 : vector<1x384x128xbf16> to vector<384x128xbf16>
    %cst_67 = arith.constant dense<0.000000e+00> : vector<256x128xf32>
    %85 = tpu.matmul %82, %84, %cst_67 {dimension_numbers = #tpu.dot_dimension_numbers<[1], [0], [0], [1], [0, 0, 1, 1], [], []>} : vector<256x384xbf16>, vector<384x128xbf16>, vector<256x128xf32> -> vector<256x128xf32>
    %86 = arith.addf %74, %85 : vector<256x128xf32>
    %c0_68 = arith.constant 0 : index
    %c17_69 = arith.constant 17 : index
    %c0_70 = arith.constant 0 : index
    %87 = vector.load %arg6[%c0_68, %c17_69, %c0_70] : memref<18x48x128xbf16, #tpu.memory_space<vmem>>, vector<18x16x128xbf16>
    %88 = vector.extract_strided_slice %87 {offsets = [0, 0, 0], sizes = [16, 16, 128], strides = [1, 1, 1]} : vector<18x16x128xbf16> to vector<16x16x128xbf16>
    %89 = vector.shape_cast %88 : vector<16x16x128xbf16> to vector<256x128xbf16>
    %90 = vector.extract_strided_slice %87 {offsets = [1, 0, 0], sizes = [16, 16, 128], strides = [1, 1, 1]} : vector<18x16x128xbf16> to vector<16x16x128xbf16>
    %91 = vector.shape_cast %90 : vector<16x16x128xbf16> to vector<256x128xbf16>
    %92 = vector.extract_strided_slice %87 {offsets = [2, 0, 0], sizes = [16, 16, 128], strides = [1, 1, 1]} : vector<18x16x128xbf16> to vector<16x16x128xbf16>
    %93 = vector.shape_cast %92 : vector<16x16x128xbf16> to vector<256x128xbf16>
    %94 = tpu.concatenate %89, %91, %93 in 1 : vector<256x128xbf16>, vector<256x128xbf16>, vector<256x128xbf16> -> vector<256x384xbf16>
    %c5 = arith.constant 5 : index
    %c0_71 = arith.constant 0 : index
    %c0_72 = arith.constant 0 : index
    %95 = vector.load %arg2[%c5, %c0_71, %c0_72] : memref<6x384x128xbf16, #tpu.memory_space<vmem>>, vector<1x384x128xbf16>
    %96 = vector.shape_cast %95 : vector<1x384x128xbf16> to vector<384x128xbf16>
    %cst_73 = arith.constant dense<0.000000e+00> : vector<256x128xf32>
    %97 = tpu.matmul %94, %96, %cst_73 {dimension_numbers = #tpu.dot_dimension_numbers<[1], [0], [0], [1], [0, 0, 1, 1], [], []>} : vector<256x384xbf16>, vector<384x128xbf16>, vector<256x128xf32> -> vector<256x128xf32>
    %98 = arith.addf %86, %97 : vector<256x128xf32>
    %cst_74 = arith.constant 0.000000e+00 : f32
    %99 = vector.broadcast %cst_74 : f32 to vector<256x128xf32>
    %100 = arith.maximumf %98, %99 : vector<256x128xf32>
    %101 = vector.shape_cast %100 : vector<256x128xf32> to vector<16x16x128xf32>
    %c0_75 = arith.constant 0 : index
    %c0_76 = arith.constant 0 : index
    %c0_77 = arith.constant 0 : index
    %c0_78 = arith.constant 0 : index
    %102 = vector.load %arg4[%c0_75, %c0_76, %c0_77, %c0_78] : memref<1x16x16x128xf32, #tpu.memory_space<vmem>>, vector<1x16x16x128xf32>
    %103 = vector.shape_cast %102 : vector<1x16x16x128xf32> to vector<16x16x128xf32>
    %104 = vector.shape_cast %101 : vector<16x16x128xf32> to vector<1x16x16x128xf32>
    tpu.vector_store %arg4[%c0_75, %c0_76, %c0_77, %c0_78], %104 {strides = array<i32>} : memref<1x16x16x128xf32, #tpu.memory_space<vmem>>, vector<1x16x16x128xf32>,
    return
  }
  func.func @transform_0(%arg0: i32) -> (i32, i32, i32, i32) {
    %c0_i32 = arith.constant 0 : i32
    %c0_i32_0 = arith.constant 0 : i32
    %c0_i32_1 = arith.constant 0 : i32
    %c0_i32_2 = arith.constant 0 : i32
    return %arg0, %c0_i32, %c0_i32_0, %c0_i32_1 : i32, i32, i32, i32
  }
  func.func @transform_1(%arg0: i32) -> (i32, i32, i32) {
    %c0_i32 = arith.constant 0 : i32
    %c0_i32_0 = arith.constant 0 : i32
    %c0_i32_1 = arith.constant 0 : i32
    %c0_i32_2 = arith.constant 0 : i32
    return %c0_i32, %c0_i32_0, %c0_i32_1 : i32, i32, i32
  }
  func.func @transform_2(%arg0: i32) -> (i32, i32, i32) {
    %c0_i32 = arith.constant 0 : i32
    %c0_i32_0 = arith.constant 0 : i32
    %c0_i32_1 = arith.constant 0 : i32
    %c0_i32_2 = arith.constant 0 : i32
    return %c0_i32, %c0_i32_0, %c0_i32_1 : i32, i32, i32
  }
  func.func @transform_3(%arg0: i32) -> (i32, i32, i32, i32) {
    %c0_i32 = arith.constant 0 : i32
    %c0_i32_0 = arith.constant 0 : i32
    %c0_i32_1 = arith.constant 0 : i32
    %c0_i32_2 = arith.constant 0 : i32
    return %arg0, %c0_i32, %c0_i32_0, %c0_i32_1 : i32, i32, i32, i32
  }
}

</mosaic_0001>

<llo_original>
// kernel: vgg_block_forward.1
$region0: #{vgg_block_forward.1}
  #allocation0 [shape = 'u32[]', space=smem, size = 0x4, offset = 0x4, fixed_abs, tag = 'smem constant byte address 0x4 - core index']
  #allocation1 [shape = 'u32[72,128]{1,0:T(1,128)}', space=vmem, size = 0x9000, scoped, tag = 'internal scratch']
  #allocation2 [shape = 'bf16[18,48,128]{2,1,0:T(8,128)(2,1)}', space=vmem, size = 0x36000, scoped, tag = 'scratch operand']
  #allocation3 [shape = 'bf16[18,48,128]{2,1,0:T(8,128)(2,1)}', space=vmem, size = 0x36000, scoped, tag = 'scratch operand']
  %s0 = inlined_call_operand.vmem [shape: f32[2,16,16,128], index: 0, kind: input, shape index: {}]
  %s1 = inlined_call_operand.vmem [shape: bf16[6,384,128], index: 1, kind: input, shape index: {}]
  %s2 = inlined_call_operand.vmem [shape: f32[2,1,128], index: 2, kind: input, shape index: {}]
  %s3 = inlined_call_operand.vmem [shape: f32[2,16,16,128], index: 3, kind: output, shape index: {}]
  %s4 = sld [smem:[#allocation0]]
  $region45: #{vgg_block_forward.1} parent=0
    _
  %s6 = ssub.s32 1, %s4
  %s7 = scalar_select 0, %s6, %s4
  loop: start=0, step=1, limit=4
  $region2: #{vgg_block_forward.1} parent=0 // loop_pre_header
    _
  $region3: #{vgg_block_forward.1} parent=0 // loop_header
    %s9 = sphi 0, %s13
    %p10 = scmp.ge.s32.totalorder %s9, 4
    %s19 = sphi 0, %s21
    %s22 = sphi 0, %s19
    %s23 = sphi 0, %s22
    %s39 = sphi 0, %s23
    %s43 = sphi 0, %s43
    %s45 = sphi 0, %s43
    %s46 = sphi 0, %s45
    %s60 = sphi 0, %s46
    %s64 = sphi 0, %s64
    %s66 = sphi 0, %s64
    %s67 = sphi 0, %s66
    %s81 = sphi 0, %s67
    %s87 = sphi 0, %s89
    %s90 = sphi 0, %s87
    %s91 = sphi 0, %s90
    %s107 = sphi 0, %s91
  $region4: #{vgg_block_forward.1} parent=0 // loop_header_branch
    %12 = sbr.rel (%p10) target = $region8
  $region5: #{vgg_block_forward.1} parent=0 // loop_body
    %s14 = ssub.s32 %s9, 1
    %s15 = ssub.s32 %s9, 2
    %s16 = sadd.s32 %s9, 1
    %s17 = ssub.s32 %s9, %s16
    %p18 = scmp.eq.s32.totalorder %s17, 0
    %s20 = sadd.s32 %s19, 1
    %s21 = scalar_select %p18, %s19, %s20
    %p24 = pneg %p18
    %p25 = scmp.eq.s32.totalorder %s9, 1
    %p26 = por %p24, %p25
    %p27 = scmp.ne.s32.totalorder %s19, %s22
    %p28 = scmp.eq.s32.totalorder %s9, 0
    %p29 = por %p27, %p28
    %p30 = scmp.ne.s32.totalorder %s19, %s22
    %p31 = scmp.eq.s32.totalorder %s14, 1
    %p32 = por %p30, %p31
    %p33 = scmp.ne.s32.totalorder %s22, %s23
    %p34 = scmp.eq.s32.totalorder %s14, 0
    %p35 = por %p33, %p34
    %p36 = scmp.ne.s32.totalorder %s22, %s23
    %p37 = scmp.eq.s32.totalorder %s15, 1
    %p38 = por %p36, %p37
    %p40 = scmp.ne.s32.totalorder %s23, %s39
    %p41 = scmp.eq.s32.totalorder %s15, 0
    %p42 = por %p40, %p41
    %s44 = sadd.s32 %s43, 1
    %p47 = scmp.eq.s32.totalorder %s9, 1
    %p48 = scmp.ne.s32.totalorder %s43, %s45
    %p49 = scmp.eq.s32.totalorder %s9, 0
    %p50 = por %p48, %p49
    %p51 = scmp.ne.s32.totalorder %s43, %s45
    %p52 = scmp.eq.s32.totalorder %s14, 1
    %p53 = por %p51, %p52
    %p54 = scmp.ne.s32.totalorder %s45, %s46
    %p55 = scmp.eq.s32.totalorder %s14, 0
    %p56 = por %p54, %p55
    %p57 = scmp.ne.s32.totalorder %s45, %s46
    %p58 = scmp.eq.s32.totalorder %s15, 1
    %p59 = por %p57, %p58
    %p61 = scmp.ne.s32.totalorder %s46, %s60
    %p62 = scmp.eq.s32.totalorder %s15, 0
    %p63 = por %p61, %p62
    %s65 = sadd.s32 %s64, 1
    %p68 = scmp.eq.s32.totalorder %s9, 1
    %p69 = scmp.ne.s32.totalorder %s64, %s66
    %p70 = scmp.eq.s32.totalorder %s9, 0
    %p71 = por %p69, %p70
    %p72 = scmp.ne.s32.totalorder %s64, %s66
    %p73 = scmp.eq.s32.totalorder %s14, 1
    %p74 = por %p72, %p73
    %p75 = scmp.ne.s32.totalorder %s66, %s67
    %p76 = scmp.eq.s32.totalorder %s14, 0
    %p77 = por %p75, %p76
    %p78 = scmp.ne.s32.totalorder %s66, %s67
    %p79 = scmp.eq.s32.totalorder %s15, 1
    %p80 = por %p78, %p79
    %p82 = scmp.ne.s32.totalorder %s67, %s81
    %p83 = scmp.eq.s32.totalorder %s15, 0
    %p84 = por %p82, %p83
    %s85 = ssub.s32 %s9, %s16
    %p86 = scmp.eq.s32.totalorder %s85, 0
    %s88 = sadd.s32 %s87, 1
    %s89 = scalar_select %p86, %s87, %s88
    %p92 = pneg %p86
    %p93 = scmp.eq.s32.totalorder %s9, 1
    %p94 = por %p92, %p93
    %p95 = scmp.ne.s32.totalorder %s87, %s90
    %p96 = scmp.eq.s32.totalorder %s9, 0
    %p97 = por %p95, %p96
    %p98 = scmp.ne.s32.totalorder %s87, %s90
    %p99 = scmp.eq.s32.totalorder %s14, 1
    %p100 = por %p98, %p99
    %p101 = scmp.ne.s32.totalorder %s90, %s91
    %p102 = scmp.eq.s32.totalorder %s14, 0
    %p103 = por %p101, %p102
    %p104 = scmp.ne.s32.totalorder %s90, %s91
    %p105 = scmp.eq.s32.totalorder %s15, 1
    %p106 = por %p104, %p105
    %p108 = scmp.ne.s32.totalorder %s91, %s107
    %p109 = scmp.eq.s32.totalorder %s15, 0
    %p110 = por %p108, %p109
    %p111 = scmp.le.s32.totalorder 1, %s9
    %p112 = scmp.lt.s32.totalorder %s9, 3
    %p113 = pnand %p111, %p112
    %p114 = pneg %p113
    // Predicated region
    $region9: #{vgg_block_forward.1} parent=5 // pred_check
      _
    $region10: #{vgg_block_forward.1} parent=5 // pred_check_branch
      %116 = sbr.rel (%p113) target = $region12
    $region11: #{vgg_block_forward.1} parent=5 // pred_region
      %s117 = ssub.s32 %s9, 1
      // Predicated region
      $region13: #{vgg_block_forward.1} parent=11 // pred_check
        %p118 = pneg %p56
      $region14: #{vgg_block_forward.1} parent=11 // pred_check_branch
        %120 = sbr.rel (%p118) target = $region16
      $region15: #{vgg_block_forward.1} parent=11 // pred_region
        _
      $region16: #{vgg_block_forward.1} parent=11 // pred_fallthru
        _
      // Predicated region
      $region17: #{vgg_block_forward.1} parent=11 // pred_check
        %p121 = pneg %p77
      $region18: #{vgg_block_forward.1} parent=11 // pred_check_branch
        %123 = sbr.rel (%p121) target = $region20
      $region19: #{vgg_block_forward.1} parent=11 // pred_region
        _
      $region20: #{vgg_block_forward.1} parent=11 // pred_fallthru
        _
    $region12: #{vgg_block_forward.1} parent=5 // pred_fallthru
      _
    %p124 = scmp.lt.s32.totalorder %s9, 2
    // Predicated region
    $region21: #{vgg_block_forward.1} parent=5 // pred_check
      %p125 = pneg %p124
    $region22: #{vgg_block_forward.1} parent=5 // pred_check_branch
      %127 = sbr.rel (%p125) target = $region24
    $region23: #{vgg_block_forward.1} parent=5 // pred_region
      // Predicated region
      $region25: #{vgg_block_forward.1} parent=23 // pred_check
        %p128 = pneg %p29
      $region26: #{vgg_block_forward.1} parent=23 // pred_check_branch
        %130 = sbr.rel (%p128) target = $region28
      $region27: #{vgg_block_forward.1} parent=23 // pred_region
        %p131 = scmp.lt.s32.totalorder %s9, 1
        %s132 = scalar_select %p131, %s9, 1
        %s133 = smul.addr %s132, 32
        %s134 = smul.addr %s133, 8
        %s135 = scalar_lea.vmem %s0, %s134
      $region28: #{vgg_block_forward.1} parent=23 // pred_fallthru
        _
    $region24: #{vgg_block_forward.1} parent=5 // pred_fallthru
      _
    %p136 = scmp.le.s32.totalorder 1, %s9
    %p137 = scmp.lt.s32.totalorder %s9, 3
    %p138 = pnand %p136, %p137
    %p139 = pneg %p138
    // Predicated region
    $region29: #{vgg_block_forward.1} parent=5 // pred_check
      _
    $region30: #{vgg_block_forward.1} parent=5 // pred_check_branch
      %141 = sbr.rel (%p138) target = $region32
    $region31: #{vgg_block_forward.1} parent=5 // pred_region
      %s142 = ssub.s32 %s9, 1
      %p143 = scmp.lt.s32.totalorder %s14, 1
      %s144 = scalar_select %p143, %s14, 1
      %s145 = smul.addr %s144, 32
      %s146 = smul.addr %s145, 8
      %s147 = scalar_lea.vmem %s0, %s146
      %p148 = pneg %p35
      %p149 = pneg %p32
      %p150 = pneg %p56
      %p151 = pneg %p53
      %p152 = pneg %p77
      %p153 = pneg %p74
      %p154 = pneg %p103
      %p155 = pneg %p100
      %p156 = scmp.lt.s32.totalorder %s14, 1
      %s157 = scalar_select %p156, %s14, 1
      %s158 = smul.addr %s157, 32
      %s159 = smul.addr %s158, 8
      %s160 = scalar_lea.vmem %s3, %s159
      %p161 = scmp.lt.s32.totalorder %s14, 1
      %s162 = scalar_select %p161, %s14, 1
      %s163 = smul.addr %s162, 32
      %s164 = smul.addr %s163, 8
      %s165 = scalar_lea.vmem %s0, %s164
      %p166 = scmp.lt.s32.totalorder %s14, 1
      %s167 = scalar_select %p166, %s14, 1
      %s168 = smul.addr %s167, 32
      %s169 = smul.addr %s168, 8
      %s170 = scalar_lea.vmem %s3, %s169
      %172 = vst [vmem:[#allocation2] sm:$0xf] 0
      %173 = vst [vmem:[#allocation2 + $0x4] sm:$0xf] 0
      %174 = vst [vmem:[#allocation2 + $0x8] sm:$0xf] 0
      %175 = vst [vmem:[#allocation2 + $0xc] sm:$0xf] 0
      %176 = vst [vmem:[#allocation2 + $0x10] sm:$0xf] 0
      %177 = vst [vmem:[#allocation2 + $0x14] sm:$0xf] 0
      %s178 = scalar_lea.vmem [#allocation2], 408
      %179 = vst [vmem:[%s178] sm:$0xf] 0
      %180 = vst [vmem:[%s178 + $0x4] sm:$0xf] 0
      %181 = vst [vmem:[%s178 + $0x8] sm:$0xf] 0
      %182 = vst [vmem:[%s178 + $0xc] sm:$0xf] 0
      %183 = vst [vmem:[%s178 + $0x10] sm:$0xf] 0
      %184 = vst [vmem:[%s178 + $0x14] sm:$0xf] 0
      %185 = vst [vmem:[#allocation2] sm:$0xf] 0
      %186 = vst [vmem:[#allocation2 + $0x4] sm:$0xf] 0
      %187 = vst [vmem:[#allocation2 + $0x18] sm:$0xf] 0
      %188 = vst [vmem:[#allocation2 + $0x1c] sm:$0xf] 0
      %189 = vst [vmem:[#allocation2 + $0x30] sm:$0xf] 0
      %190 = vst [vmem:[#allocation2 + $0x34] sm:$0xf] 0
      %191 = vst [vmem:[#allocation2 + $0x48] sm:$0xf] 0
      %192 = vst [vmem:[#allocation2 + $0x4c] sm:$0xf] 0
      %193 = vst [vmem:[#allocation2 + $0x60] sm:$0xf] 0
      %194 = vst [vmem:[#allocation2 + $0x64] sm:$0xf] 0
      %195 = vst [vmem:[#allocation2 + $0x78] sm:$0xf] 0
      %196 = vst [vmem:[#allocation2 + $0x7c] sm:$0xf] 0
      %197 = vst [vmem:[#allocation2 + $0x90] sm:$0xf] 0
      %198 = vst [vmem:[#allocation2 + $0x94] sm:$0xf] 0
      %199 = vst [vmem:[#allocation2 + $0xa8] sm:$0xf] 0
      %200 = vst [vmem:[#allocation2 + $0xac] sm:$0xf] 0
      %201 = vst [vmem:[#allocation2 + $0xc0] sm:$0xf] 0
      %202 = vst [vmem:[#allocation2 + $0xc4] sm:$0xf] 0
      %203 = vst [vmem:[#allocation2 + $0xd8] sm:$0xf] 0
      %204 = vst [vmem:[#allocation2 + $0xdc] sm:$0xf] 0
      %205 = vst [vmem:[#allocation2 + $0xf0] sm:$0xf] 0
      %206 = vst [vmem:[#allocation2 + $0xf4] sm:$0xf] 0
      %207 = vst [vmem:[#allocation2 + $0x108] sm:$0xf] 0
      %208 = vst [vmem:[#allocation2 + $0x10c] sm:$0xf] 0
      %209 = vst [vmem:[#allocation2 + $0x120] sm:$0xf] 0
      %210 = vst [vmem:[#allocation2 + $0x124] sm:$0xf] 0
      %211 = vst [vmem:[#allocation2 + $0x138] sm:$0xf] 0
      %212 = vst [vmem:[#allocation2 + $0x13c] sm:$0xf] 0
      %213 = vst [vmem:[#allocation2 + $0x150] sm:$0xf] 0
      %214 = vst [vmem:[#allocation2 + $0x154] sm:$0xf] 0
      %215 = vst [vmem:[#allocation2 + $0x168] sm:$0xf] 0
      %216 = vst [vmem:[#allocation2 + $0x16c] sm:$0xf] 0
      %217 = vst [vmem:[#allocation2 + $0x180] sm:$0xf] 0
      %218 = vst [vmem:[#allocation2 + $0x184] sm:$0xf] 0
      %219 = vst [vmem:[#allocation2 + $0x198] sm:$0xf] 0
      %220 = vst [vmem:[#allocation2 + $0x19c] sm:$0xf] 0
      %221 = vst [vmem:[#allocation2 + $0x10] sm:$0xf] 0
      %222 = vst [vmem:[#allocation2 + $0x14] sm:$0xf] 0
      %223 = vst [vmem:[#allocation2 + $0x28] sm:$0xf] 0
      %224 = vst [vmem:[#allocation2 + $0x2c] sm:$0xf] 0
      %225 = vst [vmem:[#allocation2 + $0x40] sm:$0xf] 0
      %226 = vst [vmem:[#allocation2 + $0x44] sm:$0xf] 0
      %227 = vst [vmem:[#allocation2 + $0x58] sm:$0xf] 0
      %228 = vst [vmem:[#allocation2 + $0x5c] sm:$0xf] 0
      %229 = vst [vmem:[#allocation2 + $0x70] sm:$0xf] 0
      %230 = vst [vmem:[#allocation2 + $0x74] sm:$0xf] 0
      %231 = vst [vmem:[#allocation2 + $0x88] sm:$0xf] 0
      %232 = vst [vmem:[#allocation2 + $0x8c] sm:$0xf] 0
      %233 = vst [vmem:[#allocation2 + $0xa0] sm:$0xf] 0
      %234 = vst [vmem:[#allocation2 + $0xa4] sm:$0xf] 0
      %235 = vst [vmem:[#allocation2 + $0xb8] sm:$0xf] 0
      %236 = vst [vmem:[#allocation2 + $0xbc] sm:$0xf] 0
      %237 = vst [vmem:[#allocation2 + $0xd0] sm:$0xf] 0
      %238 = vst [vmem:[#allocation2 + $0xd4] sm:$0xf] 0
      %239 = vst [vmem:[#allocation2 + $0xe8] sm:$0xf] 0
      %240 = vst [vmem:[#allocation2 + $0xec] sm:$0xf] 0
      %241 = vst [vmem:[#allocation2 + $0x100] sm:$0xf] 0
      %242 = vst [vmem:[#allocation2 + $0x104] sm:$0xf] 0
      %243 = vst [vmem:[#allocation2 + $0x118] sm:$0xf] 0
      %244 = vst [vmem:[#allocation2 + $0x11c] sm:$0xf] 0
      %245 = vst [vmem:[#allocation2 + $0x130] sm:$0xf] 0
      %246 = vst [vmem:[#allocation2 + $0x134] sm:$0xf] 0
      %247 = vst [vmem:[#allocation2 + $0x148] sm:$0xf] 0
      %248 = vst [vmem:[#allocation2 + $0x14c] sm:$0xf] 0
      %249 = vst [vmem:[#allocation2 + $0x160] sm:$0xf] 0
      %250 = vst [vmem:[#allocation2 + $0x164] sm:$0xf] 0
      %251 = vst [vmem:[#allocation2 + $0x178] sm:$0xf] 0
      %252 = vst [vmem:[#allocation2 + $0x17c] sm:$0xf] 0
      %253 = vst [vmem:[#allocation2 + $0x190] sm:$0xf] 0
      %254 = vst [vmem:[#allocation2 + $0x194] sm:$0xf] 0
      %255 = vst [vmem:[#allocation2 + $0x1a8] sm:$0xf] 0
      %256 = vst [vmem:[#allocation2 + $0x1ac] sm:$0xf] 0
      %257 = vst [vmem:[#allocation3] sm:$0xf] 0
      %258 = vst [vmem:[#allocation3 + $0x4] sm:$0xf] 0
      %259 = vst [vmem:[#allocation3 + $0x8] sm:$0xf] 0
      %260 = vst [vmem:[#allocation3 + $0xc] sm:$0xf] 0
      %261 = vst [vmem:[#allocation3 + $0x10] sm:$0xf] 0
      %262 = vst [vmem:[#allocation3 + $0x14] sm:$0xf] 0
      %s263 = scalar_lea.vmem [#allocation3], 408
      %264 = vst [vmem:[%s263] sm:$0xf] 0
      %265 = vst [vmem:[%s263 + $0x4] sm:$0xf] 0
      %266 = vst [vmem:[%s263 + $0x8] sm:$0xf] 0
      %267 = vst [vmem:[%s263 + $0xc] sm:$0xf] 0
      %268 = vst [vmem:[%s263 + $0x10] sm:$0xf] 0
      %269 = vst [vmem:[%s263 + $0x14] sm:$0xf] 0
      %270 = vst [vmem:[#allocation3] sm:$0xf] 0
      %271 = vst [vmem:[#allocation3 + $0x4] sm:$0xf] 0
      %272 = vst [vmem:[#allocation3 + $0x18] sm:$0xf] 0
      %273 = vst [vmem:[#allocation3 + $0x1c] sm:$0xf] 0
      %274 = vst [vmem:[#allocation3 + $0x30] sm:$0xf] 0
      %275 = vst [vmem:[#allocation3 + $0x34] sm:$0xf] 0
      %276 = vst [vmem:[#allocation3 + $0x48] sm:$0xf] 0
      %277 = vst [vmem:[#allocation3 + $0x4c] sm:$0xf] 0
      %278 = vst [vmem:[#allocation3 + $0x60] sm:$0xf] 0
      %279 = vst [vmem:[#allocation3 + $0x64] sm:$0xf] 0
      %280 = vst [vmem:[#allocation3 + $0x78] sm:$0xf] 0
      %281 = vst [vmem:[#allocation3 + $0x7c] sm:$0xf] 0
      %282 = vst [vmem:[#allocation3 + $0x90] sm:$0xf] 0
      %283 = vst [vmem:[#allocation3 + $0x94] sm:$0xf] 0
      %284 = vst [vmem:[#allocation3 + $0xa8] sm:$0xf] 0
      %285 = vst [vmem:[#allocation3 + $0xac] sm:$0xf] 0
      %286 = vst [vmem:[#allocation3 + $0xc0] sm:$0xf] 0
      %287 = vst [vmem:[#allocation3 + $0xc4] sm:$0xf] 0
      %288 = vst [vmem:[#allocation3 + $0xd8] sm:$0xf] 0
      %289 = vst [vmem:[#allocation3 + $0xdc] sm:$0xf] 0
      %290 = vst [vmem:[#allocation3 + $0xf0] sm:$0xf] 0
      %291 = vst [vmem:[#allocation3 + $0xf4] sm:$0xf] 0
      %292 = vst [vmem:[#allocation3 + $0x108] sm:$0xf] 0
      %293 = vst [vmem:[#allocation3 + $0x10c] sm:$0xf] 0
      %294 = vst [vmem:[#allocation3 + $0x120] sm:$0xf] 0
      %295 = vst [vmem:[#allocation3 + $0x124] sm:$0xf] 0
      %296 = vst [vmem:[#allocation3 + $0x138] sm:$0xf] 0
      %297 = vst [vmem:[#allocation3 + $0x13c] sm:$0xf] 0
      %298 = vst [vmem:[#allocation3 + $0x150] sm:$0xf] 0
      %299 = vst [vmem:[#allocation3 + $0x154] sm:$0xf] 0
      %300 = vst [vmem:[#allocation3 + $0x168] sm:$0xf] 0
      %301 = vst [vmem:[#allocation3 + $0x16c] sm:$0xf] 0
      %302 = vst [vmem:[#allocation3 + $0x180] sm:$0xf] 0
      %303 = vst [vmem:[#allocation3 + $0x184] sm:$0xf] 0
      %304 = vst [vmem:[#allocation3 + $0x198] sm:$0xf] 0
      %305 = vst [vmem:[#allocation3 + $0x19c] sm:$0xf] 0
      %306 = vst [vmem:[#allocation3 + $0x10] sm:$0xf] 0
      %307 = vst [vmem:[#allocation3 + $0x14] sm:$0xf] 0
      %308 = vst [vmem:[#allocation3 + $0x28] sm:$0xf] 0
      %309 = vst [vmem:[#allocation3 + $0x2c] sm:$0xf] 0
      %310 = vst [vmem:[#allocation3 + $0x40] sm:$0xf] 0
      %311 = vst [vmem:[#allocation3 + $0x44] sm:$0xf] 0
      %312 = vst [vmem:[#allocation3 + $0x58] sm:$0xf] 0
      %313 = vst [vmem:[#allocation3 + $0x5c] sm:$0xf] 0
      %314 = vst [vmem:[#allocation3 + $0x70] sm:$0xf] 0
      %315 = vst [vmem:[#allocation3 + $0x74] sm:$0xf] 0
      %316 = vst [vmem:[#allocation3 + $0x88] sm:$0xf] 0
      %317 = vst [vmem:[#allocation3 + $0x8c] sm:$0xf] 0
      %318 = vst [vmem:[#allocation3 + $0xa0] sm:$0xf] 0
      %319 = vst [vmem:[#allocation3 + $0xa4] sm:$0xf] 0
      %320 = vst [vmem:[#allocation3 + $0xb8] sm:$0xf] 0
      %321 = vst [vmem:[#allocation3 + $0xbc] sm:$0xf] 0
      %322 = vst [vmem:[#allocation3 + $0xd0] sm:$0xf] 0
      %323 = vst [vmem:[#allocation3 + $0xd4] sm:$0xf] 0
      %324 = vst [vmem:[#allocation3 + $0xe8] sm:$0xf] 0
      %325 = vst [vmem:[#allocation3 + $0xec] sm:$0xf] 0
      %326 = vst [vmem:[#allocation3 + $0x100] sm:$0xf] 0
      %327 = vst [vmem:[#allocation3 + $0x104] sm:$0xf] 0
      %328 = vst [vmem:[#allocation3 + $0x118] sm:$0xf] 0
      %329 = vst [vmem:[#allocation3 + $0x11c] sm:$0xf] 0
      %330 = vst [vmem:[#allocation3 + $0x130] sm:$0xf] 0
      %331 = vst [vmem:[#allocation3 + $0x134] sm:$0xf] 0
      %332 = vst [vmem:[#allocation3 + $0x148] sm:$0xf] 0
      %333 = vst [vmem:[#allocation3 + $0x14c] sm:$0xf] 0
      %334 = vst [vmem:[#allocation3 + $0x160] sm:$0xf] 0
      %335 = vst [vmem:[#allocation3 + $0x164] sm:$0xf] 0
      %336 = vst [vmem:[#allocation3 + $0x178] sm:$0xf] 0
      %337 = vst [vmem:[#allocation3 + $0x17c] sm:$0xf] 0
      %338 = vst [vmem:[#allocation3 + $0x190] sm:$0xf] 0
      %339 = vst [vmem:[#allocation3 + $0x194] sm:$0xf] 0
      %340 = vst [vmem:[#allocation3 + $0x1a8] sm:$0xf] 0
      %341 = vst [vmem:[#allocation3 + $0x1ac] sm:$0xf] 0
      %v342 = vld [vmem:[%s165] sm:$0xff]
      %v343 = vld [vmem:[%s165 + $0x8] sm:$0xff]
      %v344 = vld [vmem:[%s165 + $0x10] sm:$0xff]
      %v345 = vld [vmem:[%s165 + $0x18] sm:$0xff]
      %v346 = vld [vmem:[%s165 + $0x20] sm:$0xff]
      %v347 = vld [vmem:[%s165 + $0x28] sm:$0xff]
      %v348 = vld [vmem:[%s165 + $0x30] sm:$0xff]
      %v349 = vld [vmem:[%s165 + $0x38] sm:$0xff]
      %v350 = vld [vmem:[%s165 + $0x40] sm:$0xff]
      %v351 = vld [vmem:[%s165 + $0x48] sm:$0xff]
      %v352 = vld [vmem:[%s165 + $0x50] sm:$0xff]
      %v353 = vld [vmem:[%s165 + $0x58] sm:$0xff]
      %v354 = vld [vmem:[%s165 + $0x60] sm:$0xff]
      %v355 = vld [vmem:[%s165 + $0x68] sm:$0xff]
      %v356 = vld [vmem:[%s165 + $0x70] sm:$0xff]
      %v357 = vld [vmem:[%s165 + $0x78] sm:$0xff]
      %v358 = vld [vmem:[%s165 + $0x80] sm:$0xff]
      %v359 = vld [vmem:[%s165 + $0x88] sm:$0xff]
      %v360 = vld [vmem:[%s165 + $0x90] sm:$0xff]
      %v361 = vld [vmem:[%s165 + $0x98] sm:$0xff]
      %v362 = vld [vmem:[%s165 + $0xa0] sm:$0xff]
      %v363 = vld [vmem:[%s165 + $0xa8] sm:$0xff]
      %v364 = vld [vmem:[%s165 + $0xb0] sm:$0xff]
      %v365 = vld [vmem:[%s165 + $0xb8] sm:$0xff]
      %v366 = vld [vmem:[%s165 + $0xc0] sm:$0xff]
      %v367 = vld [vmem:[%s165 + $0xc8] sm:$0xff]
      %v368 = vld [vmem:[%s165 + $0xd0] sm:$0xff]
      %v369 = vld [vmem:[%s165 + $0xd8] sm:$0xff]
      %v370 = vld [vmem:[%s165 + $0xe0] sm:$0xff]
      %v371 = vld [vmem:[%s165 + $0xe8] sm:$0xff]
      %v372 = vld [vmem:[%s165 + $0xf0] sm:$0xff]
      %v373 = vld [vmem:[%s165 + $0xf8] sm:$0xff]
      %v374 = vpack.c.bf16 %v342, %v342
      %v375 = vpack.c.bf16 %v343, %v343
      %v376 = vpack.c.bf16 %v344, %v344
      %v377 = vpack.c.bf16 %v345, %v345
      %v378 = vpack.c.bf16 %v346, %v346
      %v379 = vpack.c.bf16 %v347, %v347
      %v380 = vpack.c.bf16 %v348, %v348
      %v381 = vpack.c.bf16 %v349, %v349
      %v382 = vpack.c.bf16 %v350, %v350
      %v383 = vpack.c.bf16 %v351, %v351
      %v384 = vpack.c.bf16 %v352, %v352
      %v385 = vpack.c.bf16 %v353, %v353
      %v386 = vpack.c.bf16 %v354, %v354
      %v387 = vpack.c.bf16 %v355, %v355
      %v388 = vpack.c.bf16 %v356, %v356
      %v389 = vpack.c.bf16 %v357, %v357
      %v390 = vpack.c.bf16 %v358, %v358
      %v391 = vpack.c.bf16 %v359, %v359
      %v392 = vpack.c.bf16 %v360, %v360
      %v393 = vpack.c.bf16 %v361, %v361
      %v394 = vpack.c.bf16 %v362, %v362
      %v395 = vpack.c.bf16 %v363, %v363
      %v396 = vpack.c.bf16 %v364, %v364
      %v397 = vpack.c.bf16 %v365, %v365
      %v398 = vpack.c.bf16 %v366, %v366
      %v399 = vpack.c.bf16 %v367, %v367
      %v400 = vpack.c.bf16 %v368, %v368
      %v401 = vpack.c.bf16 %v369, %v369
      %v402 = vpack.c.bf16 %v370, %v370
      %v403 = vpack.c.bf16 %v371, %v371
      %v404 = vpack.c.bf16 %v372, %v372
      %v405 = vpack.c.bf16 %v373, %v373
      %s406 = scalar_lea.vmem [#allocation2], 24
      %407 = vst [vmem:[%s406 + $0x8] sm:$0xf] %v374
      %408 = vst [vmem:[%s406 + $0xc] sm:$0xf] %v375
      %409 = vst [vmem:[%s406 + $0x20] sm:$0xf] %v376
      %410 = vst [vmem:[%s406 + $0x24] sm:$0xf] %v377
      %411 = vst [vmem:[%s406 + $0x38] sm:$0xf] %v378
      %412 = vst [vmem:[%s406 + $0x3c] sm:$0xf] %v379
      %413 = vst [vmem:[%s406 + $0x50] sm:$0xf] %v380
      %414 = vst [vmem:[%s406 + $0x54] sm:$0xf] %v381
      %415 = vst [vmem:[%s406 + $0x68] sm:$0xf] %v382
      %416 = vst [vmem:[%s406 + $0x6c] sm:$0xf] %v383
      %417 = vst [vmem:[%s406 + $0x80] sm:$0xf] %v384
      %418 = vst [vmem:[%s406 + $0x84] sm:$0xf] %v385
      %419 = vst [vmem:[%s406 + $0x98] sm:$0xf] %v386
      %420 = vst [vmem:[%s406 + $0x9c] sm:$0xf] %v387
      %421 = vst [vmem:[%s406 + $0xb0] sm:$0xf] %v388
      %422 = vst [vmem:[%s406 + $0xb4] sm:$0xf] %v389
      %423 = vst [vmem:[%s406 + $0xc8] sm:$0xf] %v390
      %424 = vst [vmem:[%s406 + $0xcc] sm:$0xf] %v391
      %425 = vst [vmem:[%s406 + $0xe0] sm:$0xf] %v392
      %426 = vst [vmem:[%s406 + $0xe4] sm:$0xf] %v393
      %427 = vst [vmem:[%s406 + $0xf8] sm:$0xf] %v394
      %428 = vst [vmem:[%s406 + $0xfc] sm:$0xf] %v395
      %429 = vst [vmem:[%s406 + $0x110] sm:$0xf] %v396
      %430 = vst [vmem:[%s406 + $0x114] sm:$0xf] %v397
      %431 = vst [vmem:[%s406 + $0x128] sm:$0xf] %v398
      %432 = vst [vmem:[%s406 + $0x12c] sm:$0xf] %v399
      %433 = vst [vmem:[%s406 + $0x140] sm:$0xf] %v400
      %434 = vst [vmem:[%s406 + $0x144] sm:$0xf] %v401
      %435 = vst [vmem:[%s406 + $0x158] sm:$0xf] %v402
      %436 = vst [vmem:[%s406 + $0x15c] sm:$0xf] %v403
      %437 = vst [vmem:[%s406 + $0x170] sm:$0xf] %v404
      %438 = vst [vmem:[%s406 + $0x174] sm:$0xf] %v405
      %v439 = vld [vmem:[%s2] sm:$0x1]
      %v441 = vperm.slane %v439, 0
      %v443 = vld [vmem:[#allocation2 + $0x4] sm:$0x8]
      %v444 = vld [vmem:[#allocation2 + $0x8] sm:$0xf]
      %v445 = vld [vmem:[#allocation2 + $0xc] sm:$0xf]
      %v446 = vld [vmem:[#allocation2 + $0x1c] sm:$0x8]
      %v447 = vld [vmem:[#allocation2 + $0x20] sm:$0xf]
      %v448 = vld [vmem:[#allocation2 + $0x24] sm:$0xf]
      %v449 = vld [vmem:[#allocation2 + $0x34] sm:$0x8]
      %v450 = vld [vmem:[#allocation2 + $0x38] sm:$0xf]
      %v451 = vld [vmem:[#allocation2 + $0x3c] sm:$0xf]
      %v452 = vld [vmem:[#allocation2 + $0x4c] sm:$0x8]
      %v453 = vld [vmem:[#allocation2 + $0x50] sm:$0xf]
      %v454 = vld [vmem:[#allocation2 + $0x54] sm:$0xf]
      %v455 = vld [vmem:[#allocation2 + $0x64] sm:$0x8]
      %v456 = vld [vmem:[#allocation2 + $0x68] sm:$0xf]
      %v457 = vld [vmem:[#allocation2 + $0x6c] sm:$0xf]
      %v458 = vld [vmem:[#allocation2 + $0x7c] sm:$0x8]
      %v459 = vld [vmem:[#allocation2 + $0x80] sm:$0xf]
      %v460 = vld [vmem:[#allocation2 + $0x84] sm:$0xf]
      %v461 = vld [vmem:[#allocation2 + $0x94] sm:$0x8]
      %v462 = vld [vmem:[#allocation2 + $0x98] sm:$0xf]
      %v463 = vld [vmem:[#allocation2 + $0x9c] sm:$0xf]
      %v464 = vld [vmem:[#allocation2 + $0xac] sm:$0x8]
      %v465 = vld [vmem:[#allocation2 + $0xb0] sm:$0xf]
      %v466 = vld [vmem:[#allocation2 + $0xb4] sm:$0xf]
      %v467 = vld [vmem:[#allocation2 + $0xc4] sm:$0x8]
      %v468 = vld [vmem:[#allocation2 + $0xc8] sm:$0xf]
      %v469 = vld [vmem:[#allocation2 + $0xcc] sm:$0xf]
      %v470 = vld [vmem:[#allocation2 + $0xdc] sm:$0x8]
      %v471 = vld [vmem:[#allocation2 + $0xe0] sm:$0xf]
      %v472 = vld [vmem:[#allocation2 + $0xe4] sm:$0xf]
      %v473 = vld [vmem:[#allocation2 + $0xf4] sm:$0x8]
      %v474 = vld [vmem:[#allocation2 + $0xf8] sm:$0xf]
      %v475 = vld [vmem:[#allocation2 + $0xfc] sm:$0xf]
      %v476 = vld [vmem:[#allocation2 + $0x10c] sm:$0x8]
      %v477 = vld [vmem:[#allocation2 + $0x110] sm:$0xf]
      %v478 = vld [vmem:[#allocation2 + $0x114] sm:$0xf]
      %v479 = vld [vmem:[#allocation2 + $0x124] sm:$0x8]
      %v480 = vld [vmem:[#allocation2 + $0x128] sm:$0xf]
      %v481 = vld [vmem:[#allocation2 + $0x12c] sm:$0xf]
      %v482 = vld [vmem:[#allocation2 + $0x13c] sm:$0x8]
      %v483 = vld [vmem:[#allocation2 + $0x140] sm:$0xf]
      %v484 = vld [vmem:[#allocation2 + $0x144] sm:$0xf]
      %v485 = vld [vmem:[#allocation2 + $0x154] sm:$0x8]
      %v486 = vld [vmem:[#allocation2 + $0x158] sm:$0xf]
      %v487 = vld [vmem:[#allocation2 + $0x15c] sm:$0xf]
      %v488 = vld [vmem:[#allocation2 + $0x16c] sm:$0x8]
      %v489 = vld [vmem:[#allocation2 + $0x170] sm:$0xf]
      %v490 = vld [vmem:[#allocation2 + $0x174] sm:$0xf]
      %v491 = vld [vmem:[#allocation2 + $0x184] sm:$0x8]
      %v492 = vld [vmem:[#allocation2 + $0x188] sm:$0xf]
      %v493 = vld [vmem:[#allocation2 + $0x18c] sm:$0xf]
      %v494 = vld [vmem:[#allocation2 + $0x19c] sm:$0x8]
      %v495 = vld [vmem:[#allocation2 + $0x1a0] sm:$0xf]
      %v496 = vld [vmem:[#allocation2 + $0x1a4] sm:$0xf]
      %vm497 = vsmask.f32 256
      %vm498 = vsmask.f32 4368
      %vm499 = vmor %vm497, %vm498
      %v501 = vshrl.u32 %v443, 16
      %v503 = vrot.slane %v501, 7
      %v504 = vrot.slane %v503, 4
      %v506 = vshrl.u32 %v444, 16
      %v508 = vrot.slane %v506, 7
      %v509 = vshll.u32 %v444, 16
      %v511 = vor.u32 %v508, %v509
      %v512 = vsel %vm499, %v504, %v511
      %v513 = vrot.slane %v508, 4
      %v515 = vshrl.u32 %v445, 16
      %v517 = vrot.slane %v515, 7
      %v518 = vshll.u32 %v445, 16
      %v520 = vor.u32 %v517, %v518
      %v521 = vsel %vm499, %v513, %v520
      %v523 = vshrl.u32 %v446, 16
      %v525 = vrot.slane %v523, 7
      %v526 = vrot.slane %v525, 4
      %v528 = vshrl.u32 %v447, 16
      %v530 = vrot.slane %v528, 7
      %v531 = vshll.u32 %v447, 16
      %v533 = vor.u32 %v530, %v531
      %v534 = vsel %vm499, %v526, %v533
      %v535 = vrot.slane %v530, 4
      %v537 = vshrl.u32 %v448, 16
      %v539 = vrot.slane %v537, 7
      %v540 = vshll.u32 %v448, 16
      %v542 = vor.u32 %v539, %v540
      %v543 = vsel %vm499, %v535, %v542
      %v545 = vshrl.u32 %v449, 16
      %v547 = vrot.slane %v545, 7
      %v548 = vrot.slane %v547, 4
      %v550 = vshrl.u32 %v450, 16
      %v552 = vrot.slane %v550, 7
      %v553 = vshll.u32 %v450, 16
      %v555 = vor.u32 %v552, %v553
      %v556 = vsel %vm499, %v548, %v555
      %v557 = vrot.slane %v552, 4
      %v559 = vshrl.u32 %v451, 16
      %v561 = vrot.slane %v559, 7
      %v562 = vshll.u32 %v451, 16
      %v564 = vor.u32 %v561, %v562
      %v565 = vsel %vm499, %v557, %v564
      %v567 = vshrl.u32 %v452, 16
      %v569 = vrot.slane %v567, 7
      %v570 = vrot.slane %v569, 4
      %v572 = vshrl.u32 %v453, 16
      %v574 = vrot.slane %v572, 7
      %v575 = vshll.u32 %v453, 16
      %v577 = vor.u32 %v574, %v575
      %v578 = vsel %vm499, %v570, %v577
      %v579 = vrot.slane %v574, 4
      %v581 = vshrl.u32 %v454, 16
      %v583 = vrot.slane %v581, 7
      %v584 = vshll.u32 %v454, 16
      %v586 = vor.u32 %v583, %v584
      %v587 = vsel %vm499, %v579, %v586
      %v589 = vshrl.u32 %v455, 16
      %v591 = vrot.slane %v589, 7
      %v592 = vrot.slane %v591, 4
      %v594 = vshrl.u32 %v456, 16
      %v596 = vrot.slane %v594, 7
      %v597 = vshll.u32 %v456, 16
      %v599 = vor.u32 %v596, %v597
      %v600 = vsel %vm499, %v592, %v599
      %v601 = vrot.slane %v596, 4
      %v603 = vshrl.u32 %v457, 16
      %v605 = vrot.slane %v603, 7
      %v606 = vshll.u32 %v457, 16
      %v608 = vor.u32 %v605, %v606
      %v609 = vsel %vm499, %v601, %v608
      %v611 = vshrl.u32 %v458, 16
      %v613 = vrot.slane %v611, 7
      %v614 = vrot.slane %v613, 4
      %v616 = vshrl.u32 %v459, 16
      %v618 = vrot.slane %v616, 7
      %v619 = vshll.u32 %v459, 16
      %v621 = vor.u32 %v618, %v619
      %v622 = vsel %vm499, %v614, %v621
      %v623 = vrot.slane %v618, 4
      %v625 = vshrl.u32 %v460, 16
      %v627 = vrot.slane %v625, 7
      %v628 = vshll.u32 %v460, 16
      %v630 = vor.u32 %v627, %v628
      %v631 = vsel %vm499, %v623, %v630
      %v633 = vshrl.u32 %v461, 16
      %v635 = vrot.slane %v633, 7
      %v636 = vrot.slane %v635, 4
      %v638 = vshrl.u32 %v462, 16
      %v640 = vrot.slane %v638, 7
      %v641 = vshll.u32 %v462, 16
      %v643 = vor.u32 %v640, %v641
      %v644 = vsel %vm499, %v636, %v643
      %v645 = vrot.slane %v640, 4
      %v647 = vshrl.u32 %v463, 16
      %v649 = vrot.slane %v647, 7
      %v650 = vshll.u32 %v463, 16
      %v652 = vor.u32 %v649, %v650
      %v653 = vsel %vm499, %v645, %v652
      %v655 = vshrl.u32 %v464, 16
      %v657 = vrot.slane %v655, 7
      %v658 = vrot.slane %v657, 4
      %v660 = vshrl.u32 %v465, 16
      %v662 = vrot.slane %v660, 7
      %v663 = vshll.u32 %v465, 16
      %v665 = vor.u32 %v662, %v663
      %v666 = vsel %vm499, %v658, %v665
      %v667 = vrot.slane %v662, 4
      %v669 = vshrl.u32 %v466, 16
      %v671 = vrot.slane %v669, 7
      %v672 = vshll.u32 %v466, 16
      %v674 = vor.u32 %v671, %v672
      %v675 = vsel %vm499, %v667, %v674
      %v677 = vshrl.u32 %v467, 16
      %v679 = vrot.slane %v677, 7
      %v680 = vrot.slane %v679, 4
      %v682 = vshrl.u32 %v468, 16
      %v684 = vrot.slane %v682, 7
      %v685 = vshll.u32 %v468, 16
      %v687 = vor.u32 %v684, %v685
      %v688 = vsel %vm499, %v680, %v687
      %v689 = vrot.slane %v684, 4
      %v691 = vshrl.u32 %v469, 16
      %v693 = vrot.slane %v691, 7
      %v694 = vshll.u32 %v469, 16
      %v696 = vor.u32 %v693, %v694
      %v697 = vsel %vm499, %v689, %v696
      %v699 = vshrl.u32 %v470, 16
      %v701 = vrot.slane %v699, 7
      %v702 = vrot.slane %v701, 4
      %v704 = vshrl.u32 %v471, 16
      %v706 = vrot.slane %v704, 7
      %v707 = vshll.u32 %v471, 16
      %v709 = vor.u32 %v706, %v707
      %v710 = vsel %vm499, %v702, %v709
      %v711 = vrot.slane %v706, 4
      %v713 = vshrl.u32 %v472, 16
      %v715 = vrot.slane %v713, 7
      %v716 = vshll.u32 %v472, 16
      %v718 = vor.u32 %v715, %v716
      %v719 = vsel %vm499, %v711, %v718
      %v721 = vshrl.u32 %v473, 16
      %v723 = vrot.slane %v721, 7
      %v724 = vrot.slane %v723, 4
      %v726 = vshrl.u32 %v474, 16
      %v728 = vrot.slane %v726, 7
      %v729 = vshll.u32 %v474, 16
      %v731 = vor.u32 %v728, %v729
      %v732 = vsel %vm499, %v724, %v731
      %v733 = vrot.slane %v728, 4
      %v735 = vshrl.u32 %v475, 16
      %v737 = vrot.slane %v735, 7
      %v738 = vshll.u32 %v475, 16
      %v740 = vor.u32 %v737, %v738
      %v741 = vsel %vm499, %v733, %v740
      %v743 = vshrl.u32 %v476, 16
      %v745 = vrot.slane %v743, 7
      %v746 = vrot.slane %v745, 4
      %v748 = vshrl.u32 %v477, 16
      %v750 = vrot.slane %v748, 7
      %v751 = vshll.u32 %v477, 16
      %v753 = vor.u32 %v750, %v751
      %v754 = vsel %vm499, %v746, %v753
      %v755 = vrot.slane %v750, 4
      %v757 = vshrl.u32 %v478, 16
      %v759 = vrot.slane %v757, 7
      %v760 = vshll.u32 %v478, 16
      %v762 = vor.u32 %v759, %v760
      %v763 = vsel %vm499, %v755, %v762
      %v765 = vshrl.u32 %v479, 16
      %v767 = vrot.slane %v765, 7
      %v768 = vrot.slane %v767, 4
      %v770 = vshrl.u32 %v480, 16
      %v772 = vrot.slane %v770, 7
      %v773 = vshll.u32 %v480, 16
      %v775 = vor.u32 %v772, %v773
      %v776 = vsel %vm499, %v768, %v775
      %v777 = vrot.slane %v772, 4
      %v779 = vshrl.u32 %v481, 16
      %v781 = vrot.slane %v779, 7
      %v782 = vshll.u32 %v481, 16
      %v784 = vor.u32 %v781, %v782
      %v785 = vsel %vm499, %v777, %v784
      %v787 = vshrl.u32 %v482, 16
      %v789 = vrot.slane %v787, 7
      %v790 = vrot.slane %v789, 4
      %v792 = vshrl.u32 %v483, 16
      %v794 = vrot.slane %v792, 7
      %v795 = vshll.u32 %v483, 16
      %v797 = vor.u32 %v794, %v795
      %v798 = vsel %vm499, %v790, %v797
      %v799 = vrot.slane %v794, 4
      %v801 = vshrl.u32 %v484, 16
      %v803 = vrot.slane %v801, 7
      %v804 = vshll.u32 %v484, 16
      %v806 = vor.u32 %v803, %v804
      %v807 = vsel %vm499, %v799, %v806
      %v809 = vshrl.u32 %v485, 16
      %v811 = vrot.slane %v809, 7
      %v812 = vrot.slane %v811, 4
      %v814 = vshrl.u32 %v486, 16
      %v816 = vrot.slane %v814, 7
      %v817 = vshll.u32 %v486, 16
      %v819 = vor.u32 %v816, %v817
      %v820 = vsel %vm499, %v812, %v819
      %v821 = vrot.slane %v816, 4
      %v823 = vshrl.u32 %v487, 16
      %v825 = vrot.slane %v823, 7
      %v826 = vshll.u32 %v487, 16
      %v828 = vor.u32 %v825, %v826
      %v829 = vsel %vm499, %v821, %v828
      %v831 = vshrl.u32 %v488, 16
      %v833 = vrot.slane %v831, 7
      %v834 = vrot.slane %v833, 4
      %v836 = vshrl.u32 %v489, 16
      %v838 = vrot.slane %v836, 7
      %v839 = vshll.u32 %v489, 16
      %v841 = vor.u32 %v838, %v839
      %v842 = vsel %vm499, %v834, %v841
      %v843 = vrot.slane %v838, 4
      %v845 = vshrl.u32 %v490, 16
      %v847 = vrot.slane %v845, 7
      %v848 = vshll.u32 %v490, 16
      %v850 = vor.u32 %v847, %v848
      %v851 = vsel %vm499, %v843, %v850
      %v853 = vshrl.u32 %v491, 16
      %v855 = vrot.slane %v853, 7
      %v856 = vrot.slane %v855, 4
      %v858 = vshrl.u32 %v492, 16
      %v860 = vrot.slane %v858, 7
      %v861 = vshll.u32 %v492, 16
      %v863 = vor.u32 %v860, %v861
      %v864 = vsel %vm499, %v856, %v863
      %v865 = vrot.slane %v860, 4
      %v867 = vshrl.u32 %v493, 16
      %v869 = vrot.slane %v867, 7
      %v870 = vshll.u32 %v493, 16
      %v872 = vor.u32 %v869, %v870
      %v873 = vsel %vm499, %v865, %v872
      %v875 = vshrl.u32 %v494, 16
      %v877 = vrot.slane %v875, 7
      %v878 = vrot.slane %v877, 4
      %v880 = vshrl.u32 %v495, 16
      %v882 = vrot.slane %v880, 7
      %v883 = vshll.u32 %v495, 16
      %v885 = vor.u32 %v882, %v883
      %v886 = vsel %vm499, %v878, %v885
      %v887 = vrot.slane %v882, 4
      %v889 = vshrl.u32 %v496, 16
      %v891 = vrot.slane %v889, 7
      %v892 = vshll.u32 %v496, 16
      %v894 = vor.u32 %v891, %v892
      %v895 = vsel %vm499, %v887, %v894
      %v896 = vunpack.c.l.b16 %v512
      %v897 = vunpack.c.l.b16 %v521
      %v898 = vunpack.c.l.b16 %v534
      %v899 = vunpack.c.l.b16 %v543
      %v900 = vunpack.c.l.b16 %v556
      %v901 = vunpack.c.l.b16 %v565
      %v902 = vunpack.c.l.b16 %v578
      %v903 = vunpack.c.l.b16 %v587
      %v904 = vunpack.c.l.b16 %v600
      %v905 = vunpack.c.l.b16 %v609
      %v906 = vunpack.c.l.b16 %v622
      %v907 = vunpack.c.l.b16 %v631
      %v908 = vunpack.c.l.b16 %v644
      %v909 = vunpack.c.l.b16 %v653
      %v910 = vunpack.c.l.b16 %v666
      %v911 = vunpack.c.l.b16 %v675
      %v912 = vunpack.c.l.b16 %v688
      %v913 = vunpack.c.l.b16 %v697
      %v914 = vunpack.c.l.b16 %v710
      %v915 = vunpack.c.l.b16 %v719
      %v916 = vunpack.c.l.b16 %v732
      %v917 = vunpack.c.l.b16 %v741
      %v918 = vunpack.c.l.b16 %v754
      %v919 = vunpack.c.l.b16 %v763
      %v920 = vunpack.c.l.b16 %v776
      %v921 = vunpack.c.l.b16 %v785
      %v922 = vunpack.c.l.b16 %v798
      %v923 = vunpack.c.l.b16 %v807
      %v924 = vunpack.c.l.b16 %v820
      %v925 = vunpack.c.l.b16 %v829
      %v926 = vunpack.c.l.b16 %v842
      %v927 = vunpack.c.l.b16 %v851
      %v928 = vpack.c.b16 %v897, %v896
      %v929 = vpack.c.b16 %v899, %v898
      %v930 = vpack.c.b16 %v901, %v900
      %v931 = vpack.c.b16 %v903, %v902
      %v932 = vpack.c.b16 %v905, %v904
      %v933 = vpack.c.b16 %v907, %v906
      %v934 = vpack.c.b16 %v909, %v908
      %v935 = vpack.c.b16 %v911, %v910
      %v936 = vpack.c.b16 %v913, %v912
      %v937 = vpack.c.b16 %v915, %v914
      %v938 = vpack.c.b16 %v917, %v916
      %v939 = vpack.c.b16 %v919, %v918
      %v940 = vpack.c.b16 %v921, %v920
      %v941 = vpack.c.b16 %v923, %v922
      %v942 = vpack.c.b16 %v925, %v924
      %v943 = vpack.c.b16 %v927, %v926
      %v960 = vunpack.c.l.b16 %v864
      %v961 = vunpack.c.l.b16 %v873
      %v962 = vpack.c.b16 %v961, %v960
      %v964 = vunpack.c.l.b16 %v886
      %v965 = vunpack.c.l.b16 %v895
      %v966 = vpack.c.b16 %v965, %v964
      %v968 = vld [vmem:[%s1] sm:$0xf]
      %v969 = vld [vmem:[%s1 + $0x4] sm:$0xf]
      %v970 = vld [vmem:[%s1 + $0x8] sm:$0xf]
      %v971 = vld [vmem:[%s1 + $0xc] sm:$0xf]
      %v972 = vld [vmem:[%s1 + $0x10] sm:$0xf]
      %v973 = vld [vmem:[%s1 + $0x14] sm:$0xf]
      %v974 = vld [vmem:[%s1 + $0x18] sm:$0xf]
      %v975 = vld [vmem:[%s1 + $0x1c] sm:$0xf]
      %v976 = vld [vmem:[%s1 + $0x20] sm:$0xf]
      %v977 = vld [vmem:[%s1 + $0x24] sm:$0xf]
      %v978 = vld [vmem:[%s1 + $0x28] sm:$0xf]
      %v979 = vld [vmem:[%s1 + $0x2c] sm:$0xf]
      %v980 = vld [vmem:[%s1 + $0x30] sm:$0xf]
      %v981 = vld [vmem:[%s1 + $0x34] sm:$0xf]
      %v982 = vld [vmem:[%s1 + $0x38] sm:$0xf]
      %v983 = vld [vmem:[%s1 + $0x3c] sm:$0xf]
      %v984 = vld [vmem:[%s1 + $0x40] sm:$0xf]
      %v985 = vld [vmem:[%s1 + $0x44] sm:$0xf]
      %v986 = vld [vmem:[%s1 + $0x48] sm:$0xf]
      %v987 = vld [vmem:[%s1 + $0x4c] sm:$0xf]
      %v988 = vld [vmem:[%s1 + $0x50] sm:$0xf]
      %v989 = vld [vmem:[%s1 + $0x54] sm:$0xf]
      %v990 = vld [vmem:[%s1 + $0x58] sm:$0xf]
      %v991 = vld [vmem:[%s1 + $0x5c] sm:$0xf]
      %v992 = vld [vmem:[%s1 + $0x60] sm:$0xf]
      %v993 = vld [vmem:[%s1 + $0x64] sm:$0xf]
      %v994 = vld [vmem:[%s1 + $0x68] sm:$0xf]
      %v995 = vld [vmem:[%s1 + $0x6c] sm:$0xf]
      %v996 = vld [vmem:[%s1 + $0x70] sm:$0xf]
      %v997 = vld [vmem:[%s1 + $0x74] sm:$0xf]
      %v998 = vld [vmem:[%s1 + $0x78] sm:$0xf]
      %v999 = vld [vmem:[%s1 + $0x7c] sm:$0xf]
      %v1000 = vld [vmem:[%s1 + $0x80] sm:$0xf]
      %v1001 = vld [vmem:[%s1 + $0x84] sm:$0xf]
      %v1002 = vld [vmem:[%s1 + $0x88] sm:$0xf]
      %v1003 = vld [vmem:[%s1 + $0x8c] sm:$0xf]
      %v1004 = vld [vmem:[%s1 + $0x90] sm:$0xf]
      %v1005 = vld [vmem:[%s1 + $0x94] sm:$0xf]
      %v1006 = vld [vmem:[%s1 + $0x98] sm:$0xf]
      %v1007 = vld [vmem:[%s1 + $0x9c] sm:$0xf]
      %v1008 = vld [vmem:[%s1 + $0xa0] sm:$0xf]
      %v1009 = vld [vmem:[%s1 + $0xa4] sm:$0xf]
      %v1010 = vld [vmem:[%s1 + $0xa8] sm:$0xf]
      %v1011 = vld [vmem:[%s1 + $0xac] sm:$0xf]
      %v1012 = vld [vmem:[%s1 + $0xb0] sm:$0xf]
      %v1013 = vld [vmem:[%s1 + $0xb4] sm:$0xf]
      %v1014 = vld [vmem:[%s1 + $0xb8] sm:$0xf]
      %v1015 = vld [vmem:[%s1 + $0xbc] sm:$0xf]
      %v1064 = vunpack.c.l.b16 %v968
      %v1065 = vunpack.c.l.b16 %v969
      %v1066 = vunpack.c.l.b16 %v970
      %v1067 = vunpack.c.l.b16 %v971
      %v1068 = vunpack.c.l.b16 %v972
      %v1069 = vunpack.c.l.b16 %v973
      %v1070 = vunpack.c.l.b16 %v974
      %v1071 = vunpack.c.l.b16 %v975
      %v1072 = vunpack.c.l.b16 %v976
      %v1073 = vunpack.c.l.b16 %v977
      %v1074 = vunpack.c.l.b16 %v978
      %v1075 = vunpack.c.l.b16 %v979
      %v1076 = vunpack.c.l.b16 %v980
      %v1077 = vunpack.c.l.b16 %v981
      %v1078 = vunpack.c.l.b16 %v982
      %v1079 = vunpack.c.l.b16 %v983
      %v1080 = vunpack.c.l.b16 %v984
      %v1081 = vunpack.c.l.b16 %v985
      %v1082 = vunpack.c.l.b16 %v986
      %v1083 = vunpack.c.l.b16 %v987
      %v1084 = vunpack.c.l.b16 %v988
      %v1085 = vunpack.c.l.b16 %v989
      %v1086 = vunpack.c.l.b16 %v990
      %v1087 = vunpack.c.l.b16 %v991
      %v1088 = vunpack.c.l.b16 %v992
      %v1089 = vunpack.c.l.b16 %v993
      %v1090 = vunpack.c.l.b16 %v994
      %v1091 = vunpack.c.l.b16 %v995
      %v1092 = vunpack.c.l.b16 %v996
      %v1093 = vunpack.c.l.b16 %v997
      %v1094 = vunpack.c.l.b16 %v998
      %v1095 = vunpack.c.l.b16 %v999
      %v1096 = vunpack.c.l.b16 %v1000
      %v1097 = vunpack.c.l.b16 %v1001
      %v1098 = vunpack.c.l.b16 %v1002
      %v1099 = vunpack.c.l.b16 %v1003
      %v1100 = vunpack.c.l.b16 %v1004
      %v1101 = vunpack.c.l.b16 %v1005
      %v1102 = vunpack.c.l.b16 %v1006
      %v1103 = vunpack.c.l.b16 %v1007
      %v1104 = vunpack.c.l.b16 %v1008
      %v1105 = vunpack.c.l.b16 %v1009
      %v1106 = vunpack.c.l.b16 %v1010
      %v1107 = vunpack.c.l.b16 %v1011
      %v1108 = vunpack.c.l.b16 %v1012
      %v1109 = vunpack.c.l.b16 %v1013
      %v1110 = vunpack.c.l.b16 %v1014
      %v1111 = vunpack.c.l.b16 %v1015
      %v1112 = vpack.c.b16 %v1065, %v1064
      %v1113 = vpack.c.b16 %v1067, %v1066
      %v1114 = vpack.c.b16 %v1069, %v1068
      %v1115 = vpack.c.b16 %v1071, %v1070
      %v1116 = vpack.c.b16 %v1073, %v1072
      %v1117 = vpack.c.b16 %v1075, %v1074
      %v1118 = vpack.c.b16 %v1077, %v1076
      %v1119 = vpack.c.b16 %v1079, %v1078
      %v1120 = vpack.c.b16 %v1081, %v1080
      %v1121 = vpack.c.b16 %v1083, %v1082
      %v1122 = vpack.c.b16 %v1085, %v1084
      %v1123 = vpack.c.b16 %v1087, %v1086
      %v1124 = vpack.c.b16 %v1089, %v1088
      %v1125 = vpack.c.b16 %v1091, %v1090
      %v1126 = vpack.c.b16 %v1093, %v1092
      %v1127 = vpack.c.b16 %v1095, %v1094
      %v1128 = vpack.c.b16 %v1097, %v1096
      %v1129 = vpack.c.b16 %v1099, %v1098
      %v1130 = vpack.c.b16 %v1101, %v1100
      %v1131 = vpack.c.b16 %v1103, %v1102
      %v1132 = vpack.c.b16 %v1105, %v1104
      %v1133 = vpack.c.b16 %v1107, %v1106
      %v1134 = vpack.c.b16 %v1109, %v1108
      %v1135 = vpack.c.b16 %v1111, %v1110
      %1160 = vmatpush.bf16.msra.mxu0 %v1119
      %1161 = vmatpush.bf16.msra.mxu0 %v1118
      %1162 = vmatpush.bf16.msra.mxu0 %v1117
      %1163 = vmatpush.bf16.msra.mxu0 %v1116
      %1164 = vmatpush.bf16.msra.mxu0 %v1115
      %1165 = vmatpush.bf16.msra.mxu0 %v1114
      %1166 = vmatpush.bf16.msra.mxu0 %v1113
      %1167 = vmatpush.bf16.msra.mxu0 %v1112
      %1168 = vmatmul.bf16.gmra.mxu0 %v928
      %v1169 = vpop.f32.mrf.mxu0
      %v1170 = vadd.f32 0.0, %v1169
      %v1171 = vpop.f32.mrf.mxu0
      %v1172 = vadd.f32 0.0, %v1171
      %1173 = vmatmul.bf16.gmra.mxu0 %v929
      %v1174 = vpop.f32.mrf.mxu0
      %v1175 = vadd.f32 0.0, %v1174
      %v1176 = vpop.f32.mrf.mxu0
      %v1177 = vadd.f32 0.0, %v1176
      %1178 = vmatmul.bf16.gmra.mxu0 %v930
      %v1179 = vpop.f32.mrf.mxu0
      %v1180 = vadd.f32 0.0, %v1179
      %v1181 = vpop.f32.mrf.mxu0
      %v1182 = vadd.f32 0.0, %v1181
      %1183 = vmatmul.bf16.gmra.mxu0 %v931
      %v1184 = vpop.f32.mrf.mxu0
      %v1185 = vadd.f32 0.0, %v1184
      %v1186 = vpop.f32.mrf.mxu0
      %v1187 = vadd.f32 0.0, %v1186
      %1188 = vmatmul.bf16.gmra.mxu0 %v932
      %v1189 = vpop.f32.mrf.mxu0
      %v1190 = vadd.f32 0.0, %v1189
      %v1191 = vpop.f32.mrf.mxu0
      %v1192 = vadd.f32 0.0, %v1191
      %1193 = vmatmul.bf16.gmra.mxu0 %v933
      %v1194 = vpop.f32.mrf.mxu0
      %v1195 = vadd.f32 0.0, %v1194
      %v1196 = vpop.f32.mrf.mxu0
      %v1197 = vadd.f32 0.0, %v1196
      %1198 = vmatmul.bf16.gmra.mxu0 %v934
      %v1199 = vpop.f32.mrf.mxu0
      %v1200 = vadd.f32 0.0, %v1199
      %v1201 = vpop.f32.mrf.mxu0
      %v1202 = vadd.f32 0.0, %v1201
      %1203 = vmatmul.bf16.gmra.mxu0 %v935
      %v1204 = vpop.f32.mrf.mxu0
      %v1205 = vadd.f32 0.0, %v1204
      %v1206 = vpop.f32.mrf.mxu0
      %v1207 = vadd.f32 0.0, %v1206
      %1208 = vmatmul.bf16.gmra.mxu0 %v936
      %v1209 = vpop.f32.mrf.mxu0
      %v1210 = vadd.f32 0.0, %v1209
      %v1211 = vpop.f32.mrf.mxu0
      %v1212 = vadd.f32 0.0, %v1211
      %1213 = vmatmul.bf16.gmra.mxu0 %v937
      %v1214 = vpop.f32.mrf.mxu0
      %v1215 = vadd.f32 0.0, %v1214
      %v1216 = vpop.f32.mrf.mxu0
      %v1217 = vadd.f32 0.0, %v1216
      %1218 = vmatmul.bf16.gmra.mxu0 %v938
      %v1219 = vpop.f32.mrf.mxu0
      %v1220 = vadd.f32 0.0, %v1219
      %v1221 = vpop.f32.mrf.mxu0
      %v1222 = vadd.f32 0.0, %v1221
      %1223 = vmatmul.bf16.gmra.mxu0 %v939
      %v1224 = vpop.f32.mrf.mxu0
      %v1225 = vadd.f32 0.0, %v1224
      %v1226 = vpop.f32.mrf.mxu0
      %v1227 = vadd.f32 0.0, %v1226
      %1228 = vmatmul.bf16.gmra.mxu0 %v940
      %v1229 = vpop.f32.mrf.mxu0
      %v1230 = vadd.f32 0.0, %v1229
      %v1231 = vpop.f32.mrf.mxu0
      %v1232 = vadd.f32 0.0, %v1231
      %1233 = vmatmul.bf16.gmra.mxu0 %v941
      %v1234 = vpop.f32.mrf.mxu0
      %v1235 = vadd.f32 0.0, %v1234
      %v1236 = vpop.f32.mrf.mxu0
      %v1237 = vadd.f32 0.0, %v1236
      %1238 = vmatmul.bf16.gmra.mxu0 %v942
      %v1239 = vpop.f32.mrf.mxu0
      %v1240 = vadd.f32 0.0, %v1239
      %v1241 = vpop.f32.mrf.mxu0
      %v1242 = vadd.f32 0.0, %v1241
      %1243 = vmatmul.bf16.gmra.mxu0 %v943
      %v1244 = vpop.f32.mrf.mxu0
      %v1245 = vadd.f32 0.0, %v1244
      %v1246 = vpop.f32.mrf.mxu0
      %v1247 = vadd.f32 0.0, %v1246
      %1248 = vdwg.mxu0
      %1249 = vmatpush.bf16.msra.mxu0 %v1127
      %1250 = vmatpush.bf16.msra.mxu0 %v1126
      %1251 = vmatpush.bf16.msra.mxu0 %v1125
      %1252 = vmatpush.bf16.msra.mxu0 %v1124
      %1253 = vmatpush.bf16.msra.mxu0 %v1123
      %1254 = vmatpush.bf16.msra.mxu0 %v1122
      %1255 = vmatpush.bf16.msra.mxu0 %v1121
      %1256 = vmatpush.bf16.msra.mxu0 %v1120
      %1257 = vmatmul.bf16.gmra.mxu0 %v929
      %v1258 = vpop.f32.mrf.mxu0
      %v1259 = vadd.f32 %v1170, %v1258
      %v1260 = vpop.f32.mrf.mxu0
      %v1261 = vadd.f32 %v1172, %v1260
      %1262 = vmatmul.bf16.gmra.mxu0 %v930
      %v1263 = vpop.f32.mrf.mxu0
      %v1264 = vadd.f32 %v1175, %v1263
      %v1265 = vpop.f32.mrf.mxu0
      %v1266 = vadd.f32 %v1177, %v1265
      %1267 = vmatmul.bf16.gmra.mxu0 %v931
      %v1268 = vpop.f32.mrf.mxu0
      %v1269 = vadd.f32 %v1180, %v1268
      %v1270 = vpop.f32.mrf.mxu0
      %v1271 = vadd.f32 %v1182, %v1270
      %1272 = vmatmul.bf16.gmra.mxu0 %v932
      %v1273 = vpop.f32.mrf.mxu0
      %v1274 = vadd.f32 %v1185, %v1273
      %v1275 = vpop.f32.mrf.mxu0
      %v1276 = vadd.f32 %v1187, %v1275
      %1277 = vmatmul.bf16.gmra.mxu0 %v933
      %v1278 = vpop.f32.mrf.mxu0
      %v1279 = vadd.f32 %v1190, %v1278
      %v1280 = vpop.f32.mrf.mxu0
      %v1281 = vadd.f32 %v1192, %v1280
      %1282 = vmatmul.bf16.gmra.mxu0 %v934
      %v1283 = vpop.f32.mrf.mxu0
      %v1284 = vadd.f32 %v1195, %v1283
      %v1285 = vpop.f32.mrf.mxu0
      %v1286 = vadd.f32 %v1197, %v1285
      %1287 = vmatmul.bf16.gmra.mxu0 %v935
      %v1288 = vpop.f32.mrf.mxu0
      %v1289 = vadd.f32 %v1200, %v1288
      %v1290 = vpop.f32.mrf.mxu0
      %v1291 = vadd.f32 %v1202, %v1290
      %1292 = vmatmul.bf16.gmra.mxu0 %v936
      %v1293 = vpop.f32.mrf.mxu0
      %v1294 = vadd.f32 %v1205, %v1293
      %v1295 = vpop.f32.mrf.mxu0
      %v1296 = vadd.f32 %v1207, %v1295
      %1297 = vmatmul.bf16.gmra.mxu0 %v937
      %v1298 = vpop.f32.mrf.mxu0
      %v1299 = vadd.f32 %v1210, %v1298
      %v1300 = vpop.f32.mrf.mxu0
      %v1301 = vadd.f32 %v1212, %v1300
      %1302 = vmatmul.bf16.gmra.mxu0 %v938
      %v1303 = vpop.f32.mrf.mxu0
      %v1304 = vadd.f32 %v1215, %v1303
      %v1305 = vpop.f32.mrf.mxu0
      %v1306 = vadd.f32 %v1217, %v1305
      %1307 = vmatmul.bf16.gmra.mxu0 %v939
      %v1308 = vpop.f32.mrf.mxu0
      %v1309 = vadd.f32 %v1220, %v1308
      %v1310 = vpop.f32.mrf.mxu0
      %v1311 = vadd.f32 %v1222, %v1310
      %1312 = vmatmul.bf16.gmra.mxu0 %v940
      %v1313 = vpop.f32.mrf.mxu0
      %v1314 = vadd.f32 %v1225, %v1313
      %v1315 = vpop.f32.mrf.mxu0
      %v1316 = vadd.f32 %v1227, %v1315
      %1317 = vmatmul.bf16.gmra.mxu0 %v941
      %v1318 = vpop.f32.mrf.mxu0
      %v1319 = vadd.f32 %v1230, %v1318
      %v1320 = vpop.f32.mrf.mxu0
      %v1321 = vadd.f32 %v1232, %v1320
      %1322 = vmatmul.bf16.gmra.mxu0 %v942
      %v1323 = vpop.f32.mrf.mxu0
      %v1324 = vadd.f32 %v1235, %v1323
      %v1325 = vpop.f32.mrf.mxu0
      %v1326 = vadd.f32 %v1237, %v1325
      %1327 = vmatmul.bf16.gmra.mxu0 %v943
      %v1328 = vpop.f32.mrf.mxu0
      %v1329 = vadd.f32 %v1240, %v1328
      %v1330 = vpop.f32.mrf.mxu0
      %v1331 = vadd.f32 %v1242, %v1330
      %1332 = vmatmul.bf16.gmra.mxu0 %v962
      %v1333 = vpop.f32.mrf.mxu0
      %v1334 = vadd.f32 %v1245, %v1333
      %v1335 = vpop.f32.mrf.mxu0
      %v1336 = vadd.f32 %v1247, %v1335
      %1337 = vdwg.mxu0
      %1338 = vmatpush.bf16.msra.mxu0 %v1135
      %1339 = vmatpush.bf16.msra.mxu0 %v1134
      %1340 = vmatpush.bf16.msra.mxu0 %v1133
      %1341 = vmatpush.bf16.msra.mxu0 %v1132
      %1342 = vmatpush.bf16.msra.mxu0 %v1131
      %1343 = vmatpush.bf16.msra.mxu0 %v1130
      %1344 = vmatpush.bf16.msra.mxu0 %v1129
      %1345 = vmatpush.bf16.msra.mxu0 %v1128
      %1346 = vmatmul.bf16.gmra.mxu0 %v930
      %v1347 = vpop.f32.mrf.mxu0
      %v1348 = vadd.f32 %v1259, %v1347
      %v1349 = vpop.f32.mrf.mxu0
      %v1350 = vadd.f32 %v1261, %v1349
      %1351 = vmatmul.bf16.gmra.mxu0 %v931
      %v1352 = vpop.f32.mrf.mxu0
      %v1353 = vadd.f32 %v1264, %v1352
      %v1354 = vpop.f32.mrf.mxu0
      %v1355 = vadd.f32 %v1266, %v1354
      %1356 = vmatmul.bf16.gmra.mxu0 %v932
      %v1357 = vpop.f32.mrf.mxu0
      %v1358 = vadd.f32 %v1269, %v1357
      %v1359 = vpop.f32.mrf.mxu0
      %v1360 = vadd.f32 %v1271, %v1359
      %1361 = vmatmul.bf16.gmra.mxu0 %v933
      %v1362 = vpop.f32.mrf.mxu0
      %v1363 = vadd.f32 %v1274, %v1362
      %v1364 = vpop.f32.mrf.mxu0
      %v1365 = vadd.f32 %v1276, %v1364
      %1366 = vmatmul.bf16.gmra.mxu0 %v934
      %v1367 = vpop.f32.mrf.mxu0
      %v1368 = vadd.f32 %v1279, %v1367
      %v1369 = vpop.f32.mrf.mxu0
      %v1370 = vadd.f32 %v1281, %v1369
      %1371 = vmatmul.bf16.gmra.mxu0 %v935
      %v1372 = vpop.f32.mrf.mxu0
      %v1373 = vadd.f32 %v1284, %v1372
      %v1374 = vpop.f32.mrf.mxu0
      %v1375 = vadd.f32 %v1286, %v1374
      %1376 = vmatmul.bf16.gmra.mxu0 %v936
      %v1377 = vpop.f32.mrf.mxu0
      %v1378 = vadd.f32 %v1289, %v1377
      %v1379 = vpop.f32.mrf.mxu0
      %v1380 = vadd.f32 %v1291, %v1379
      %1381 = vmatmul.bf16.gmra.mxu0 %v937
      %v1382 = vpop.f32.mrf.mxu0
      %v1383 = vadd.f32 %v1294, %v1382
      %v1384 = vpop.f32.mrf.mxu0
      %v1385 = vadd.f32 %v1296, %v1384
      %1386 = vmatmul.bf16.gmra.mxu0 %v938
      %v1387 = vpop.f32.mrf.mxu0
      %v1388 = vadd.f32 %v1299, %v1387
      %v1389 = vpop.f32.mrf.mxu0
      %v1390 = vadd.f32 %v1301, %v1389
      %1391 = vmatmul.bf16.gmra.mxu0 %v939
      %v1392 = vpop.f32.mrf.mxu0
      %v1393 = vadd.f32 %v1304, %v1392
      %v1394 = vpop.f32.mrf.mxu0
      %v1395 = vadd.f32 %v1306, %v1394
      %1396 = vmatmul.bf16.gmra.mxu0 %v940
      %v1397 = vpop.f32.mrf.mxu0
      %v1398 = vadd.f32 %v1309, %v1397
      %v1399 = vpop.f32.mrf.mxu0
      %v1400 = vadd.f32 %v1311, %v1399
      %1401 = vmatmul.bf16.gmra.mxu0 %v941
      %v1402 = vpop.f32.mrf.mxu0
      %v1403 = vadd.f32 %v1314, %v1402
      %v1404 = vpop.f32.mrf.mxu0
      %v1405 = vadd.f32 %v1316, %v1404
      %1406 = vmatmul.bf16.gmra.mxu0 %v942
      %v1407 = vpop.f32.mrf.mxu0
      %v1408 = vadd.f32 %v1319, %v1407
      %v1409 = vpop.f32.mrf.mxu0
      %v1410 = vadd.f32 %v1321, %v1409
      %1411 = vmatmul.bf16.gmra.mxu0 %v943
      %v1412 = vpop.f32.mrf.mxu0
      %v1413 = vadd.f32 %v1324, %v1412
      %v1414 = vpop.f32.mrf.mxu0
      %v1415 = vadd.f32 %v1326, %v1414
      %1416 = vmatmul.bf16.gmra.mxu0 %v962
      %v1417 = vpop.f32.mrf.mxu0
      %v1418 = vadd.f32 %v1329, %v1417
      %v1419 = vpop.f32.mrf.mxu0
      %v1420 = vadd.f32 %v1331, %v1419
      %1421 = vmatmul.bf16.gmra.mxu0 %v966
      %v1422 = vpop.f32.mrf.mxu0
      %v1423 = vadd.f32 %v1334, %v1422
      %v1424 = vpop.f32.mrf.mxu0
      %v1425 = vadd.f32 %v1336, %v1424
      %1426 = vdwg.mxu0
      %v1427 = vadd.f32 %v441, %v1348
      %v1428 = vadd.f32 %v441, %v1350
      %v1429 = vadd.f32 %v441, %v1353
      %v1430 = vadd.f32 %v441, %v1355
      %v1431 = vadd.f32 %v441, %v1358
      %v1432 = vadd.f32 %v441, %v1360
      %v1433 = vadd.f32 %v441, %v1363
      %v1434 = vadd.f32 %v441, %v1365
      %v1435 = vadd.f32 %v441, %v1368
      %v1436 = vadd.f32 %v441, %v1370
      %v1437 = vadd.f32 %v441, %v1373
      %v1438 = vadd.f32 %v441, %v1375
      %v1439 = vadd.f32 %v441, %v1378
      %v1440 = vadd.f32 %v441, %v1380
      %v1441 = vadd.f32 %v441, %v1383
      %v1442 = vadd.f32 %v441, %v1385
      %v1443 = vadd.f32 %v441, %v1388
      %v1444 = vadd.f32 %v441, %v1390
      %v1445 = vadd.f32 %v441, %v1393
      %v1446 = vadd.f32 %v441, %v1395
      %v1447 = vadd.f32 %v441, %v1398
      %v1448 = vadd.f32 %v441, %v1400
      %v1449 = vadd.f32 %v441, %v1403
      %v1450 = vadd.f32 %v441, %v1405
      %v1451 = vadd.f32 %v441, %v1408
      %v1452 = vadd.f32 %v441, %v1410
      %v1453 = vadd.f32 %v441, %v1413
      %v1454 = vadd.f32 %v441, %v1415
      %v1455 = vadd.f32 %v441, %v1418
      %v1456 = vadd.f32 %v441, %v1420
      %v1457 = vadd.f32 %v441, %v1423
      %v1458 = vadd.f32 %v441, %v1425
      %v1491 = vunpack.c.l.b16 %v444
      %v1492 = vunpack.c.l.b16 %v445
      %v1493 = vunpack.c.l.b16 %v447
      %v1494 = vunpack.c.l.b16 %v448
      %v1495 = vunpack.c.l.b16 %v450
      %v1496 = vunpack.c.l.b16 %v451
      %v1497 = vunpack.c.l.b16 %v453
      %v1498 = vunpack.c.l.b16 %v454
      %v1499 = vunpack.c.l.b16 %v456
      %v1500 = vunpack.c.l.b16 %v457
      %v1501 = vunpack.c.l.b16 %v459
      %v1502 = vunpack.c.l.b16 %v460
      %v1503 = vunpack.c.l.b16 %v462
      %v1504 = vunpack.c.l.b16 %v463
      %v1505 = vunpack.c.l.b16 %v465
      %v1506 = vunpack.c.l.b16 %v466
      %v1507 = vunpack.c.l.b16 %v468
      %v1508 = vunpack.c.l.b16 %v469
      %v1509 = vunpack.c.l.b16 %v471
      %v1510 = vunpack.c.l.b16 %v472
      %v1511 = vunpack.c.l.b16 %v474
      %v1512 = vunpack.c.l.b16 %v475
      %v1513 = vunpack.c.l.b16 %v477
      %v1514 = vunpack.c.l.b16 %v478
      %v1515 = vunpack.c.l.b16 %v480
      %v1516 = vunpack.c.l.b16 %v481
      %v1517 = vunpack.c.l.b16 %v483
      %v1518 = vunpack.c.l.b16 %v484
      %v1519 = vunpack.c.l.b16 %v486
      %v1520 = vunpack.c.l.b16 %v487
      %v1521 = vunpack.c.l.b16 %v489
      %v1522 = vunpack.c.l.b16 %v490
      %v1523 = vpack.c.b16 %v1492, %v1491
      %v1524 = vpack.c.b16 %v1494, %v1493
      %v1525 = vpack.c.b16 %v1496, %v1495
      %v1526 = vpack.c.b16 %v1498, %v1497
      %v1527 = vpack.c.b16 %v1500, %v1499
      %v1528 = vpack.c.b16 %v1502, %v1501
      %v1529 = vpack.c.b16 %v1504, %v1503
      %v1530 = vpack.c.b16 %v1506, %v1505
      %v1531 = vpack.c.b16 %v1508, %v1507
      %v1532 = vpack.c.b16 %v1510, %v1509
      %v1533 = vpack.c.b16 %v1512, %v1511
      %v1534 = vpack.c.b16 %v1514, %v1513
      %v1535 = vpack.c.b16 %v1516, %v1515
      %v1536 = vpack.c.b16 %v1518, %v1517
      %v1537 = vpack.c.b16 %v1520, %v1519
      %v1538 = vpack.c.b16 %v1522, %v1521
      %v1557 = vunpack.c.l.b16 %v492
      %v1558 = vunpack.c.l.b16 %v493
      %v1559 = vpack.c.b16 %v1558, %v1557
      %v1563 = vunpack.c.l.b16 %v495
      %v1564 = vunpack.c.l.b16 %v496
      %v1565 = vpack.c.b16 %v1564, %v1563
      %s1567 = scalar_lea.vmem %s1, 192
      %v1568 = vld [vmem:[%s1567] sm:$0xf]
      %v1569 = vld [vmem:[%s1567 + $0x4] sm:$0xf]
      %v1570 = vld [vmem:[%s1567 + $0x8] sm:$0xf]
      %v1571 = vld [vmem:[%s1567 + $0xc] sm:$0xf]
      %v1572 = vld [vmem:[%s1567 + $0x10] sm:$0xf]
      %v1573 = vld [vmem:[%s1567 + $0x14] sm:$0xf]
      %v1574 = vld [vmem:[%s1567 + $0x18] sm:$0xf]
      %v1575 = vld [vmem:[%s1567 + $0x1c] sm:$0xf]
      %v1576 = vld [vmem:[%s1567 + $0x20] sm:$0xf]
      %v1577 = vld [vmem:[%s1567 + $0x24] sm:$0xf]
      %v1578 = vld [vmem:[%s1567 + $0x28] sm:$0xf]
      %v1579 = vld [vmem:[%s1567 + $0x2c] sm:$0xf]
      %v1580 = vld [vmem:[%s1567 + $0x30] sm:$0xf]
      %v1581 = vld [vmem:[%s1567 + $0x34] sm:$0xf]
      %v1582 = vld [vmem:[%s1567 + $0x38] sm:$0xf]
      %v1583 = vld [vmem:[%s1567 + $0x3c] sm:$0xf]
      %v1584 = vld [vmem:[%s1567 + $0x40] sm:$0xf]
      %v1585 = vld [vmem:[%s1567 + $0x44] sm:$0xf]
      %v1586 = vld [vmem:[%s1567 + $0x48] sm:$0xf]
      %v1587 = vld [vmem:[%s1567 + $0x4c] sm:$0xf]
      %v1588 = vld [vmem:[%s1567 + $0x50] sm:$0xf]
      %v1589 = vld [vmem:[%s1567 + $0x54] sm:$0xf]
      %v1590 = vld [vmem:[%s1567 + $0x58] sm:$0xf]
      %v1591 = vld [vmem:[%s1567 + $0x5c] sm:$0xf]
      %v1592 = vld [vmem:[%s1567 + $0x60] sm:$0xf]
      %v1593 = vld [vmem:[%s1567 + $0x64] sm:$0xf]
      %v1594 = vld [vmem:[%s1567 + $0x68] sm:$0xf]
      %v1595 = vld [vmem:[%s1567 + $0x6c] sm:$0xf]
      %v1596 = vld [vmem:[%s1567 + $0x70] sm:$0xf]
      %v1597 = vld [vmem:[%s1567 + $0x74] sm:$0xf]
      %v1598 = vld [vmem:[%s1567 + $0x78] sm:$0xf]
      %v1599 = vld [vmem:[%s1567 + $0x7c] sm:$0xf]
      %v1600 = vld [vmem:[%s1567 + $0x80] sm:$0xf]
      %v1601 = vld [vmem:[%s1567 + $0x84] sm:$0xf]
      %v1602 = vld [vmem:[%s1567 + $0x88] sm:$0xf]
      %v1603 = vld [vmem:[%s1567 + $0x8c] sm:$0xf]
      %v1604 = vld [vmem:[%s1567 + $0x90] sm:$0xf]
      %v1605 = vld [vmem:[%s1567 + $0x94] sm:$0xf]
      %v1606 = vld [vmem:[%s1567 + $0x98] sm:$0xf]
      %v1607 = vld [vmem:[%s1567 + $0x9c] sm:$0xf]
      %v1608 = vld [vmem:[%s1567 + $0xa0] sm:$0xf]
      %v1609 = vld [vmem:[%s1567 + $0xa4] sm:$0xf]
      %v1610 = vld [vmem:[%s1567 + $0xa8] sm:$0xf]
      %v1611 = vld [vmem:[%s1567 + $0xac] sm:$0xf]
      %v1612 = vld [vmem:[%s1567 + $0xb0] sm:$0xf]
      %v1613 = vld [vmem:[%s1567 + $0xb4] sm:$0xf]
      %v1614 = vld [vmem:[%s1567 + $0xb8] sm:$0xf]
      %v1615 = vld [vmem:[%s1567 + $0xbc] sm:$0xf]
      %v1664 = vunpack.c.l.b16 %v1568
      %v1665 = vunpack.c.l.b16 %v1569
      %v1666 = vunpack.c.l.b16 %v1570
      %v1667 = vunpack.c.l.b16 %v1571
      %v1668 = vunpack.c.l.b16 %v1572
      %v1669 = vunpack.c.l.b16 %v1573
      %v1670 = vunpack.c.l.b16 %v1574
      %v1671 = vunpack.c.l.b16 %v1575
      %v1672 = vunpack.c.l.b16 %v1576
      %v1673 = vunpack.c.l.b16 %v1577
      %v1674 = vunpack.c.l.b16 %v1578
      %v1675 = vunpack.c.l.b16 %v1579
      %v1676 = vunpack.c.l.b16 %v1580
      %v1677 = vunpack.c.l.b16 %v1581
      %v1678 = vunpack.c.l.b16 %v1582
      %v1679 = vunpack.c.l.b16 %v1583
      %v1680 = vunpack.c.l.b16 %v1584
      %v1681 = vunpack.c.l.b16 %v1585
      %v1682 = vunpack.c.l.b16 %v1586
      %v1683 = vunpack.c.l.b16 %v1587
      %v1684 = vunpack.c.l.b16 %v1588
      %v1685 = vunpack.c.l.b16 %v1589
      %v1686 = vunpack.c.l.b16 %v1590
      %v1687 = vunpack.c.l.b16 %v1591
      %v1688 = vunpack.c.l.b16 %v1592
      %v1689 = vunpack.c.l.b16 %v1593
      %v1690 = vunpack.c.l.b16 %v1594
      %v1691 = vunpack.c.l.b16 %v1595
      %v1692 = vunpack.c.l.b16 %v1596
      %v1693 = vunpack.c.l.b16 %v1597
      %v1694 = vunpack.c.l.b16 %v1598
      %v1695 = vunpack.c.l.b16 %v1599
      %v1696 = vunpack.c.l.b16 %v1600
      %v1697 = vunpack.c.l.b16 %v1601
      %v1698 = vunpack.c.l.b16 %v1602
      %v1699 = vunpack.c.l.b16 %v1603
      %v1700 = vunpack.c.l.b16 %v1604
      %v1701 = vunpack.c.l.b16 %v1605
      %v1702 = vunpack.c.l.b16 %v1606
      %v1703 = vunpack.c.l.b16 %v1607
      %v1704 = vunpack.c.l.b16 %v1608
      %v1705 = vunpack.c.l.b16 %v1609
      %v1706 = vunpack.c.l.b16 %v1610
      %v1707 = vunpack.c.l.b16 %v1611
      %v1708 = vunpack.c.l.b16 %v1612
      %v1709 = vunpack.c.l.b16 %v1613
      %v1710 = vunpack.c.l.b16 %v1614
      %v1711 = vunpack.c.l.b16 %v1615
      %v1712 = vpack.c.b16 %v1665, %v1664
      %v1713 = vpack.c.b16 %v1667, %v1666
      %v1714 = vpack.c.b16 %v1669, %v1668
      %v1715 = vpack.c.b16 %v1671, %v1670
      %v1716 = vpack.c.b16 %v1673, %v1672
      %v1717 = vpack.c.b16 %v1675, %v1674
      %v1718 = vpack.c.b16 %v1677, %v1676
      %v1719 = vpack.c.b16 %v1679, %v1678
      %v1720 = vpack.c.b16 %v1681, %v1680
      %v1721 = vpack.c.b16 %v1683, %v1682
      %v1722 = vpack.c.b16 %v1685, %v1684
      %v1723 = vpack.c.b16 %v1687, %v1686
      %v1724 = vpack.c.b16 %v1689, %v1688
      %v1725 = vpack.c.b16 %v1691, %v1690
      %v1726 = vpack.c.b16 %v1693, %v1692
      %v1727 = vpack.c.b16 %v1695, %v1694
      %v1728 = vpack.c.b16 %v1697, %v1696
      %v1729 = vpack.c.b16 %v1699, %v1698
      %v1730 = vpack.c.b16 %v1701, %v1700
      %v1731 = vpack.c.b16 %v1703, %v1702
      %v1732 = vpack.c.b16 %v1705, %v1704
      %v1733 = vpack.c.b16 %v1707, %v1706
      %v1734 = vpack.c.b16 %v1709, %v1708
      %v1735 = vpack.c.b16 %v1711, %v1710
      %1760 = vmatpush.bf16.msra.mxu0 %v1719
      %1761 = vmatpush.bf16.msra.mxu0 %v1718
      %1762 = vmatpush.bf16.msra.mxu0 %v1717
      %1763 = vmatpush.bf16.msra.mxu0 %v1716
      %1764 = vmatpush.bf16.msra.mxu0 %v1715
      %1765 = vmatpush.bf16.msra.mxu0 %v1714
      %1766 = vmatpush.bf16.msra.mxu0 %v1713
      %1767 = vmatpush.bf16.msra.mxu0 %v1712
      %1768 = vmatmul.bf16.gmra.mxu0 %v1523
      %v1769 = vpop.f32.mrf.mxu0
      %v1770 = vadd.f32 0.0, %v1769
      %v1771 = vpop.f32.mrf.mxu0
      %v1772 = vadd.f32 0.0, %v1771
      %1773 = vmatmul.bf16.gmra.mxu0 %v1524
      %v1774 = vpop.f32.mrf.mxu0
      %v1775 = vadd.f32 0.0, %v1774
      %v1776 = vpop.f32.mrf.mxu0
      %v1777 = vadd.f32 0.0, %v1776
      %1778 = vmatmul.bf16.gmra.mxu0 %v1525
      %v1779 = vpop.f32.mrf.mxu0
      %v1780 = vadd.f32 0.0, %v1779
      %v1781 = vpop.f32.mrf.mxu0
      %v1782 = vadd.f32 0.0, %v1781
      %1783 = vmatmul.bf16.gmra.mxu0 %v1526
      %v1784 = vpop.f32.mrf.mxu0
      %v1785 = vadd.f32 0.0, %v1784
      %v1786 = vpop.f32.mrf.mxu0
      %v1787 = vadd.f32 0.0, %v1786
      %1788 = vmatmul.bf16.gmra.mxu0 %v1527
      %v1789 = vpop.f32.mrf.mxu0
      %v1790 = vadd.f32 0.0, %v1789
      %v1791 = vpop.f32.mrf.mxu0
      %v1792 = vadd.f32 0.0, %v1791
      %1793 = vmatmul.bf16.gmra.mxu0 %v1528
      %v1794 = vpop.f32.mrf.mxu0
      %v1795 = vadd.f32 0.0, %v1794
      %v1796 = vpop.f32.mrf.mxu0
      %v1797 = vadd.f32 0.0, %v1796
      %1798 = vmatmul.bf16.gmra.mxu0 %v1529
      %v1799 = vpop.f32.mrf.mxu0
      %v1800 = vadd.f32 0.0, %v1799
      %v1801 = vpop.f32.mrf.mxu0
      %v1802 = vadd.f32 0.0, %v1801
      %1803 = vmatmul.bf16.gmra.mxu0 %v1530
      %v1804 = vpop.f32.mrf.mxu0
      %v1805 = vadd.f32 0.0, %v1804
      %v1806 = vpop.f32.mrf.mxu0
      %v1807 = vadd.f32 0.0, %v1806
      %1808 = vmatmul.bf16.gmra.mxu0 %v1531
      %v1809 = vpop.f32.mrf.mxu0
      %v1810 = vadd.f32 0.0, %v1809
      %v1811 = vpop.f32.mrf.mxu0
      %v1812 = vadd.f32 0.0, %v1811
      %1813 = vmatmul.bf16.gmra.mxu0 %v1532
      %v1814 = vpop.f32.mrf.mxu0
      %v1815 = vadd.f32 0.0, %v1814
      %v1816 = vpop.f32.mrf.mxu0
      %v1817 = vadd.f32 0.0, %v1816
      %1818 = vmatmul.bf16.gmra.mxu0 %v1533
      %v1819 = vpop.f32.mrf.mxu0
      %v1820 = vadd.f32 0.0, %v1819
      %v1821 = vpop.f32.mrf.mxu0
      %v1822 = vadd.f32 0.0, %v1821
      %1823 = vmatmul.bf16.gmra.mxu0 %v1534
      %v1824 = vpop.f32.mrf.mxu0
      %v1825 = vadd.f32 0.0, %v1824
      %v1826 = vpop.f32.mrf.mxu0
      %v1827 = vadd.f32 0.0, %v1826
      %1828 = vmatmul.bf16.gmra.mxu0 %v1535
      %v1829 = vpop.f32.mrf.mxu0
      %v1830 = vadd.f32 0.0, %v1829
      %v1831 = vpop.f32.mrf.mxu0
      %v1832 = vadd.f32 0.0, %v1831
      %1833 = vmatmul.bf16.gmra.mxu0 %v1536
      %v1834 = vpop.f32.mrf.mxu0
      %v1835 = vadd.f32 0.0, %v1834
      %v1836 = vpop.f32.mrf.mxu0
      %v1837 = vadd.f32 0.0, %v1836
      %1838 = vmatmul.bf16.gmra.mxu0 %v1537
      %v1839 = vpop.f32.mrf.mxu0
      %v1840 = vadd.f32 0.0, %v1839
      %v1841 = vpop.f32.mrf.mxu0
      %v1842 = vadd.f32 0.0, %v1841
      %1843 = vmatmul.bf16.gmra.mxu0 %v1538
      %v1844 = vpop.f32.mrf.mxu0
      %v1845 = vadd.f32 0.0, %v1844
      %v1846 = vpop.f32.mrf.mxu0
      %v1847 = vadd.f32 0.0, %v1846
      %1848 = vdwg.mxu0
      %1849 = vmatpush.bf16.msra.mxu0 %v1727
      %1850 = vmatpush.bf16.msra.mxu0 %v1726
      %1851 = vmatpush.bf16.msra.mxu0 %v1725
      %1852 = vmatpush.bf16.msra.mxu0 %v1724
      %1853 = vmatpush.bf16.msra.mxu0 %v1723
      %1854 = vmatpush.bf16.msra.mxu0 %v1722
      %1855 = vmatpush.bf16.msra.mxu0 %v1721
      %1856 = vmatpush.bf16.msra.mxu0 %v1720
      %1857 = vmatmul.bf16.gmra.mxu0 %v1524
      %v1858 = vpop.f32.mrf.mxu0
      %v1859 = vadd.f32 %v1770, %v1858
      %v1860 = vpop.f32.mrf.mxu0
      %v1861 = vadd.f32 %v1772, %v1860
      %1862 = vmatmul.bf16.gmra.mxu0 %v1525
      %v1863 = vpop.f32.mrf.mxu0
      %v1864 = vadd.f32 %v1775, %v1863
      %v1865 = vpop.f32.mrf.mxu0
      %v1866 = vadd.f32 %v1777, %v1865
      %1867 = vmatmul.bf16.gmra.mxu0 %v1526
      %v1868 = vpop.f32.mrf.mxu0
      %v1869 = vadd.f32 %v1780, %v1868
      %v1870 = vpop.f32.mrf.mxu0
      %v1871 = vadd.f32 %v1782, %v1870
      %1872 = vmatmul.bf16.gmra.mxu0 %v1527
      %v1873 = vpop.f32.mrf.mxu0
      %v1874 = vadd.f32 %v1785, %v1873
      %v1875 = vpop.f32.mrf.mxu0
      %v1876 = vadd.f32 %v1787, %v1875
      %1877 = vmatmul.bf16.gmra.mxu0 %v1528
      %v1878 = vpop.f32.mrf.mxu0
      %v1879 = vadd.f32 %v1790, %v1878
      %v1880 = vpop.f32.mrf.mxu0
      %v1881 = vadd.f32 %v1792, %v1880
      %1882 = vmatmul.bf16.gmra.mxu0 %v1529
      %v1883 = vpop.f32.mrf.mxu0
      %v1884 = vadd.f32 %v1795, %v1883
      %v1885 = vpop.f32.mrf.mxu0
      %v1886 = vadd.f32 %v1797, %v1885
      %1887 = vmatmul.bf16.gmra.mxu0 %v1530
      %v1888 = vpop.f32.mrf.mxu0
      %v1889 = vadd.f32 %v1800, %v1888
      %v1890 = vpop.f32.mrf.mxu0
      %v1891 = vadd.f32 %v1802, %v1890
      %1892 = vmatmul.bf16.gmra.mxu0 %v1531
      %v1893 = vpop.f32.mrf.mxu0
      %v1894 = vadd.f32 %v1805, %v1893
      %v1895 = vpop.f32.mrf.mxu0
      %v1896 = vadd.f32 %v1807, %v1895
      %1897 = vmatmul.bf16.gmra.mxu0 %v1532
      %v1898 = vpop.f32.mrf.mxu0
      %v1899 = vadd.f32 %v1810, %v1898
      %v1900 = vpop.f32.mrf.mxu0
      %v1901 = vadd.f32 %v1812, %v1900
      %1902 = vmatmul.bf16.gmra.mxu0 %v1533
      %v1903 = vpop.f32.mrf.mxu0
      %v1904 = vadd.f32 %v1815, %v1903
      %v1905 = vpop.f32.mrf.mxu0
      %v1906 = vadd.f32 %v1817, %v1905
      %1907 = vmatmul.bf16.gmra.mxu0 %v1534
      %v1908 = vpop.f32.mrf.mxu0
      %v1909 = vadd.f32 %v1820, %v1908
      %v1910 = vpop.f32.mrf.mxu0
      %v1911 = vadd.f32 %v1822, %v1910
      %1912 = vmatmul.bf16.gmra.mxu0 %v1535
      %v1913 = vpop.f32.mrf.mxu0
      %v1914 = vadd.f32 %v1825, %v1913
      %v1915 = vpop.f32.mrf.mxu0
      %v1916 = vadd.f32 %v1827, %v1915
      %1917 = vmatmul.bf16.gmra.mxu0 %v1536
      %v1918 = vpop.f32.mrf.mxu0
      %v1919 = vadd.f32 %v1830, %v1918
      %v1920 = vpop.f32.mrf.mxu0
      %v1921 = vadd.f32 %v1832, %v1920
      %1922 = vmatmul.bf16.gmra.mxu0 %v1537
      %v1923 = vpop.f32.mrf.mxu0
      %v1924 = vadd.f32 %v1835, %v1923
      %v1925 = vpop.f32.mrf.mxu0
      %v1926 = vadd.f32 %v1837, %v1925
      %1927 = vmatmul.bf16.gmra.mxu0 %v1538
      %v1928 = vpop.f32.mrf.mxu0
      %v1929 = vadd.f32 %v1840, %v1928
      %v1930 = vpop.f32.mrf.mxu0
      %v1931 = vadd.f32 %v1842, %v1930
      %1932 = vmatmul.bf16.gmra.mxu0 %v1559
      %v1933 = vpop.f32.mrf.mxu0
      %v1934 = vadd.f32 %v1845, %v1933
      %v1935 = vpop.f32.mrf.mxu0
      %v1936 = vadd.f32 %v1847, %v1935
      %1937 = vdwg.mxu0
      %1938 = vmatpush.bf16.msra.mxu0 %v1735
      %1939 = vmatpush.bf16.msra.mxu0 %v1734
      %1940 = vmatpush.bf16.msra.mxu0 %v1733
      %1941 = vmatpush.bf16.msra.mxu0 %v1732
      %1942 = vmatpush.bf16.msra.mxu0 %v1731
      %1943 = vmatpush.bf16.msra.mxu0 %v1730
      %1944 = vmatpush.bf16.msra.mxu0 %v1729
      %1945 = vmatpush.bf16.msra.mxu0 %v1728
      %1946 = vmatmul.bf16.gmra.mxu0 %v1525
      %v1947 = vpop.f32.mrf.mxu0
      %v1948 = vadd.f32 %v1859, %v1947
      %v1949 = vpop.f32.mrf.mxu0
      %v1950 = vadd.f32 %v1861, %v1949
      %1951 = vmatmul.bf16.gmra.mxu0 %v1526
      %v1952 = vpop.f32.mrf.mxu0
      %v1953 = vadd.f32 %v1864, %v1952
      %v1954 = vpop.f32.mrf.mxu0
      %v1955 = vadd.f32 %v1866, %v1954
      %1956 = vmatmul.bf16.gmra.mxu0 %v1527
      %v1957 = vpop.f32.mrf.mxu0
      %v1958 = vadd.f32 %v1869, %v1957
      %v1959 = vpop.f32.mrf.mxu0
      %v1960 = vadd.f32 %v1871, %v1959
      %1961 = vmatmul.bf16.gmra.mxu0 %v1528
      %v1962 = vpop.f32.mrf.mxu0
      %v1963 = vadd.f32 %v1874, %v1962
      %v1964 = vpop.f32.mrf.mxu0
      %v1965 = vadd.f32 %v1876, %v1964
      %1966 = vmatmul.bf16.gmra.mxu0 %v1529
      %v1967 = vpop.f32.mrf.mxu0
      %v1968 = vadd.f32 %v1879, %v1967
      %v1969 = vpop.f32.mrf.mxu0
      %v1970 = vadd.f32 %v1881, %v1969
      %1971 = vmatmul.bf16.gmra.mxu0 %v1530
      %v1972 = vpop.f32.mrf.mxu0
      %v1973 = vadd.f32 %v1884, %v1972
      %v1974 = vpop.f32.mrf.mxu0
      %v1975 = vadd.f32 %v1886, %v1974
      %1976 = vmatmul.bf16.gmra.mxu0 %v1531
      %v1977 = vpop.f32.mrf.mxu0
      %v1978 = vadd.f32 %v1889, %v1977
      %v1979 = vpop.f32.mrf.mxu0
      %v1980 = vadd.f32 %v1891, %v1979
      %1981 = vmatmul.bf16.gmra.mxu0 %v1532
      %v1982 = vpop.f32.mrf.mxu0
      %v1983 = vadd.f32 %v1894, %v1982
      %v1984 = vpop.f32.mrf.mxu0
      %v1985 = vadd.f32 %v1896, %v1984
      %1986 = vmatmul.bf16.gmra.mxu0 %v1533
      %v1987 = vpop.f32.mrf.mxu0
      %v1988 = vadd.f32 %v1899, %v1987
      %v1989 = vpop.f32.mrf.mxu0
      %v1990 = vadd.f32 %v1901, %v1989
      %1991 = vmatmul.bf16.gmra.mxu0 %v1534
      %v1992 = vpop.f32.mrf.mxu0
      %v1993 = vadd.f32 %v1904, %v1992
      %v1994 = vpop.f32.mrf.mxu0
      %v1995 = vadd.f32 %v1906, %v1994
      %1996 = vmatmul.bf16.gmra.mxu0 %v1535
      %v1997 = vpop.f32.mrf.mxu0
      %v1998 = vadd.f32 %v1909, %v1997
      %v1999 = vpop.f32.mrf.mxu0
      %v2000 = vadd.f32 %v1911, %v1999
      %2001 = vmatmul.bf16.gmra.mxu0 %v1536
      %v2002 = vpop.f32.mrf.mxu0
      %v2003 = vadd.f32 %v1914, %v2002
      %v2004 = vpop.f32.mrf.mxu0
      %v2005 = vadd.f32 %v1916, %v2004
      %2006 = vmatmul.bf16.gmra.mxu0 %v1537
      %v2007 = vpop.f32.mrf.mxu0
      %v2008 = vadd.f32 %v1919, %v2007
      %v2009 = vpop.f32.mrf.mxu0
      %v2010 = vadd.f32 %v1921, %v2009
      %2011 = vmatmul.bf16.gmra.mxu0 %v1538
      %v2012 = vpop.f32.mrf.mxu0
      %v2013 = vadd.f32 %v1924, %v2012
      %v2014 = vpop.f32.mrf.mxu0
      %v2015 = vadd.f32 %v1926, %v2014
      %2016 = vmatmul.bf16.gmra.mxu0 %v1559
      %v2017 = vpop.f32.mrf.mxu0
      %v2018 = vadd.f32 %v1929, %v2017
      %v2019 = vpop.f32.mrf.mxu0
      %v2020 = vadd.f32 %v1931, %v2019
      %2021 = vmatmul.bf16.gmra.mxu0 %v1565
      %v2022 = vpop.f32.mrf.mxu0
      %v2023 = vadd.f32 %v1934, %v2022
      %v2024 = vpop.f32.mrf.mxu0
      %v2025 = vadd.f32 %v1936, %v2024
      %2026 = vdwg.mxu0
      %v2027 = vadd.f32 %v1427, %v1948
      %v2028 = vadd.f32 %v1428, %v1950
      %v2029 = vadd.f32 %v1429, %v1953
      %v2030 = vadd.f32 %v1430, %v1955
      %v2031 = vadd.f32 %v1431, %v1958
      %v2032 = vadd.f32 %v1432, %v1960
      %v2033 = vadd.f32 %v1433, %v1963
      %v2034 = vadd.f32 %v1434, %v1965
      %v2035 = vadd.f32 %v1435, %v1968
      %v2036 = vadd.f32 %v1436, %v1970
      %v2037 = vadd.f32 %v1437, %v1973
      %v2038 = vadd.f32 %v1438, %v1975
      %v2039 = vadd.f32 %v1439, %v1978
      %v2040 = vadd.f32 %v1440, %v1980
      %v2041 = vadd.f32 %v1441, %v1983
      %v2042 = vadd.f32 %v1442, %v1985
      %v2043 = vadd.f32 %v1443, %v1988
      %v2044 = vadd.f32 %v1444, %v1990
      %v2045 = vadd.f32 %v1445, %v1993
      %v2046 = vadd.f32 %v1446, %v1995
      %v2047 = vadd.f32 %v1447, %v1998
      %v2048 = vadd.f32 %v1448, %v2000
      %v2049 = vadd.f32 %v1449, %v2003
      %v2050 = vadd.f32 %v1450, %v2005
      %v2051 = vadd.f32 %v1451, %v2008
      %v2052 = vadd.f32 %v1452, %v2010
      %v2053 = vadd.f32 %v1453, %v2013
      %v2054 = vadd.f32 %v1454, %v2015
      %v2055 = vadd.f32 %v1455, %v2018
      %v2056 = vadd.f32 %v1456, %v2020
      %v2057 = vadd.f32 %v1457, %v2023
      %v2058 = vadd.f32 %v1458, %v2025
      %v2059 = vld [vmem:[#allocation2 + $0x8] sm:$0xf]
      %v2060 = vld [vmem:[#allocation2 + $0xc] sm:$0xf]
      %v2061 = vld [vmem:[#allocation2 + $0x10] sm:$0x1]
      %v2062 = vld [vmem:[#allocation2 + $0x20] sm:$0xf]
      %v2063 = vld [vmem:[#allocation2 + $0x24] sm:$0xf]
      %v2064 = vld [vmem:[#allocation2 + $0x28] sm:$0x1]
      %v2065 = vld [vmem:[#allocation2 + $0x38] sm:$0xf]
      %v2066 = vld [vmem:[#allocation2 + $0x3c] sm:$0xf]
      %v2067 = vld [vmem:[#allocation2 + $0x40] sm:$0x1]
      %v2068 = vld [vmem:[#allocation2 + $0x50] sm:$0xf]
      %v2069 = vld [vmem:[#allocation2 + $0x54] sm:$0xf]
      %v2070 = vld [vmem:[#allocation2 + $0x58] sm:$0x1]
      %v2071 = vld [vmem:[#allocation2 + $0x68] sm:$0xf]
      %v2072 = vld [vmem:[#allocation2 + $0x6c] sm:$0xf]
      %v2073 = vld [vmem:[#allocation2 + $0x70] sm:$0x1]
      %v2074 = vld [vmem:[#allocation2 + $0x80] sm:$0xf]
      %v2075 = vld [vmem:[#allocation2 + $0x84] sm:$0xf]
      %v2076 = vld [vmem:[#allocation2 + $0x88] sm:$0x1]
      %v2077 = vld [vmem:[#allocation2 + $0x98] sm:$0xf]
      %v2078 = vld [vmem:[#allocation2 + $0x9c] sm:$0xf]
      %v2079 = vld [vmem:[#allocation2 + $0xa0] sm:$0x1]
      %v2080 = vld [vmem:[#allocation2 + $0xb0] sm:$0xf]
      %v2081 = vld [vmem:[#allocation2 + $0xb4] sm:$0xf]
      %v2082 = vld [vmem:[#allocation2 + $0xb8] sm:$0x1]
      %v2083 = vld [vmem:[#allocation2 + $0xc8] sm:$0xf]
      %v2084 = vld [vmem:[#allocation2 + $0xcc] sm:$0xf]
      %v2085 = vld [vmem:[#allocation2 + $0xd0] sm:$0x1]
      %v2086 = vld [vmem:[#allocation2 + $0xe0] sm:$0xf]
      %v2087 = vld [vmem:[#allocation2 + $0xe4] sm:$0xf]
      %v2088 = vld [vmem:[#allocation2 + $0xe8] sm:$0x1]
      %v2089 = vld [vmem:[#allocation2 + $0xf8] sm:$0xf]
      %v2090 = vld [vmem:[#allocation2 + $0xfc] sm:$0xf]
      %v2091 = vld [vmem:[#allocation2 + $0x100] sm:$0x1]
      %v2092 = vld [vmem:[#allocation2 + $0x110] sm:$0xf]
      %v2093 = vld [vmem:[#allocation2 + $0x114] sm:$0xf]
      %v2094 = vld [vmem:[#allocation2 + $0x118] sm:$0x1]
      %v2095 = vld [vmem:[#allocation2 + $0x128] sm:$0xf]
      %v2096 = vld [vmem:[#allocation2 + $0x12c] sm:$0xf]
      %v2097 = vld [vmem:[#allocation2 + $0x130] sm:$0x1]
      %v2098 = vld [vmem:[#allocation2 + $0x140] sm:$0xf]
      %v2099 = vld [vmem:[#allocation2 + $0x144] sm:$0xf]
      %v2100 = vld [vmem:[#allocation2 + $0x148] sm:$0x1]
      %v2101 = vld [vmem:[#allocation2 + $0x158] sm:$0xf]
      %v2102 = vld [vmem:[#allocation2 + $0x15c] sm:$0xf]
      %v2103 = vld [vmem:[#allocation2 + $0x160] sm:$0x1]
      %v2104 = vld [vmem:[#allocation2 + $0x170] sm:$0xf]
      %v2105 = vld [vmem:[#allocation2 + $0x174] sm:$0xf]
      %v2106 = vld [vmem:[#allocation2 + $0x178] sm:$0x1]
      %v2107 = vld [vmem:[#allocation2 + $0x188] sm:$0xf]
      %v2108 = vld [vmem:[#allocation2 + $0x18c] sm:$0xf]
      %v2109 = vld [vmem:[#allocation2 + $0x190] sm:$0x1]
      %v2110 = vld [vmem:[#allocation2 + $0x1a0] sm:$0xf]
      %v2111 = vld [vmem:[#allocation2 + $0x1a4] sm:$0xf]
      %v2112 = vld [vmem:[#allocation2 + $0x1a8] sm:$0x1]
      %vm2113 = vsmask.f32 3328
      %vm2114 = vsmask.f32 7440
      %vm2115 = vmor %vm2113, %vm2114
      %v2117 = vshrl.u32 %v2059, 16
      %v2119 = vrot.slane %v2117, 4
      %v2120 = vshll.u32 %v2059, 16
      %v2122 = vrot.slane %v2120, 5
      %v2123 = vor.u32 %v2119, %v2122
      %v2124 = vrot.slane %v2123, 4
      %v2126 = vshll.u32 %v2060, 16
      %v2128 = vrot.slane %v2126, 5
      %v2129 = vsel %vm2115, %v2124, %v2128
      %v2130 = vshrl.u32 %v2060, 16
      %v2132 = vrot.slane %v2130, 4
      %v2133 = vor.u32 %v2132, %v2128
      %v2134 = vrot.slane %v2133, 4
      %v2136 = vshll.u32 %v2061, 16
      %v2138 = vrot.slane %v2136, 5
      %v2139 = vsel %vm2115, %v2134, %v2138
      %v2141 = vshrl.u32 %v2062, 16
      %v2143 = vrot.slane %v2141, 4
      %v2144 = vshll.u32 %v2062, 16
      %v2146 = vrot.slane %v2144, 5
      %v2147 = vor.u32 %v2143, %v2146
      %v2148 = vrot.slane %v2147, 4
      %v2150 = vshll.u32 %v2063, 16
      %v2152 = vrot.slane %v2150, 5
      %v2153 = vsel %vm2115, %v2148, %v2152
      %v2154 = vshrl.u32 %v2063, 16
      %v2156 = vrot.slane %v2154, 4
      %v2157 = vor.u32 %v2156, %v2152
      %v2158 = vrot.slane %v2157, 4
      %v2160 = vshll.u32 %v2064, 16
      %v2162 = vrot.slane %v2160, 5
      %v2163 = vsel %vm2115, %v2158, %v2162
      %v2165 = vshrl.u32 %v2065, 16
      %v2167 = vrot.slane %v2165, 4
      %v2168 = vshll.u32 %v2065, 16
      %v2170 = vrot.slane %v2168, 5
      %v2171 = vor.u32 %v2167, %v2170
      %v2172 = vrot.slane %v2171, 4
      %v2174 = vshll.u32 %v2066, 16
      %v2176 = vrot.slane %v2174, 5
      %v2177 = vsel %vm2115, %v2172, %v2176
      %v2178 = vshrl.u32 %v2066, 16
      %v2180 = vrot.slane %v2178, 4
      %v2181 = vor.u32 %v2180, %v2176
      %v2182 = vrot.slane %v2181, 4
      %v2184 = vshll.u32 %v2067, 16
      %v2186 = vrot.slane %v2184, 5
      %v2187 = vsel %vm2115, %v2182, %v2186
      %v2189 = vshrl.u32 %v2068, 16
      %v2191 = vrot.slane %v2189, 4
      %v2192 = vshll.u32 %v2068, 16
      %v2194 = vrot.slane %v2192, 5
      %v2195 = vor.u32 %v2191, %v2194
      %v2196 = vrot.slane %v2195, 4
      %v2198 = vshll.u32 %v2069, 16
      %v2200 = vrot.slane %v2198, 5
      %v2201 = vsel %vm2115, %v2196, %v2200
      %v2202 = vshrl.u32 %v2069, 16
      %v2204 = vrot.slane %v2202, 4
      %v2205 = vor.u32 %v2204, %v2200
      %v2206 = vrot.slane %v2205, 4
      %v2208 = vshll.u32 %v2070, 16
      %v2210 = vrot.slane %v2208, 5
      %v2211 = vsel %vm2115, %v2206, %v2210
      %v2213 = vshrl.u32 %v2071, 16
      %v2215 = vrot.slane %v2213, 4
      %v2216 = vshll.u32 %v2071, 16
      %v2218 = vrot.slane %v2216, 5
      %v2219 = vor.u32 %v2215, %v2218
      %v2220 = vrot.slane %v2219, 4
      %v2222 = vshll.u32 %v2072, 16
      %v2224 = vrot.slane %v2222, 5
      %v2225 = vsel %vm2115, %v2220, %v2224
      %v2226 = vshrl.u32 %v2072, 16
      %v2228 = vrot.slane %v2226, 4
      %v2229 = vor.u32 %v2228, %v2224
      %v2230 = vrot.slane %v2229, 4
      %v2232 = vshll.u32 %v2073, 16
      %v2234 = vrot.slane %v2232, 5
      %v2235 = vsel %vm2115, %v2230, %v2234
      %v2237 = vshrl.u32 %v2074, 16
      %v2239 = vrot.slane %v2237, 4
      %v2240 = vshll.u32 %v2074, 16
      %v2242 = vrot.slane %v2240, 5
      %v2243 = vor.u32 %v2239, %v2242
      %v2244 = vrot.slane %v2243, 4
      %v2246 = vshll.u32 %v2075, 16
      %v2248 = vrot.slane %v2246, 5
      %v2249 = vsel %vm2115, %v2244, %v2248
      %v2250 = vshrl.u32 %v2075, 16
      %v2252 = vrot.slane %v2250, 4
      %v2253 = vor.u32 %v2252, %v2248
      %v2254 = vrot.slane %v2253, 4
      %v2256 = vshll.u32 %v2076, 16
      %v2258 = vrot.slane %v2256, 5
      %v2259 = vsel %vm2115, %v2254, %v2258
      %v2261 = vshrl.u32 %v2077, 16
      %v2263 = vrot.slane %v2261, 4
      %v2264 = vshll.u32 %v2077, 16
      %v2266 = vrot.slane %v2264, 5
      %v2267 = vor.u32 %v2263, %v2266
      %v2268 = vrot.slane %v2267, 4
      %v2270 = vshll.u32 %v2078, 16
      %v2272 = vrot.slane %v2270, 5
      %v2273 = vsel %vm2115, %v2268, %v2272
      %v2274 = vshrl.u32 %v2078, 16
      %v2276 = vrot.slane %v2274, 4
      %v2277 = vor.u32 %v2276, %v2272
      %v2278 = vrot.slane %v2277, 4
      %v2280 = vshll.u32 %v2079, 16
      %v2282 = vrot.slane %v2280, 5
      %v2283 = vsel %vm2115, %v2278, %v2282
      %v2285 = vshrl.u32 %v2080, 16
      %v2287 = vrot.slane %v2285, 4
      %v2288 = vshll.u32 %v2080, 16
      %v2290 = vrot.slane %v2288, 5
      %v2291 = vor.u32 %v2287, %v2290
      %v2292 = vrot.slane %v2291, 4
      %v2294 = vshll.u32 %v2081, 16
      %v2296 = vrot.slane %v2294, 5
      %v2297 = vsel %vm2115, %v2292, %v2296
      %v2298 = vshrl.u32 %v2081, 16
      %v2300 = vrot.slane %v2298, 4
      %v2301 = vor.u32 %v2300, %v2296
      %v2302 = vrot.slane %v2301, 4
      %v2304 = vshll.u32 %v2082, 16
      %v2306 = vrot.slane %v2304, 5
      %v2307 = vsel %vm2115, %v2302, %v2306
      %v2309 = vshrl.u32 %v2083, 16
      %v2311 = vrot.slane %v2309, 4
      %v2312 = vshll.u32 %v2083, 16
      %v2314 = vrot.slane %v2312, 5
      %v2315 = vor.u32 %v2311, %v2314
      %v2316 = vrot.slane %v2315, 4
      %v2318 = vshll.u32 %v2084, 16
      %v2320 = vrot.slane %v2318, 5
      %v2321 = vsel %vm2115, %v2316, %v2320
      %v2322 = vshrl.u32 %v2084, 16
      %v2324 = vrot.slane %v2322, 4
      %v2325 = vor.u32 %v2324, %v2320
      %v2326 = vrot.slane %v2325, 4
      %v2328 = vshll.u32 %v2085, 16
      %v2330 = vrot.slane %v2328, 5
      %v2331 = vsel %vm2115, %v2326, %v2330
      %v2333 = vshrl.u32 %v2086, 16
      %v2335 = vrot.slane %v2333, 4
      %v2336 = vshll.u32 %v2086, 16
      %v2338 = vrot.slane %v2336, 5
      %v2339 = vor.u32 %v2335, %v2338
      %v2340 = vrot.slane %v2339, 4
      %v2342 = vshll.u32 %v2087, 16
      %v2344 = vrot.slane %v2342, 5
      %v2345 = vsel %vm2115, %v2340, %v2344
      %v2346 = vshrl.u32 %v2087, 16
      %v2348 = vrot.slane %v2346, 4
      %v2349 = vor.u32 %v2348, %v2344
      %v2350 = vrot.slane %v2349, 4
      %v2352 = vshll.u32 %v2088, 16
      %v2354 = vrot.slane %v2352, 5
      %v2355 = vsel %vm2115, %v2350, %v2354
      %v2357 = vshrl.u32 %v2089, 16
      %v2359 = vrot.slane %v2357, 4
      %v2360 = vshll.u32 %v2089, 16
      %v2362 = vrot.slane %v2360, 5
      %v2363 = vor.u32 %v2359, %v2362
      %v2364 = vrot.slane %v2363, 4
      %v2366 = vshll.u32 %v2090, 16
      %v2368 = vrot.slane %v2366, 5
      %v2369 = vsel %vm2115, %v2364, %v2368
      %v2370 = vshrl.u32 %v2090, 16
      %v2372 = vrot.slane %v2370, 4
      %v2373 = vor.u32 %v2372, %v2368
      %v2374 = vrot.slane %v2373, 4
      %v2376 = vshll.u32 %v2091, 16
      %v2378 = vrot.slane %v2376, 5
      %v2379 = vsel %vm2115, %v2374, %v2378
      %v2381 = vshrl.u32 %v2092, 16
      %v2383 = vrot.slane %v2381, 4
      %v2384 = vshll.u32 %v2092, 16
      %v2386 = vrot.slane %v2384, 5
      %v2387 = vor.u32 %v2383, %v2386
      %v2388 = vrot.slane %v2387, 4
      %v2390 = vshll.u32 %v2093, 16
      %v2392 = vrot.slane %v2390, 5
      %v2393 = vsel %vm2115, %v2388, %v2392
      %v2394 = vshrl.u32 %v2093, 16
      %v2396 = vrot.slane %v2394, 4
      %v2397 = vor.u32 %v2396, %v2392
      %v2398 = vrot.slane %v2397, 4
      %v2400 = vshll.u32 %v2094, 16
      %v2402 = vrot.slane %v2400, 5
      %v2403 = vsel %vm2115, %v2398, %v2402
      %v2405 = vshrl.u32 %v2095, 16
      %v2407 = vrot.slane %v2405, 4
      %v2408 = vshll.u32 %v2095, 16
      %v2410 = vrot.slane %v2408, 5
      %v2411 = vor.u32 %v2407, %v2410
      %v2412 = vrot.slane %v2411, 4
      %v2414 = vshll.u32 %v2096, 16
      %v2416 = vrot.slane %v2414, 5
      %v2417 = vsel %vm2115, %v2412, %v2416
      %v2418 = vshrl.u32 %v2096, 16
      %v2420 = vrot.slane %v2418, 4
      %v2421 = vor.u32 %v2420, %v2416
      %v2422 = vrot.slane %v2421, 4
      %v2424 = vshll.u32 %v2097, 16
      %v2426 = vrot.slane %v2424, 5
      %v2427 = vsel %vm2115, %v2422, %v2426
      %v2429 = vshrl.u32 %v2098, 16
      %v2431 = vrot.slane %v2429, 4
      %v2432 = vshll.u32 %v2098, 16
      %v2434 = vrot.slane %v2432, 5
      %v2435 = vor.u32 %v2431, %v2434
      %v2436 = vrot.slane %v2435, 4
      %v2438 = vshll.u32 %v2099, 16
      %v2440 = vrot.slane %v2438, 5
      %v2441 = vsel %vm2115, %v2436, %v2440
      %v2442 = vshrl.u32 %v2099, 16
      %v2444 = vrot.slane %v2442, 4
      %v2445 = vor.u32 %v2444, %v2440
      %v2446 = vrot.slane %v2445, 4
      %v2448 = vshll.u32 %v2100, 16
      %v2450 = vrot.slane %v2448, 5
      %v2451 = vsel %vm2115, %v2446, %v2450
      %v2453 = vshrl.u32 %v2101, 16
      %v2455 = vrot.slane %v2453, 4
      %v2456 = vshll.u32 %v2101, 16
      %v2458 = vrot.slane %v2456, 5
      %v2459 = vor.u32 %v2455, %v2458
      %v2460 = vrot.slane %v2459, 4
      %v2462 = vshll.u32 %v2102, 16
      %v2464 = vrot.slane %v2462, 5
      %v2465 = vsel %vm2115, %v2460, %v2464
      %v2466 = vshrl.u32 %v2102, 16
      %v2468 = vrot.slane %v2466, 4
      %v2469 = vor.u32 %v2468, %v2464
      %v2470 = vrot.slane %v2469, 4
      %v2472 = vshll.u32 %v2103, 16
      %v2474 = vrot.slane %v2472, 5
      %v2475 = vsel %vm2115, %v2470, %v2474
      %v2477 = vshrl.u32 %v2104, 16
      %v2479 = vrot.slane %v2477, 4
      %v2480 = vshll.u32 %v2104, 16
      %v2482 = vrot.slane %v2480, 5
      %v2483 = vor.u32 %v2479, %v2482
      %v2484 = vrot.slane %v2483, 4
      %v2486 = vshll.u32 %v2105, 16
      %v2488 = vrot.slane %v2486, 5
      %v2489 = vsel %vm2115, %v2484, %v2488
      %v2490 = vshrl.u32 %v2105, 16
      %v2492 = vrot.slane %v2490, 4
      %v2493 = vor.u32 %v2492, %v2488
      %v2494 = vrot.slane %v2493, 4
      %v2496 = vshll.u32 %v2106, 16
      %v2498 = vrot.slane %v2496, 5
      %v2499 = vsel %vm2115, %v2494, %v2498
      %v2501 = vshrl.u32 %v2107, 16
      %v2503 = vrot.slane %v2501, 4
      %v2504 = vshll.u32 %v2107, 16
      %v2506 = vrot.slane %v2504, 5
      %v2507 = vor.u32 %v2503, %v2506
      %v2508 = vrot.slane %v2507, 4
      %v2510 = vshll.u32 %v2108, 16
      %v2512 = vrot.slane %v2510, 5
      %v2513 = vsel %vm2115, %v2508, %v2512
      %v2514 = vshrl.u32 %v2108, 16
      %v2516 = vrot.slane %v2514, 4
      %v2517 = vor.u32 %v2516, %v2512
      %v2518 = vrot.slane %v2517, 4
      %v2520 = vshll.u32 %v2109, 16
      %v2522 = vrot.slane %v2520, 5
      %v2523 = vsel %vm2115, %v2518, %v2522
      %v2525 = vshrl.u32 %v2110, 16
      %v2527 = vrot.slane %v2525, 4
      %v2528 = vshll.u32 %v2110, 16
      %v2530 = vrot.slane %v2528, 5
      %v2531 = vor.u32 %v2527, %v2530
      %v2532 = vrot.slane %v2531, 4
      %v2534 = vshll.u32 %v2111, 16
      %v2536 = vrot.slane %v2534, 5
      %v2537 = vsel %vm2115, %v2532, %v2536
      %v2538 = vshrl.u32 %v2111, 16
      %v2540 = vrot.slane %v2538, 4
      %v2541 = vor.u32 %v2540, %v2536
      %v2542 = vrot.slane %v2541, 4
      %v2544 = vshll.u32 %v2112, 16
      %v2546 = vrot.slane %v2544, 5
      %v2547 = vsel %vm2115, %v2542, %v2546
      %v2548 = vunpack.c.l.b16 %v2129
      %v2549 = vunpack.c.l.b16 %v2139
      %v2550 = vunpack.c.l.b16 %v2153
      %v2551 = vunpack.c.l.b16 %v2163
      %v2552 = vunpack.c.l.b16 %v2177
      %v2553 = vunpack.c.l.b16 %v2187
      %v2554 = vunpack.c.l.b16 %v2201
      %v2555 = vunpack.c.l.b16 %v2211
      %v2556 = vunpack.c.l.b16 %v2225
      %v2557 = vunpack.c.l.b16 %v2235
      %v2558 = vunpack.c.l.b16 %v2249
      %v2559 = vunpack.c.l.b16 %v2259
      %v2560 = vunpack.c.l.b16 %v2273
      %v2561 = vunpack.c.l.b16 %v2283
      %v2562 = vunpack.c.l.b16 %v2297
      %v2563 = vunpack.c.l.b16 %v2307
      %v2564 = vunpack.c.l.b16 %v2321
      %v2565 = vunpack.c.l.b16 %v2331
      %v2566 = vunpack.c.l.b16 %v2345
      %v2567 = vunpack.c.l.b16 %v2355
      %v2568 = vunpack.c.l.b16 %v2369
      %v2569 = vunpack.c.l.b16 %v2379
      %v2570 = vunpack.c.l.b16 %v2393
      %v2571 = vunpack.c.l.b16 %v2403
      %v2572 = vunpack.c.l.b16 %v2417
      %v2573 = vunpack.c.l.b16 %v2427
      %v2574 = vunpack.c.l.b16 %v2441
      %v2575 = vunpack.c.l.b16 %v2451
      %v2576 = vunpack.c.l.b16 %v2465
      %v2577 = vunpack.c.l.b16 %v2475
      %v2578 = vunpack.c.l.b16 %v2489
      %v2579 = vunpack.c.l.b16 %v2499
      %v2580 = vpack.c.b16 %v2549, %v2548
      %v2581 = vpack.c.b16 %v2551, %v2550
      %v2582 = vpack.c.b16 %v2553, %v2552
      %v2583 = vpack.c.b16 %v2555, %v2554
      %v2584 = vpack.c.b16 %v2557, %v2556
      %v2585 = vpack.c.b16 %v2559, %v2558
      %v2586 = vpack.c.b16 %v2561, %v2560
      %v2587 = vpack.c.b16 %v2563, %v2562
      %v2588 = vpack.c.b16 %v2565, %v2564
      %v2589 = vpack.c.b16 %v2567, %v2566
      %v2590 = vpack.c.b16 %v2569, %v2568
      %v2591 = vpack.c.b16 %v2571, %v2570
      %v2592 = vpack.c.b16 %v2573, %v2572
      %v2593 = vpack.c.b16 %v2575, %v2574
      %v2594 = vpack.c.b16 %v2577, %v2576
      %v2595 = vpack.c.b16 %v2579, %v2578
      %v2612 = vunpack.c.l.b16 %v2513
      %v2613 = vunpack.c.l.b16 %v2523
      %v2614 = vpack.c.b16 %v2613, %v2612
      %v2616 = vunpack.c.l.b16 %v2537
      %v2617 = vunpack.c.l.b16 %v2547
      %v2618 = vpack.c.b16 %v2617, %v2616
      %s2620 = scalar_lea.vmem %s1, 384
      %v2621 = vld [vmem:[%s2620] sm:$0xf]
      %v2622 = vld [vmem:[%s2620 + $0x4] sm:$0xf]
      %v2623 = vld [vmem:[%s2620 + $0x8] sm:$0xf]
      %v2624 = vld [vmem:[%s2620 + $0xc] sm:$0xf]
      %v2625 = vld [vmem:[%s2620 + $0x10] sm:$0xf]
      %v2626 = vld [vmem:[%s2620 + $0x14] sm:$0xf]
      %v2627 = vld [vmem:[%s2620 + $0x18] sm:$0xf]
      %v2628 = vld [vmem:[%s2620 + $0x1c] sm:$0xf]
      %v2629 = vld [vmem:[%s2620 + $0x20] sm:$0xf]
      %v2630 = vld [vmem:[%s2620 + $0x24] sm:$0xf]
      %v2631 = vld [vmem:[%s2620 + $0x28] sm:$0xf]
      %v2632 = vld [vmem:[%s2620 + $0x2c] sm:$0xf]
      %v2633 = vld [vmem:[%s2620 + $0x30] sm:$0xf]
      %v2634 = vld [vmem:[%s2620 + $0x34] sm:$0xf]
      %v2635 = vld [vmem:[%s2620 + $0x38] sm:$0xf]
      %v2636 = vld [vmem:[%s2620 + $0x3c] sm:$0xf]
      %v2637 = vld [vmem:[%s2620 + $0x40] sm:$0xf]
      %v2638 = vld [vmem:[%s2620 + $0x44] sm:$0xf]
      %v2639 = vld [vmem:[%s2620 + $0x48] sm:$0xf]
      %v2640 = vld [vmem:[%s2620 + $0x4c] sm:$0xf]
      %v2641 = vld [vmem:[%s2620 + $0x50] sm:$0xf]
      %v2642 = vld [vmem:[%s2620 + $0x54] sm:$0xf]
      %v2643 = vld [vmem:[%s2620 + $0x58] sm:$0xf]
      %v2644 = vld [vmem:[%s2620 + $0x5c] sm:$0xf]
      %v2645 = vld [vmem:[%s2620 + $0x60] sm:$0xf]
      %v2646 = vld [vmem:[%s2620 + $0x64] sm:$0xf]
      %v2647 = vld [vmem:[%s2620 + $0x68] sm:$0xf]
      %v2648 = vld [vmem:[%s2620 + $0x6c] sm:$0xf]
      %v2649 = vld [vmem:[%s2620 + $0x70] sm:$0xf]
      %v2650 = vld [vmem:[%s2620 + $0x74] sm:$0xf]
      %v2651 = vld [vmem:[%s2620 + $0x78] sm:$0xf]
      %v2652 = vld [vmem:[%s2620 + $0x7c] sm:$0xf]
      %v2653 = vld [vmem:[%s2620 + $0x80] sm:$0xf]
      %v2654 = vld [vmem:[%s2620 + $0x84] sm:$0xf]
      %v2655 = vld [vmem:[%s2620 + $0x88] sm:$0xf]
      %v2656 = vld [vmem:[%s2620 + $0x8c] sm:$0xf]
      %v2657 = vld [vmem:[%s2620 + $0x90] sm:$0xf]
      %v2658 = vld [vmem:[%s2620 + $0x94] sm:$0xf]
      %v2659 = vld [vmem:[%s2620 + $0x98] sm:$0xf]
      %v2660 = vld [vmem:[%s2620 + $0x9c] sm:$0xf]
      %v2661 = vld [vmem:[%s2620 + $0xa0] sm:$0xf]
      %v2662 = vld [vmem:[%s2620 + $0xa4] sm:$0xf]
      %v2663 = vld [vmem:[%s2620 + $0xa8] sm:$0xf]
      %v2664 = vld [vmem:[%s2620 + $0xac] sm:$0xf]
      %v2665 = vld [vmem:[%s2620 + $0xb0] sm:$0xf]
      %v2666 = vld [vmem:[%s2620 + $0xb4] sm:$0xf]
      %v2667 = vld [vmem:[%s2620 + $0xb8] sm:$0xf]
      %v2668 = vld [vmem:[%s2620 + $0xbc] sm:$0xf]
      %v2717 = vunpack.c.l.b16 %v2621
      %v2718 = vunpack.c.l.b16 %v2622
      %v2719 = vunpack.c.l.b16 %v2623
      %v2720 = vunpack.c.l.b16 %v2624
      %v2721 = vunpack.c.l.b16 %v2625
      %v2722 = vunpack.c.l.b16 %v2626
      %v2723 = vunpack.c.l.b16 %v2627
      %v2724 = vunpack.c.l.b16 %v2628
      %v2725 = vunpack.c.l.b16 %v2629
      %v2726 = vunpack.c.l.b16 %v2630
      %v2727 = vunpack.c.l.b16 %v2631
      %v2728 = vunpack.c.l.b16 %v2632
      %v2729 = vunpack.c.l.b16 %v2633
      %v2730 = vunpack.c.l.b16 %v2634
      %v2731 = vunpack.c.l.b16 %v2635
      %v2732 = vunpack.c.l.b16 %v2636
      %v2733 = vunpack.c.l.b16 %v2637
      %v2734 = vunpack.c.l.b16 %v2638
      %v2735 = vunpack.c.l.b16 %v2639
      %v2736 = vunpack.c.l.b16 %v2640
      %v2737 = vunpack.c.l.b16 %v2641
      %v2738 = vunpack.c.l.b16 %v2642
      %v2739 = vunpack.c.l.b16 %v2643
      %v2740 = vunpack.c.l.b16 %v2644
      %v2741 = vunpack.c.l.b16 %v2645
      %v2742 = vunpack.c.l.b16 %v2646
      %v2743 = vunpack.c.l.b16 %v2647
      %v2744 = vunpack.c.l.b16 %v2648
      %v2745 = vunpack.c.l.b16 %v2649
      %v2746 = vunpack.c.l.b16 %v2650
      %v2747 = vunpack.c.l.b16 %v2651
      %v2748 = vunpack.c.l.b16 %v2652
      %v2749 = vunpack.c.l.b16 %v2653
      %v2750 = vunpack.c.l.b16 %v2654
      %v2751 = vunpack.c.l.b16 %v2655
      %v2752 = vunpack.c.l.b16 %v2656
      %v2753 = vunpack.c.l.b16 %v2657
      %v2754 = vunpack.c.l.b16 %v2658
      %v2755 = vunpack.c.l.b16 %v2659
      %v2756 = vunpack.c.l.b16 %v2660
      %v2757 = vunpack.c.l.b16 %v2661
      %v2758 = vunpack.c.l.b16 %v2662
      %v2759 = vunpack.c.l.b16 %v2663
      %v2760 = vunpack.c.l.b16 %v2664
      %v2761 = vunpack.c.l.b16 %v2665
      %v2762 = vunpack.c.l.b16 %v2666
      %v2763 = vunpack.c.l.b16 %v2667
      %v2764 = vunpack.c.l.b16 %v2668
      %v2765 = vpack.c.b16 %v2718, %v2717
      %v2766 = vpack.c.b16 %v2720, %v2719
      %v2767 = vpack.c.b16 %v2722, %v2721
      %v2768 = vpack.c.b16 %v2724, %v2723
      %v2769 = vpack.c.b16 %v2726, %v2725
      %v2770 = vpack.c.b16 %v2728, %v2727
      %v2771 = vpack.c.b16 %v2730, %v2729
      %v2772 = vpack.c.b16 %v2732, %v2731
      %v2773 = vpack.c.b16 %v2734, %v2733
      %v2774 = vpack.c.b16 %v2736, %v2735
      %v2775 = vpack.c.b16 %v2738, %v2737
      %v2776 = vpack.c.b16 %v2740, %v2739
      %v2777 = vpack.c.b16 %v2742, %v2741
      %v2778 = vpack.c.b16 %v2744, %v2743
      %v2779 = vpack.c.b16 %v2746, %v2745
      %v2780 = vpack.c.b16 %v2748, %v2747
      %v2781 = vpack.c.b16 %v2750, %v2749
      %v2782 = vpack.c.b16 %v2752, %v2751
      %v2783 = vpack.c.b16 %v2754, %v2753
      %v2784 = vpack.c.b16 %v2756, %v2755
      %v2785 = vpack.c.b16 %v2758, %v2757
      %v2786 = vpack.c.b16 %v2760, %v2759
      %v2787 = vpack.c.b16 %v2762, %v2761
      %v2788 = vpack.c.b16 %v2764, %v2763
      %2813 = vmatpush.bf16.msra.mxu0 %v2772
      %2814 = vmatpush.bf16.msra.mxu0 %v2771
      %2815 = vmatpush.bf16.msra.mxu0 %v2770
      %2816 = vmatpush.bf16.msra.mxu0 %v2769
      %2817 = vmatpush.bf16.msra.mxu0 %v2768
      %2818 = vmatpush.bf16.msra.mxu0 %v2767
      %2819 = vmatpush.bf16.msra.mxu0 %v2766
      %2820 = vmatpush.bf16.msra.mxu0 %v2765
      %2821 = vmatmul.bf16.gmra.mxu0 %v2580
      %v2822 = vpop.f32.mrf.mxu0
      %v2823 = vadd.f32 0.0, %v2822
      %v2824 = vpop.f32.mrf.mxu0
      %v2825 = vadd.f32 0.0, %v2824
      %2826 = vmatmul.bf16.gmra.mxu0 %v2581
      %v2827 = vpop.f32.mrf.mxu0
      %v2828 = vadd.f32 0.0, %v2827
      %v2829 = vpop.f32.mrf.mxu0
      %v2830 = vadd.f32 0.0, %v2829
      %2831 = vmatmul.bf16.gmra.mxu0 %v2582
      %v2832 = vpop.f32.mrf.mxu0
      %v2833 = vadd.f32 0.0, %v2832
      %v2834 = vpop.f32.mrf.mxu0
      %v2835 = vadd.f32 0.0, %v2834
      %2836 = vmatmul.bf16.gmra.mxu0 %v2583
      %v2837 = vpop.f32.mrf.mxu0
      %v2838 = vadd.f32 0.0, %v2837
      %v2839 = vpop.f32.mrf.mxu0
      %v2840 = vadd.f32 0.0, %v2839
      %2841 = vmatmul.bf16.gmra.mxu0 %v2584
      %v2842 = vpop.f32.mrf.mxu0
      %v2843 = vadd.f32 0.0, %v2842
      %v2844 = vpop.f32.mrf.mxu0
      %v2845 = vadd.f32 0.0, %v2844
      %2846 = vmatmul.bf16.gmra.mxu0 %v2585
      %v2847 = vpop.f32.mrf.mxu0
      %v2848 = vadd.f32 0.0, %v2847
      %v2849 = vpop.f32.mrf.mxu0
      %v2850 = vadd.f32 0.0, %v2849
      %2851 = vmatmul.bf16.gmra.mxu0 %v2586
      %v2852 = vpop.f32.mrf.mxu0
      %v2853 = vadd.f32 0.0, %v2852
      %v2854 = vpop.f32.mrf.mxu0
      %v2855 = vadd.f32 0.0, %v2854
      %2856 = vmatmul.bf16.gmra.mxu0 %v2587
      %v2857 = vpop.f32.mrf.mxu0
      %v2858 = vadd.f32 0.0, %v2857
      %v2859 = vpop.f32.mrf.mxu0
      %v2860 = vadd.f32 0.0, %v2859
      %2861 = vmatmul.bf16.gmra.mxu0 %v2588
      %v2862 = vpop.f32.mrf.mxu0
      %v2863 = vadd.f32 0.0, %v2862
      %v2864 = vpop.f32.mrf.mxu0
      %v2865 = vadd.f32 0.0, %v2864
      %2866 = vmatmul.bf16.gmra.mxu0 %v2589
      %v2867 = vpop.f32.mrf.mxu0
      %v2868 = vadd.f32 0.0, %v2867
      %v2869 = vpop.f32.mrf.mxu0
      %v2870 = vadd.f32 0.0, %v2869
      %2871 = vmatmul.bf16.gmra.mxu0 %v2590
      %v2872 = vpop.f32.mrf.mxu0
      %v2873 = vadd.f32 0.0, %v2872
      %v2874 = vpop.f32.mrf.mxu0
      %v2875 = vadd.f32 0.0, %v2874
      %2876 = vmatmul.bf16.gmra.mxu0 %v2591
      %v2877 = vpop.f32.mrf.mxu0
      %v2878 = vadd.f32 0.0, %v2877
      %v2879 = vpop.f32.mrf.mxu0
      %v2880 = vadd.f32 0.0, %v2879
      %2881 = vmatmul.bf16.gmra.mxu0 %v2592
      %v2882 = vpop.f32.mrf.mxu0
      %v2883 = vadd.f32 0.0, %v2882
      %v2884 = vpop.f32.mrf.mxu0
      %v2885 = vadd.f32 0.0, %v2884
      %2886 = vmatmul.bf16.gmra.mxu0 %v2593
      %v2887 = vpop.f32.mrf.mxu0
      %v2888 = vadd.f32 0.0, %v2887
      %v2889 = vpop.f32.mrf.mxu0
      %v2890 = vadd.f32 0.0, %v2889
      %2891 = vmatmul.bf16.gmra.mxu0 %v2594
      %v2892 = vpop.f32.mrf.mxu0
      %v2893 = vadd.f32 0.0, %v2892
      %v2894 = vpop.f32.mrf.mxu0
      %v2895 = vadd.f32 0.0, %v2894
      %2896 = vmatmul.bf16.gmra.mxu0 %v2595
      %v2897 = vpop.f32.mrf.mxu0
      %v2898 = vadd.f32 0.0, %v2897
      %v2899 = vpop.f32.mrf.mxu0
      %v2900 = vadd.f32 0.0, %v2899
      %2901 = vdwg.mxu0
      %2902 = vmatpush.bf16.msra.mxu0 %v2780
      %2903 = vmatpush.bf16.msra.mxu0 %v2779
      %2904 = vmatpush.bf16.msra.mxu0 %v2778
      %2905 = vmatpush.bf16.msra.mxu0 %v2777
      %2906 = vmatpush.bf16.msra.mxu0 %v2776
      %2907 = vmatpush.bf16.msra.mxu0 %v2775
      %2908 = vmatpush.bf16.msra.mxu0 %v2774
      %2909 = vmatpush.bf16.msra.mxu0 %v2773
      %2910 = vmatmul.bf16.gmra.mxu0 %v2581
      %v2911 = vpop.f32.mrf.mxu0
      %v2912 = vadd.f32 %v2823, %v2911
      %v2913 = vpop.f32.mrf.mxu0
      %v2914 = vadd.f32 %v2825, %v2913
      %2915 = vmatmul.bf16.gmra.mxu0 %v2582
      %v2916 = vpop.f32.mrf.mxu0
      %v2917 = vadd.f32 %v2828, %v2916
      %v2918 = vpop.f32.mrf.mxu0
      %v2919 = vadd.f32 %v2830, %v2918
      %2920 = vmatmul.bf16.gmra.mxu0 %v2583
      %v2921 = vpop.f32.mrf.mxu0
      %v2922 = vadd.f32 %v2833, %v2921
      %v2923 = vpop.f32.mrf.mxu0
      %v2924 = vadd.f32 %v2835, %v2923
      %2925 = vmatmul.bf16.gmra.mxu0 %v2584
      %v2926 = vpop.f32.mrf.mxu0
      %v2927 = vadd.f32 %v2838, %v2926
      %v2928 = vpop.f32.mrf.mxu0
      %v2929 = vadd.f32 %v2840, %v2928
      %2930 = vmatmul.bf16.gmra.mxu0 %v2585
      %v2931 = vpop.f32.mrf.mxu0
      %v2932 = vadd.f32 %v2843, %v2931
      %v2933 = vpop.f32.mrf.mxu0
      %v2934 = vadd.f32 %v2845, %v2933
      %2935 = vmatmul.bf16.gmra.mxu0 %v2586
      %v2936 = vpop.f32.mrf.mxu0
      %v2937 = vadd.f32 %v2848, %v2936
      %v2938 = vpop.f32.mrf.mxu0
      %v2939 = vadd.f32 %v2850, %v2938
      %2940 = vmatmul.bf16.gmra.mxu0 %v2587
      %v2941 = vpop.f32.mrf.mxu0
      %v2942 = vadd.f32 %v2853, %v2941
      %v2943 = vpop.f32.mrf.mxu0
      %v2944 = vadd.f32 %v2855, %v2943
      %2945 = vmatmul.bf16.gmra.mxu0 %v2588
      %v2946 = vpop.f32.mrf.mxu0
      %v2947 = vadd.f32 %v2858, %v2946
      %v2948 = vpop.f32.mrf.mxu0
      %v2949 = vadd.f32 %v2860, %v2948
      %2950 = vmatmul.bf16.gmra.mxu0 %v2589
      %v2951 = vpop.f32.mrf.mxu0
      %v2952 = vadd.f32 %v2863, %v2951
      %v2953 = vpop.f32.mrf.mxu0
      %v2954 = vadd.f32 %v2865, %v2953
      %2955 = vmatmul.bf16.gmra.mxu0 %v2590
      %v2956 = vpop.f32.mrf.mxu0
      %v2957 = vadd.f32 %v2868, %v2956
      %v2958 = vpop.f32.mrf.mxu0
      %v2959 = vadd.f32 %v2870, %v2958
      %2960 = vmatmul.bf16.gmra.mxu0 %v2591
      %v2961 = vpop.f32.mrf.mxu0
      %v2962 = vadd.f32 %v2873, %v2961
      %v2963 = vpop.f32.mrf.mxu0
      %v2964 = vadd.f32 %v2875, %v2963
      %2965 = vmatmul.bf16.gmra.mxu0 %v2592
      %v2966 = vpop.f32.mrf.mxu0
      %v2967 = vadd.f32 %v2878, %v2966
      %v2968 = vpop.f32.mrf.mxu0
      %v2969 = vadd.f32 %v2880, %v2968
      %2970 = vmatmul.bf16.gmra.mxu0 %v2593
      %v2971 = vpop.f32.mrf.mxu0
      %v2972 = vadd.f32 %v2883, %v2971
      %v2973 = vpop.f32.mrf.mxu0
      %v2974 = vadd.f32 %v2885, %v2973
      %2975 = vmatmul.bf16.gmra.mxu0 %v2594
      %v2976 = vpop.f32.mrf.mxu0
      %v2977 = vadd.f32 %v2888, %v2976
      %v2978 = vpop.f32.mrf.mxu0
      %v2979 = vadd.f32 %v2890, %v2978
      %2980 = vmatmul.bf16.gmra.mxu0 %v2595
      %v2981 = vpop.f32.mrf.mxu0
      %v2982 = vadd.f32 %v2893, %v2981
      %v2983 = vpop.f32.mrf.mxu0
      %v2984 = vadd.f32 %v2895, %v2983
      %2985 = vmatmul.bf16.gmra.mxu0 %v2614
      %v2986 = vpop.f32.mrf.mxu0
      %v2987 = vadd.f32 %v2898, %v2986
      %v2988 = vpop.f32.mrf.mxu0
      %v2989 = vadd.f32 %v2900, %v2988
      %2990 = vdwg.mxu0
      %2991 = vmatpush.bf16.msra.mxu0 %v2788
      %2992 = vmatpush.bf16.msra.mxu0 %v2787
      %2993 = vmatpush.bf16.msra.mxu0 %v2786
      %2994 = vmatpush.bf16.msra.mxu0 %v2785
      %2995 = vmatpush.bf16.msra.mxu0 %v2784
      %2996 = vmatpush.bf16.msra.mxu0 %v2783
      %2997 = vmatpush.bf16.msra.mxu0 %v2782
      %2998 = vmatpush.bf16.msra.mxu0 %v2781
      %2999 = vmatmul.bf16.gmra.mxu0 %v2582
      %v3000 = vpop.f32.mrf.mxu0
      %v3001 = vadd.f32 %v2912, %v3000
      %v3002 = vpop.f32.mrf.mxu0
      %v3003 = vadd.f32 %v2914, %v3002
      %3004 = vmatmul.bf16.gmra.mxu0 %v2583
      %v3005 = vpop.f32.mrf.mxu0
      %v3006 = vadd.f32 %v2917, %v3005
      %v3007 = vpop.f32.mrf.mxu0
      %v3008 = vadd.f32 %v2919, %v3007
      %3009 = vmatmul.bf16.gmra.mxu0 %v2584
      %v3010 = vpop.f32.mrf.mxu0
      %v3011 = vadd.f32 %v2922, %v3010
      %v3012 = vpop.f32.mrf.mxu0
      %v3013 = vadd.f32 %v2924, %v3012
      %3014 = vmatmul.bf16.gmra.mxu0 %v2585
      %v3015 = vpop.f32.mrf.mxu0
      %v3016 = vadd.f32 %v2927, %v3015
      %v3017 = vpop.f32.mrf.mxu0
      %v3018 = vadd.f32 %v2929, %v3017
      %3019 = vmatmul.bf16.gmra.mxu0 %v2586
      %v3020 = vpop.f32.mrf.mxu0
      %v3021 = vadd.f32 %v2932, %v3020
      %v3022 = vpop.f32.mrf.mxu0
      %v3023 = vadd.f32 %v2934, %v3022
      %3024 = vmatmul.bf16.gmra.mxu0 %v2587
      %v3025 = vpop.f32.mrf.mxu0
      %v3026 = vadd.f32 %v2937, %v3025
      %v3027 = vpop.f32.mrf.mxu0
      %v3028 = vadd.f32 %v2939, %v3027
      %3029 = vmatmul.bf16.gmra.mxu0 %v2588
      %v3030 = vpop.f32.mrf.mxu0
      %v3031 = vadd.f32 %v2942, %v3030
      %v3032 = vpop.f32.mrf.mxu0
      %v3033 = vadd.f32 %v2944, %v3032
      %3034 = vmatmul.bf16.gmra.mxu0 %v2589
      %v3035 = vpop.f32.mrf.mxu0
      %v3036 = vadd.f32 %v2947, %v3035
      %v3037 = vpop.f32.mrf.mxu0
      %v3038 = vadd.f32 %v2949, %v3037
      %3039 = vmatmul.bf16.gmra.mxu0 %v2590
      %v3040 = vpop.f32.mrf.mxu0
      %v3041 = vadd.f32 %v2952, %v3040
      %v3042 = vpop.f32.mrf.mxu0
      %v3043 = vadd.f32 %v2954, %v3042
      %3044 = vmatmul.bf16.gmra.mxu0 %v2591
      %v3045 = vpop.f32.mrf.mxu0
      %v3046 = vadd.f32 %v2957, %v3045
      %v3047 = vpop.f32.mrf.mxu0
      %v3048 = vadd.f32 %v2959, %v3047
      %3049 = vmatmul.bf16.gmra.mxu0 %v2592
      %v3050 = vpop.f32.mrf.mxu0
      %v3051 = vadd.f32 %v2962, %v3050
      %v3052 = vpop.f32.mrf.mxu0
      %v3053 = vadd.f32 %v2964, %v3052
      %3054 = vmatmul.bf16.gmra.mxu0 %v2593
      %v3055 = vpop.f32.mrf.mxu0
      %v3056 = vadd.f32 %v2967, %v3055
      %v3057 = vpop.f32.mrf.mxu0
      %v3058 = vadd.f32 %v2969, %v3057
      %3059 = vmatmul.bf16.gmra.mxu0 %v2594
      %v3060 = vpop.f32.mrf.mxu0
      %v3061 = vadd.f32 %v2972, %v3060
      %v3062 = vpop.f32.mrf.mxu0
      %v3063 = vadd.f32 %v2974, %v3062
      %3064 = vmatmul.bf16.gmra.mxu0 %v2595
      %v3065 = vpop.f32.mrf.mxu0
      %v3066 = vadd.f32 %v2977, %v3065
      %v3067 = vpop.f32.mrf.mxu0
      %v3068 = vadd.f32 %v2979, %v3067
      %3069 = vmatmul.bf16.gmra.mxu0 %v2614
      %v3070 = vpop.f32.mrf.mxu0
      %v3071 = vadd.f32 %v2982, %v3070
      %v3072 = vpop.f32.mrf.mxu0
      %v3073 = vadd.f32 %v2984, %v3072
      %3074 = vmatmul.bf16.gmra.mxu0 %v2618
      %v3075 = vpop.f32.mrf.mxu0
      %v3076 = vadd.f32 %v2987, %v3075
      %v3077 = vpop.f32.mrf.mxu0
      %v3078 = vadd.f32 %v2989, %v3077
      %3079 = vdwg.mxu0
      %v3080 = vadd.f32 %v2027, %v3001
      %v3081 = vadd.f32 %v2028, %v3003
      %v3082 = vadd.f32 %v2029, %v3006
      %v3083 = vadd.f32 %v2030, %v3008
      %v3084 = vadd.f32 %v2031, %v3011
      %v3085 = vadd.f32 %v2032, %v3013
      %v3086 = vadd.f32 %v2033, %v3016
      %v3087 = vadd.f32 %v2034, %v3018
      %v3088 = vadd.f32 %v2035, %v3021
      %v3089 = vadd.f32 %v2036, %v3023
      %v3090 = vadd.f32 %v2037, %v3026
      %v3091 = vadd.f32 %v2038, %v3028
      %v3092 = vadd.f32 %v2039, %v3031
      %v3093 = vadd.f32 %v2040, %v3033
      %v3094 = vadd.f32 %v2041, %v3036
      %v3095 = vadd.f32 %v2042, %v3038
      %v3096 = vadd.f32 %v2043, %v3041
      %v3097 = vadd.f32 %v2044, %v3043
      %v3098 = vadd.f32 %v2045, %v3046
      %v3099 = vadd.f32 %v2046, %v3048
      %v3100 = vadd.f32 %v2047, %v3051
      %v3101 = vadd.f32 %v2048, %v3053
      %v3102 = vadd.f32 %v2049, %v3056
      %v3103 = vadd.f32 %v2050, %v3058
      %v3104 = vadd.f32 %v2051, %v3061
      %v3105 = vadd.f32 %v2052, %v3063
      %v3106 = vadd.f32 %v2053, %v3066
      %v3107 = vadd.f32 %v2054, %v3068
      %v3108 = vadd.f32 %v2055, %v3071
      %v3109 = vadd.f32 %v2056, %v3073
      %v3110 = vadd.f32 %v2057, %v3076
      %v3111 = vadd.f32 %v2058, %v3078
      %v3112 = vmax.f32 %v3080, 0.0
      %v3113 = vmax.f32 %v3081, 0.0
      %v3114 = vmax.f32 %v3082, 0.0
      %v3115 = vmax.f32 %v3083, 0.0
      %v3116 = vmax.f32 %v3084, 0.0
      %v3117 = vmax.f32 %v3085, 0.0
      %v3118 = vmax.f32 %v3086, 0.0
      %v3119 = vmax.f32 %v3087, 0.0
      %v3120 = vmax.f32 %v3088, 0.0
      %v3121 = vmax.f32 %v3089, 0.0
      %v3122 = vmax.f32 %v3090, 0.0
      %v3123 = vmax.f32 %v3091, 0.0
      %v3124 = vmax.f32 %v3092, 0.0
      %v3125 = vmax.f32 %v3093, 0.0
      %v3126 = vmax.f32 %v3094, 0.0
      %v3127 = vmax.f32 %v3095, 0.0
      %v3128 = vmax.f32 %v3096, 0.0
      %v3129 = vmax.f32 %v3097, 0.0
      %v3130 = vmax.f32 %v3098, 0.0
      %v3131 = vmax.f32 %v3099, 0.0
      %v3132 = vmax.f32 %v3100, 0.0
      %v3133 = vmax.f32 %v3101, 0.0
      %v3134 = vmax.f32 %v3102, 0.0
      %v3135 = vmax.f32 %v3103, 0.0
      %v3136 = vmax.f32 %v3104, 0.0
      %v3137 = vmax.f32 %v3105, 0.0
      %v3138 = vmax.f32 %v3106, 0.0
      %v3139 = vmax.f32 %v3107, 0.0
      %v3140 = vmax.f32 %v3108, 0.0
      %v3141 = vmax.f32 %v3109, 0.0
      %v3142 = vmax.f32 %v3110, 0.0
      %v3143 = vmax.f32 %v3111, 0.0
      %v3144 = vpack.c.bf16 %v3112, %v3112
      %v3145 = vpack.c.bf16 %v3113, %v3113
      %v3146 = vpack.c.bf16 %v3114, %v3114
      %v3147 = vpack.c.bf16 %v3115, %v3115
      %v3148 = vpack.c.bf16 %v3116, %v3116
      %v3149 = vpack.c.bf16 %v3117, %v3117
      %v3150 = vpack.c.bf16 %v3118, %v3118
      %v3151 = vpack.c.bf16 %v3119, %v3119
      %v3152 = vpack.c.bf16 %v3120, %v3120
      %v3153 = vpack.c.bf16 %v3121, %v3121
      %v3154 = vpack.c.bf16 %v3122, %v3122
      %v3155 = vpack.c.bf16 %v3123, %v3123
      %v3156 = vpack.c.bf16 %v3124, %v3124
      %v3157 = vpack.c.bf16 %v3125, %v3125
      %v3158 = vpack.c.bf16 %v3126, %v3126
      %v3159 = vpack.c.bf16 %v3127, %v3127
      %v3160 = vpack.c.bf16 %v3128, %v3128
      %v3161 = vpack.c.bf16 %v3129, %v3129
      %v3162 = vpack.c.bf16 %v3130, %v3130
      %v3163 = vpack.c.bf16 %v3131, %v3131
      %v3164 = vpack.c.bf16 %v3132, %v3132
      %v3165 = vpack.c.bf16 %v3133, %v3133
      %v3166 = vpack.c.bf16 %v3134, %v3134
      %v3167 = vpack.c.bf16 %v3135, %v3135
      %v3168 = vpack.c.bf16 %v3136, %v3136
      %v3169 = vpack.c.bf16 %v3137, %v3137
      %v3170 = vpack.c.bf16 %v3138, %v3138
      %v3171 = vpack.c.bf16 %v3139, %v3139
      %v3172 = vpack.c.bf16 %v3140, %v3140
      %v3173 = vpack.c.bf16 %v3141, %v3141
      %v3174 = vpack.c.bf16 %v3142, %v3142
      %v3175 = vpack.c.bf16 %v3143, %v3143
      %s3176 = scalar_lea.vmem [#allocation3], 24
      %3177 = vst [vmem:[%s3176 + $0x8] sm:$0xf] %v3144
      %3178 = vst [vmem:[%s3176 + $0xc] sm:$0xf] %v3145
      %3179 = vst [vmem:[%s3176 + $0x20] sm:$0xf] %v3146
      %3180 = vst [vmem:[%s3176 + $0x24] sm:$0xf] %v3147
      %3181 = vst [vmem:[%s3176 + $0x38] sm:$0xf] %v3148
      %3182 = vst [vmem:[%s3176 + $0x3c] sm:$0xf] %v3149
      %3183 = vst [vmem:[%s3176 + $0x50] sm:$0xf] %v3150
      %3184 = vst [vmem:[%s3176 + $0x54] sm:$0xf] %v3151
      %3185 = vst [vmem:[%s3176 + $0x68] sm:$0xf] %v3152
      %3186 = vst [vmem:[%s3176 + $0x6c] sm:$0xf] %v3153
      %3187 = vst [vmem:[%s3176 + $0x80] sm:$0xf] %v3154
      %3188 = vst [vmem:[%s3176 + $0x84] sm:$0xf] %v3155
      %3189 = vst [vmem:[%s3176 + $0x98] sm:$0xf] %v3156
      %3190 = vst [vmem:[%s3176 + $0x9c] sm:$0xf] %v3157
      %3191 = vst [vmem:[%s3176 + $0xb0] sm:$0xf] %v3158
      %3192 = vst [vmem:[%s3176 + $0xb4] sm:$0xf] %v3159
      %3193 = vst [vmem:[%s3176 + $0xc8] sm:$0xf] %v3160
      %3194 = vst [vmem:[%s3176 + $0xcc] sm:$0xf] %v3161
      %3195 = vst [vmem:[%s3176 + $0xe0] sm:$0xf] %v3162
      %3196 = vst [vmem:[%s3176 + $0xe4] sm:$0xf] %v3163
      %3197 = vst [vmem:[%s3176 + $0xf8] sm:$0xf] %v3164
      %3198 = vst [vmem:[%s3176 + $0xfc] sm:$0xf] %v3165
      %3199 = vst [vmem:[%s3176 + $0x110] sm:$0xf] %v3166
      %3200 = vst [vmem:[%s3176 + $0x114] sm:$0xf] %v3167
      %3201 = vst [vmem:[%s3176 + $0x128] sm:$0xf] %v3168
      %3202 = vst [vmem:[%s3176 + $0x12c] sm:$0xf] %v3169
      %3203 = vst [vmem:[%s3176 + $0x140] sm:$0xf] %v3170
      %3204 = vst [vmem:[%s3176 + $0x144] sm:$0xf] %v3171
      %3205 = vst [vmem:[%s3176 + $0x158] sm:$0xf] %v3172
      %3206 = vst [vmem:[%s3176 + $0x15c] sm:$0xf] %v3173
      %3207 = vst [vmem:[%s3176 + $0x170] sm:$0xf] %v3174
      %3208 = vst [vmem:[%s3176 + $0x174] sm:$0xf] %v3175
      %s3209 = scalar_lea.vmem %s2, 1
      %v3210 = vld [vmem:[%s3209] sm:$0x1]
      %v3212 = vperm.slane %v3210, 0
      %v3214 = vld [vmem:[#allocation3 + $0x4] sm:$0x8]
      %v3215 = vld [vmem:[#allocation3 + $0x8] sm:$0xf]
      %v3216 = vld [vmem:[#allocation3 + $0xc] sm:$0xf]
      %v3217 = vld [vmem:[#allocation3 + $0x1c] sm:$0x8]
      %v3218 = vld [vmem:[#allocation3 + $0x20] sm:$0xf]
      %v3219 = vld [vmem:[#allocation3 + $0x24] sm:$0xf]
      %v3220 = vld [vmem:[#allocation3 + $0x34] sm:$0x8]
      %v3221 = vld [vmem:[#allocation3 + $0x38] sm:$0xf]
      %v3222 = vld [vmem:[#allocation3 + $0x3c] sm:$0xf]
      %v3223 = vld [vmem:[#allocation3 + $0x4c] sm:$0x8]
      %v3224 = vld [vmem:[#allocation3 + $0x50] sm:$0xf]
      %v3225 = vld [vmem:[#allocation3 + $0x54] sm:$0xf]
      %v3226 = vld [vmem:[#allocation3 + $0x64] sm:$0x8]
      %v3227 = vld [vmem:[#allocation3 + $0x68] sm:$0xf]
      %v3228 = vld [vmem:[#allocation3 + $0x6c] sm:$0xf]
      %v3229 = vld [vmem:[#allocation3 + $0x7c] sm:$0x8]
      %v3230 = vld [vmem:[#allocation3 + $0x80] sm:$0xf]
      %v3231 = vld [vmem:[#allocation3 + $0x84] sm:$0xf]
      %v3232 = vld [vmem:[#allocation3 + $0x94] sm:$0x8]
      %v3233 = vld [vmem:[#allocation3 + $0x98] sm:$0xf]
      %v3234 = vld [vmem:[#allocation3 + $0x9c] sm:$0xf]
      %v3235 = vld [vmem:[#allocation3 + $0xac] sm:$0x8]
      %v3236 = vld [vmem:[#allocation3 + $0xb0] sm:$0xf]
      %v3237 = vld [vmem:[#allocation3 + $0xb4] sm:$0xf]
      %v3238 = vld [vmem:[#allocation3 + $0xc4] sm:$0x8]
      %v3239 = vld [vmem:[#allocation3 + $0xc8] sm:$0xf]
      %v3240 = vld [vmem:[#allocation3 + $0xcc] sm:$0xf]
      %v3241 = vld [vmem:[#allocation3 + $0xdc] sm:$0x8]
      %v3242 = vld [vmem:[#allocation3 + $0xe0] sm:$0xf]
      %v3243 = vld [vmem:[#allocation3 + $0xe4] sm:$0xf]
      %v3244 = vld [vmem:[#allocation3 + $0xf4] sm:$0x8]
      %v3245 = vld [vmem:[#allocation3 + $0xf8] sm:$0xf]
      %v3246 = vld [vmem:[#allocation3 + $0xfc] sm:$0xf]
      %v3247 = vld [vmem:[#allocation3 + $0x10c] sm:$0x8]
      %v3248 = vld [vmem:[#allocation3 + $0x110] sm:$0xf]
      %v3249 = vld [vmem:[#allocation3 + $0x114] sm:$0xf]
      %v3250 = vld [vmem:[#allocation3 + $0x124] sm:$0x8]
      %v3251 = vld [vmem:[#allocation3 + $0x128] sm:$0xf]
      %v3252 = vld [vmem:[#allocation3 + $0x12c] sm:$0xf]
      %v3253 = vld [vmem:[#allocation3 + $0x13c] sm:$0x8]
      %v3254 = vld [vmem:[#allocation3 + $0x140] sm:$0xf]
      %v3255 = vld [vmem:[#allocation3 + $0x144] sm:$0xf]
      %v3256 = vld [vmem:[#allocation3 + $0x154] sm:$0x8]
      %v3257 = vld [vmem:[#allocation3 + $0x158] sm:$0xf]
      %v3258 = vld [vmem:[#allocation3 + $0x15c] sm:$0xf]
      %v3259 = vld [vmem:[#allocation3 + $0x16c] sm:$0x8]
      %v3260 = vld [vmem:[#allocation3 + $0x170] sm:$0xf]
      %v3261 = vld [vmem:[#allocation3 + $0x174] sm:$0xf]
      %v3262 = vld [vmem:[#allocation3 + $0x184] sm:$0x8]
      %v3263 = vld [vmem:[#allocation3 + $0x188] sm:$0xf]
      %v3264 = vld [vmem:[#allocation3 + $0x18c] sm:$0xf]
      %v3265 = vld [vmem:[#allocation3 + $0x19c] sm:$0x8]
      %v3266 = vld [vmem:[#allocation3 + $0x1a0] sm:$0xf]
      %v3267 = vld [vmem:[#allocation3 + $0x1a4] sm:$0xf]
      %v3269 = vshrl.u32 %v3214, 16
      %v3271 = vrot.slane %v3269, 7
      %v3272 = vrot.slane %v3271, 4
      %v3274 = vshrl.u32 %v3215, 16
      %v3276 = vrot.slane %v3274, 7
      %v3277 = vshll.u32 %v3215, 16
      %v3279 = vor.u32 %v3276, %v3277
      %v3280 = vsel %vm499, %v3272, %v3279
      %v3281 = vrot.slane %v3276, 4
      %v3283 = vshrl.u32 %v3216, 16
      %v3285 = vrot.slane %v3283, 7
      %v3286 = vshll.u32 %v3216, 16
      %v3288 = vor.u32 %v3285, %v3286
      %v3289 = vsel %vm499, %v3281, %v3288
      %v3291 = vshrl.u32 %v3217, 16
      %v3293 = vrot.slane %v3291, 7
      %v3294 = vrot.slane %v3293, 4
      %v3296 = vshrl.u32 %v3218, 16
      %v3298 = vrot.slane %v3296, 7
      %v3299 = vshll.u32 %v3218, 16
      %v3301 = vor.u32 %v3298, %v3299
      %v3302 = vsel %vm499, %v3294, %v3301
      %v3303 = vrot.slane %v3298, 4
      %v3305 = vshrl.u32 %v3219, 16
      %v3307 = vrot.slane %v3305, 7
      %v3308 = vshll.u32 %v3219, 16
      %v3310 = vor.u32 %v3307, %v3308
      %v3311 = vsel %vm499, %v3303, %v3310
      %v3313 = vshrl.u32 %v3220, 16
      %v3315 = vrot.slane %v3313, 7
      %v3316 = vrot.slane %v3315, 4
      %v3318 = vshrl.u32 %v3221, 16
      %v3320 = vrot.slane %v3318, 7
      %v3321 = vshll.u32 %v3221, 16
      %v3323 = vor.u32 %v3320, %v3321
      %v3324 = vsel %vm499, %v3316, %v3323
      %v3325 = vrot.slane %v3320, 4
      %v3327 = vshrl.u32 %v3222, 16
      %v3329 = vrot.slane %v3327, 7
      %v3330 = vshll.u32 %v3222, 16
      %v3332 = vor.u32 %v3329, %v3330
      %v3333 = vsel %vm499, %v3325, %v3332
      %v3335 = vshrl.u32 %v3223, 16
      %v3337 = vrot.slane %v3335, 7
      %v3338 = vrot.slane %v3337, 4
      %v3340 = vshrl.u32 %v3224, 16
      %v3342 = vrot.slane %v3340, 7
      %v3343 = vshll.u32 %v3224, 16
      %v3345 = vor.u32 %v3342, %v3343
      %v3346 = vsel %vm499, %v3338, %v3345
      %v3347 = vrot.slane %v3342, 4
      %v3349 = vshrl.u32 %v3225, 16
      %v3351 = vrot.slane %v3349, 7
      %v3352 = vshll.u32 %v3225, 16
      %v3354 = vor.u32 %v3351, %v3352
      %v3355 = vsel %vm499, %v3347, %v3354
      %v3357 = vshrl.u32 %v3226, 16
      %v3359 = vrot.slane %v3357, 7
      %v3360 = vrot.slane %v3359, 4
      %v3362 = vshrl.u32 %v3227, 16
      %v3364 = vrot.slane %v3362, 7
      %v3365 = vshll.u32 %v3227, 16
      %v3367 = vor.u32 %v3364, %v3365
      %v3368 = vsel %vm499, %v3360, %v3367
      %v3369 = vrot.slane %v3364, 4
      %v3371 = vshrl.u32 %v3228, 16
      %v3373 = vrot.slane %v3371, 7
      %v3374 = vshll.u32 %v3228, 16
      %v3376 = vor.u32 %v3373, %v3374
      %v3377 = vsel %vm499, %v3369, %v3376
      %v3379 = vshrl.u32 %v3229, 16
      %v3381 = vrot.slane %v3379, 7
      %v3382 = vrot.slane %v3381, 4
      %v3384 = vshrl.u32 %v3230, 16
      %v3386 = vrot.slane %v3384, 7
      %v3387 = vshll.u32 %v3230, 16
      %v3389 = vor.u32 %v3386, %v3387
      %v3390 = vsel %vm499, %v3382, %v3389
      %v3391 = vrot.slane %v3386, 4
      %v3393 = vshrl.u32 %v3231, 16
      %v3395 = vrot.slane %v3393, 7
      %v3396 = vshll.u32 %v3231, 16
      %v3398 = vor.u32 %v3395, %v3396
      %v3399 = vsel %vm499, %v3391, %v3398
      %v3401 = vshrl.u32 %v3232, 16
      %v3403 = vrot.slane %v3401, 7
      %v3404 = vrot.slane %v3403, 4
      %v3406 = vshrl.u32 %v3233, 16
      %v3408 = vrot.slane %v3406, 7
      %v3409 = vshll.u32 %v3233, 16
      %v3411 = vor.u32 %v3408, %v3409
      %v3412 = vsel %vm499, %v3404, %v3411
      %v3413 = vrot.slane %v3408, 4
      %v3415 = vshrl.u32 %v3234, 16
      %v3417 = vrot.slane %v3415, 7
      %v3418 = vshll.u32 %v3234, 16
      %v3420 = vor.u32 %v3417, %v3418
      %v3421 = vsel %vm499, %v3413, %v3420
      %v3423 = vshrl.u32 %v3235, 16
      %v3425 = vrot.slane %v3423, 7
      %v3426 = vrot.slane %v3425, 4
      %v3428 = vshrl.u32 %v3236, 16
      %v3430 = vrot.slane %v3428, 7
      %v3431 = vshll.u32 %v3236, 16
      %v3433 = vor.u32 %v3430, %v3431
      %v3434 = vsel %vm499, %v3426, %v3433
      %v3435 = vrot.slane %v3430, 4
      %v3437 = vshrl.u32 %v3237, 16
      %v3439 = vrot.slane %v3437, 7
      %v3440 = vshll.u32 %v3237, 16
      %v3442 = vor.u32 %v3439, %v3440
      %v3443 = vsel %vm499, %v3435, %v3442
      %v3445 = vshrl.u32 %v3238, 16
      %v3447 = vrot.slane %v3445, 7
      %v3448 = vrot.slane %v3447, 4
      %v3450 = vshrl.u32 %v3239, 16
      %v3452 = vrot.slane %v3450, 7
      %v3453 = vshll.u32 %v3239, 16
      %v3455 = vor.u32 %v3452, %v3453
      %v3456 = vsel %vm499, %v3448, %v3455
      %v3457 = vrot.slane %v3452, 4
      %v3459 = vshrl.u32 %v3240, 16
      %v3461 = vrot.slane %v3459, 7
      %v3462 = vshll.u32 %v3240, 16
      %v3464 = vor.u32 %v3461, %v3462
      %v3465 = vsel %vm499, %v3457, %v3464
      %v3467 = vshrl.u32 %v3241, 16
      %v3469 = vrot.slane %v3467, 7
      %v3470 = vrot.slane %v3469, 4
      %v3472 = vshrl.u32 %v3242, 16
      %v3474 = vrot.slane %v3472, 7
      %v3475 = vshll.u32 %v3242, 16
      %v3477 = vor.u32 %v3474, %v3475
      %v3478 = vsel %vm499, %v3470, %v3477
      %v3479 = vrot.slane %v3474, 4
      %v3481 = vshrl.u32 %v3243, 16
      %v3483 = vrot.slane %v3481, 7
      %v3484 = vshll.u32 %v3243, 16
      %v3486 = vor.u32 %v3483, %v3484
      %v3487 = vsel %vm499, %v3479, %v3486
      %v3489 = vshrl.u32 %v3244, 16
      %v3491 = vrot.slane %v3489, 7
      %v3492 = vrot.slane %v3491, 4
      %v3494 = vshrl.u32 %v3245, 16
      %v3496 = vrot.slane %v3494, 7
      %v3497 = vshll.u32 %v3245, 16
      %v3499 = vor.u32 %v3496, %v3497
      %v3500 = vsel %vm499, %v3492, %v3499
      %v3501 = vrot.slane %v3496, 4
      %v3503 = vshrl.u32 %v3246, 16
      %v3505 = vrot.slane %v3503, 7
      %v3506 = vshll.u32 %v3246, 16
      %v3508 = vor.u32 %v3505, %v3506
      %v3509 = vsel %vm499, %v3501, %v3508
      %v3511 = vshrl.u32 %v3247, 16
      %v3513 = vrot.slane %v3511, 7
      %v3514 = vrot.slane %v3513, 4
      %v3516 = vshrl.u32 %v3248, 16
      %v3518 = vrot.slane %v3516, 7
      %v3519 = vshll.u32 %v3248, 16
      %v3521 = vor.u32 %v3518, %v3519
      %v3522 = vsel %vm499, %v3514, %v3521
      %v3523 = vrot.slane %v3518, 4
      %v3525 = vshrl.u32 %v3249, 16
      %v3527 = vrot.slane %v3525, 7
      %v3528 = vshll.u32 %v3249, 16
      %v3530 = vor.u32 %v3527, %v3528
      %v3531 = vsel %vm499, %v3523, %v3530
      %v3533 = vshrl.u32 %v3250, 16
      %v3535 = vrot.slane %v3533, 7
      %v3536 = vrot.slane %v3535, 4
      %v3538 = vshrl.u32 %v3251, 16
      %v3540 = vrot.slane %v3538, 7
      %v3541 = vshll.u32 %v3251, 16
      %v3543 = vor.u32 %v3540, %v3541
      %v3544 = vsel %vm499, %v3536, %v3543
      %v3545 = vrot.slane %v3540, 4
      %v3547 = vshrl.u32 %v3252, 16
      %v3549 = vrot.slane %v3547, 7
      %v3550 = vshll.u32 %v3252, 16
      %v3552 = vor.u32 %v3549, %v3550
      %v3553 = vsel %vm499, %v3545, %v3552
      %v3555 = vshrl.u32 %v3253, 16
      %v3557 = vrot.slane %v3555, 7
      %v3558 = vrot.slane %v3557, 4
      %v3560 = vshrl.u32 %v3254, 16
      %v3562 = vrot.slane %v3560, 7
      %v3563 = vshll.u32 %v3254, 16
      %v3565 = vor.u32 %v3562, %v3563
      %v3566 = vsel %vm499, %v3558, %v3565
      %v3567 = vrot.slane %v3562, 4
      %v3569 = vshrl.u32 %v3255, 16
      %v3571 = vrot.slane %v3569, 7
      %v3572 = vshll.u32 %v3255, 16
      %v3574 = vor.u32 %v3571, %v3572
      %v3575 = vsel %vm499, %v3567, %v3574
      %v3577 = vshrl.u32 %v3256, 16
      %v3579 = vrot.slane %v3577, 7
      %v3580 = vrot.slane %v3579, 4
      %v3582 = vshrl.u32 %v3257, 16
      %v3584 = vrot.slane %v3582, 7
      %v3585 = vshll.u32 %v3257, 16
      %v3587 = vor.u32 %v3584, %v3585
      %v3588 = vsel %vm499, %v3580, %v3587
      %v3589 = vrot.slane %v3584, 4
      %v3591 = vshrl.u32 %v3258, 16
      %v3593 = vrot.slane %v3591, 7
      %v3594 = vshll.u32 %v3258, 16
      %v3596 = vor.u32 %v3593, %v3594
      %v3597 = vsel %vm499, %v3589, %v3596
      %v3599 = vshrl.u32 %v3259, 16
      %v3601 = vrot.slane %v3599, 7
      %v3602 = vrot.slane %v3601, 4
      %v3604 = vshrl.u32 %v3260, 16
      %v3606 = vrot.slane %v3604, 7
      %v3607 = vshll.u32 %v3260, 16
      %v3609 = vor.u32 %v3606, %v3607
      %v3610 = vsel %vm499, %v3602, %v3609
      %v3611 = vrot.slane %v3606, 4
      %v3613 = vshrl.u32 %v3261, 16
      %v3615 = vrot.slane %v3613, 7
      %v3616 = vshll.u32 %v3261, 16
      %v3618 = vor.u32 %v3615, %v3616
      %v3619 = vsel %vm499, %v3611, %v3618
      %v3621 = vshrl.u32 %v3262, 16
      %v3623 = vrot.slane %v3621, 7
      %v3624 = vrot.slane %v3623, 4
      %v3626 = vshrl.u32 %v3263, 16
      %v3628 = vrot.slane %v3626, 7
      %v3629 = vshll.u32 %v3263, 16
      %v3631 = vor.u32 %v3628, %v3629
      %v3632 = vsel %vm499, %v3624, %v3631
      %v3633 = vrot.slane %v3628, 4
      %v3635 = vshrl.u32 %v3264, 16
      %v3637 = vrot.slane %v3635, 7
      %v3638 = vshll.u32 %v3264, 16
      %v3640 = vor.u32 %v3637, %v3638
      %v3641 = vsel %vm499, %v3633, %v3640
      %v3643 = vshrl.u32 %v3265, 16
      %v3645 = vrot.slane %v3643, 7
      %v3646 = vrot.slane %v3645, 4
      %v3648 = vshrl.u32 %v3266, 16
      %v3650 = vrot.slane %v3648, 7
      %v3651 = vshll.u32 %v3266, 16
      %v3653 = vor.u32 %v3650, %v3651
      %v3654 = vsel %vm499, %v3646, %v3653
      %v3655 = vrot.slane %v3650, 4
      %v3657 = vshrl.u32 %v3267, 16
      %v3659 = vrot.slane %v3657, 7
      %v3660 = vshll.u32 %v3267, 16
      %v3662 = vor.u32 %v3659, %v3660
      %v3663 = vsel %vm499, %v3655, %v3662
      %v3664 = vunpack.c.l.b16 %v3280
      %v3665 = vunpack.c.l.b16 %v3289
      %v3666 = vunpack.c.l.b16 %v3302
      %v3667 = vunpack.c.l.b16 %v3311
      %v3668 = vunpack.c.l.b16 %v3324
      %v3669 = vunpack.c.l.b16 %v3333
      %v3670 = vunpack.c.l.b16 %v3346
      %v3671 = vunpack.c.l.b16 %v3355
      %v3672 = vunpack.c.l.b16 %v3368
      %v3673 = vunpack.c.l.b16 %v3377
      %v3674 = vunpack.c.l.b16 %v3390
      %v3675 = vunpack.c.l.b16 %v3399
      %v3676 = vunpack.c.l.b16 %v3412
      %v3677 = vunpack.c.l.b16 %v3421
      %v3678 = vunpack.c.l.b16 %v3434
      %v3679 = vunpack.c.l.b16 %v3443
      %v3680 = vunpack.c.l.b16 %v3456
      %v3681 = vunpack.c.l.b16 %v3465
      %v3682 = vunpack.c.l.b16 %v3478
      %v3683 = vunpack.c.l.b16 %v3487
      %v3684 = vunpack.c.l.b16 %v3500
      %v3685 = vunpack.c.l.b16 %v3509
      %v3686 = vunpack.c.l.b16 %v3522
      %v3687 = vunpack.c.l.b16 %v3531
      %v3688 = vunpack.c.l.b16 %v3544
      %v3689 = vunpack.c.l.b16 %v3553
      %v3690 = vunpack.c.l.b16 %v3566
      %v3691 = vunpack.c.l.b16 %v3575
      %v3692 = vunpack.c.l.b16 %v3588
      %v3693 = vunpack.c.l.b16 %v3597
      %v3694 = vunpack.c.l.b16 %v3610
      %v3695 = vunpack.c.l.b16 %v3619
      %v3696 = vpack.c.b16 %v3665, %v3664
      %v3697 = vpack.c.b16 %v3667, %v3666
      %v3698 = vpack.c.b16 %v3669, %v3668
      %v3699 = vpack.c.b16 %v3671, %v3670
      %v3700 = vpack.c.b16 %v3673, %v3672
      %v3701 = vpack.c.b16 %v3675, %v3674
      %v3702 = vpack.c.b16 %v3677, %v3676
      %v3703 = vpack.c.b16 %v3679, %v3678
      %v3704 = vpack.c.b16 %v3681, %v3680
      %v3705 = vpack.c.b16 %v3683, %v3682
      %v3706 = vpack.c.b16 %v3685, %v3684
      %v3707 = vpack.c.b16 %v3687, %v3686
      %v3708 = vpack.c.b16 %v3689, %v3688
      %v3709 = vpack.c.b16 %v3691, %v3690
      %v3710 = vpack.c.b16 %v3693, %v3692
      %v3711 = vpack.c.b16 %v3695, %v3694
      %v3728 = vunpack.c.l.b16 %v3632
      %v3729 = vunpack.c.l.b16 %v3641
      %v3730 = vpack.c.b16 %v3729, %v3728
      %v3732 = vunpack.c.l.b16 %v3654
      %v3733 = vunpack.c.l.b16 %v3663
      %v3734 = vpack.c.b16 %v3733, %v3732
      %s3736 = scalar_lea.vmem %s1, 576
      %v3737 = vld [vmem:[%s3736] sm:$0xf]
      %v3738 = vld [vmem:[%s3736 + $0x4] sm:$0xf]
      %v3739 = vld [vmem:[%s3736 + $0x8] sm:$0xf]
      %v3740 = vld [vmem:[%s3736 + $0xc] sm:$0xf]
      %v3741 = vld [vmem:[%s3736 + $0x10] sm:$0xf]
      %v3742 = vld [vmem:[%s3736 + $0x14] sm:$0xf]
      %v3743 = vld [vmem:[%s3736 + $0x18] sm:$0xf]
      %v3744 = vld [vmem:[%s3736 + $0x1c] sm:$0xf]
      %v3745 = vld [vmem:[%s3736 + $0x20] sm:$0xf]
      %v3746 = vld [vmem:[%s3736 + $0x24] sm:$0xf]
      %v3747 = vld [vmem:[%s3736 + $0x28] sm:$0xf]
      %v3748 = vld [vmem:[%s3736 + $0x2c] sm:$0xf]
      %v3749 = vld [vmem:[%s3736 + $0x30] sm:$0xf]
      %v3750 = vld [vmem:[%s3736 + $0x34] sm:$0xf]
      %v3751 = vld [vmem:[%s3736 + $0x38] sm:$0xf]
      %v3752 = vld [vmem:[%s3736 + $0x3c] sm:$0xf]
      %v3753 = vld [vmem:[%s3736 + $0x40] sm:$0xf]
      %v3754 = vld [vmem:[%s3736 + $0x44] sm:$0xf]
      %v3755 = vld [vmem:[%s3736 + $0x48] sm:$0xf]
      %v3756 = vld [vmem:[%s3736 + $0x4c] sm:$0xf]
      %v3757 = vld [vmem:[%s3736 + $0x50] sm:$0xf]
      %v3758 = vld [vmem:[%s3736 + $0x54] sm:$0xf]
      %v3759 = vld [vmem:[%s3736 + $0x58] sm:$0xf]
      %v3760 = vld [vmem:[%s3736 + $0x5c] sm:$0xf]
      %v3761 = vld [vmem:[%s3736 + $0x60] sm:$0xf]
      %v3762 = vld [vmem:[%s3736 + $0x64] sm:$0xf]
      %v3763 = vld [vmem:[%s3736 + $0x68] sm:$0xf]
      %v3764 = vld [vmem:[%s3736 + $0x6c] sm:$0xf]
      %v3765 = vld [vmem:[%s3736 + $0x70] sm:$0xf]
      %v3766 = vld [vmem:[%s3736 + $0x74] sm:$0xf]
      %v3767 = vld [vmem:[%s3736 + $0x78] sm:$0xf]
      %v3768 = vld [vmem:[%s3736 + $0x7c] sm:$0xf]
      %v3769 = vld [vmem:[%s3736 + $0x80] sm:$0xf]
      %v3770 = vld [vmem:[%s3736 + $0x84] sm:$0xf]
      %v3771 = vld [vmem:[%s3736 + $0x88] sm:$0xf]
      %v3772 = vld [vmem:[%s3736 + $0x8c] sm:$0xf]
      %v3773 = vld [vmem:[%s3736 + $0x90] sm:$0xf]
      %v3774 = vld [vmem:[%s3736 + $0x94] sm:$0xf]
      %v3775 = vld [vmem:[%s3736 + $0x98] sm:$0xf]
      %v3776 = vld [vmem:[%s3736 + $0x9c] sm:$0xf]
      %v3777 = vld [vmem:[%s3736 + $0xa0] sm:$0xf]
      %v3778 = vld [vmem:[%s3736 + $0xa4] sm:$0xf]
      %v3779 = vld [vmem:[%s3736 + $0xa8] sm:$0xf]
      %v3780 = vld [vmem:[%s3736 + $0xac] sm:$0xf]
      %v3781 = vld [vmem:[%s3736 + $0xb0] sm:$0xf]
      %v3782 = vld [vmem:[%s3736 + $0xb4] sm:$0xf]
      %v3783 = vld [vmem:[%s3736 + $0xb8] sm:$0xf]
      %v3784 = vld [vmem:[%s3736 + $0xbc] sm:$0xf]
      %v3833 = vunpack.c.l.b16 %v3737
      %v3834 = vunpack.c.l.b16 %v3738
      %v3835 = vunpack.c.l.b16 %v3739
      %v3836 = vunpack.c.l.b16 %v3740
      %v3837 = vunpack.c.l.b16 %v3741
      %v3838 = vunpack.c.l.b16 %v3742
      %v3839 = vunpack.c.l.b16 %v3743
      %v3840 = vunpack.c.l.b16 %v3744
      %v3841 = vunpack.c.l.b16 %v3745
      %v3842 = vunpack.c.l.b16 %v3746
      %v3843 = vunpack.c.l.b16 %v3747
      %v3844 = vunpack.c.l.b16 %v3748
      %v3845 = vunpack.c.l.b16 %v3749
      %v3846 = vunpack.c.l.b16 %v3750
      %v3847 = vunpack.c.l.b16 %v3751
      %v3848 = vunpack.c.l.b16 %v3752
      %v3849 = vunpack.c.l.b16 %v3753
      %v3850 = vunpack.c.l.b16 %v3754
      %v3851 = vunpack.c.l.b16 %v3755
      %v3852 = vunpack.c.l.b16 %v3756
      %v3853 = vunpack.c.l.b16 %v3757
      %v3854 = vunpack.c.l.b16 %v3758
      %v3855 = vunpack.c.l.b16 %v3759
      %v3856 = vunpack.c.l.b16 %v3760
      %v3857 = vunpack.c.l.b16 %v3761
      %v3858 = vunpack.c.l.b16 %v3762
      %v3859 = vunpack.c.l.b16 %v3763
      %v3860 = vunpack.c.l.b16 %v3764
      %v3861 = vunpack.c.l.b16 %v3765
      %v3862 = vunpack.c.l.b16 %v3766
      %v3863 = vunpack.c.l.b16 %v3767
      %v3864 = vunpack.c.l.b16 %v3768
      %v3865 = vunpack.c.l.b16 %v3769
      %v3866 = vunpack.c.l.b16 %v3770
      %v3867 = vunpack.c.l.b16 %v3771
      %v3868 = vunpack.c.l.b16 %v3772
      %v3869 = vunpack.c.l.b16 %v3773
      %v3870 = vunpack.c.l.b16 %v3774
      %v3871 = vunpack.c.l.b16 %v3775
      %v3872 = vunpack.c.l.b16 %v3776
      %v3873 = vunpack.c.l.b16 %v3777
      %v3874 = vunpack.c.l.b16 %v3778
      %v3875 = vunpack.c.l.b16 %v3779
      %v3876 = vunpack.c.l.b16 %v3780
      %v3877 = vunpack.c.l.b16 %v3781
      %v3878 = vunpack.c.l.b16 %v3782
      %v3879 = vunpack.c.l.b16 %v3783
      %v3880 = vunpack.c.l.b16 %v3784
      %v3881 = vpack.c.b16 %v3834, %v3833
      %v3882 = vpack.c.b16 %v3836, %v3835
      %v3883 = vpack.c.b16 %v3838, %v3837
      %v3884 = vpack.c.b16 %v3840, %v3839
      %v3885 = vpack.c.b16 %v3842, %v3841
      %v3886 = vpack.c.b16 %v3844, %v3843
      %v3887 = vpack.c.b16 %v3846, %v3845
      %v3888 = vpack.c.b16 %v3848, %v3847
      %v3889 = vpack.c.b16 %v3850, %v3849
      %v3890 = vpack.c.b16 %v3852, %v3851
      %v3891 = vpack.c.b16 %v3854, %v3853
      %v3892 = vpack.c.b16 %v3856, %v3855
      %v3893 = vpack.c.b16 %v3858, %v3857
      %v3894 = vpack.c.b16 %v3860, %v3859
      %v3895 = vpack.c.b16 %v3862, %v3861
      %v3896 = vpack.c.b16 %v3864, %v3863
      %v3897 = vpack.c.b16 %v3866, %v3865
      %v3898 = vpack.c.b16 %v3868, %v3867
      %v3899 = vpack.c.b16 %v3870, %v3869
      %v3900 = vpack.c.b16 %v3872, %v3871
      %v3901 = vpack.c.b16 %v3874, %v3873
      %v3902 = vpack.c.b16 %v3876, %v3875
      %v3903 = vpack.c.b16 %v3878, %v3877
      %v3904 = vpack.c.b16 %v3880, %v3879
      %3929 = vmatpush.bf16.msra.mxu0 %v3888
      %3930 = vmatpush.bf16.msra.mxu0 %v3887
      %3931 = vmatpush.bf16.msra.mxu0 %v3886
      %3932 = vmatpush.bf16.msra.mxu0 %v3885
      %3933 = vmatpush.bf16.msra.mxu0 %v3884
      %3934 = vmatpush.bf16.msra.mxu0 %v3883
      %3935 = vmatpush.bf16.msra.mxu0 %v3882
      %3936 = vmatpush.bf16.msra.mxu0 %v3881
      %3937 = vmatmul.bf16.gmra.mxu0 %v3696
      %v3938 = vpop.f32.mrf.mxu0
      %v3939 = vadd.f32 0.0, %v3938
      %v3940 = vpop.f32.mrf.mxu0
      %v3941 = vadd.f32 0.0, %v3940
      %3942 = vmatmul.bf16.gmra.mxu0 %v3697
      %v3943 = vpop.f32.mrf.mxu0
      %v3944 = vadd.f32 0.0, %v3943
      %v3945 = vpop.f32.mrf.mxu0
      %v3946 = vadd.f32 0.0, %v3945
      %3947 = vmatmul.bf16.gmra.mxu0 %v3698
      %v3948 = vpop.f32.mrf.mxu0
      %v3949 = vadd.f32 0.0, %v3948
      %v3950 = vpop.f32.mrf.mxu0
      %v3951 = vadd.f32 0.0, %v3950
      %3952 = vmatmul.bf16.gmra.mxu0 %v3699
      %v3953 = vpop.f32.mrf.mxu0
      %v3954 = vadd.f32 0.0, %v3953
      %v3955 = vpop.f32.mrf.mxu0
      %v3956 = vadd.f32 0.0, %v3955
      %3957 = vmatmul.bf16.gmra.mxu0 %v3700
      %v3958 = vpop.f32.mrf.mxu0
      %v3959 = vadd.f32 0.0, %v3958
      %v3960 = vpop.f32.mrf.mxu0
      %v3961 = vadd.f32 0.0, %v3960
      %3962 = vmatmul.bf16.gmra.mxu0 %v3701
      %v3963 = vpop.f32.mrf.mxu0
      %v3964 = vadd.f32 0.0, %v3963
      %v3965 = vpop.f32.mrf.mxu0
      %v3966 = vadd.f32 0.0, %v3965
      %3967 = vmatmul.bf16.gmra.mxu0 %v3702
      %v3968 = vpop.f32.mrf.mxu0
      %v3969 = vadd.f32 0.0, %v3968
      %v3970 = vpop.f32.mrf.mxu0
      %v3971 = vadd.f32 0.0, %v3970
      %3972 = vmatmul.bf16.gmra.mxu0 %v3703
      %v3973 = vpop.f32.mrf.mxu0
      %v3974 = vadd.f32 0.0, %v3973
      %v3975 = vpop.f32.mrf.mxu0
      %v3976 = vadd.f32 0.0, %v3975
      %3977 = vmatmul.bf16.gmra.mxu0 %v3704
      %v3978 = vpop.f32.mrf.mxu0
      %v3979 = vadd.f32 0.0, %v3978
      %v3980 = vpop.f32.mrf.mxu0
      %v3981 = vadd.f32 0.0, %v3980
      %3982 = vmatmul.bf16.gmra.mxu0 %v3705
      %v3983 = vpop.f32.mrf.mxu0
      %v3984 = vadd.f32 0.0, %v3983
      %v3985 = vpop.f32.mrf.mxu0
      %v3986 = vadd.f32 0.0, %v3985
      %3987 = vmatmul.bf16.gmra.mxu0 %v3706
      %v3988 = vpop.f32.mrf.mxu0
      %v3989 = vadd.f32 0.0, %v3988
      %v3990 = vpop.f32.mrf.mxu0
      %v3991 = vadd.f32 0.0, %v3990
      %3992 = vmatmul.bf16.gmra.mxu0 %v3707
      %v3993 = vpop.f32.mrf.mxu0
      %v3994 = vadd.f32 0.0, %v3993
      %v3995 = vpop.f32.mrf.mxu0
      %v3996 = vadd.f32 0.0, %v3995
      %3997 = vmatmul.bf16.gmra.mxu0 %v3708
      %v3998 = vpop.f32.mrf.mxu0
      %v3999 = vadd.f32 0.0, %v3998
      %v4000 = vpop.f32.mrf.mxu0
      %v4001 = vadd.f32 0.0, %v4000
      %4002 = vmatmul.bf16.gmra.mxu0 %v3709
      %v4003 = vpop.f32.mrf.mxu0
      %v4004 = vadd.f32 0.0, %v4003
      %v4005 = vpop.f32.mrf.mxu0
      %v4006 = vadd.f32 0.0, %v4005
      %4007 = vmatmul.bf16.gmra.mxu0 %v3710
      %v4008 = vpop.f32.mrf.mxu0
      %v4009 = vadd.f32 0.0, %v4008
      %v4010 = vpop.f32.mrf.mxu0
      %v4011 = vadd.f32 0.0, %v4010
      %4012 = vmatmul.bf16.gmra.mxu0 %v3711
      %v4013 = vpop.f32.mrf.mxu0
      %v4014 = vadd.f32 0.0, %v4013
      %v4015 = vpop.f32.mrf.mxu0
      %v4016 = vadd.f32 0.0, %v4015
      %4017 = vdwg.mxu0
      %4018 = vmatpush.bf16.msra.mxu0 %v3896
      %4019 = vmatpush.bf16.msra.mxu0 %v3895
      %4020 = vmatpush.bf16.msra.mxu0 %v3894
      %4021 = vmatpush.bf16.msra.mxu0 %v3893
      %4022 = vmatpush.bf16.msra.mxu0 %v3892
      %4023 = vmatpush.bf16.msra.mxu0 %v3891
      %4024 = vmatpush.bf16.msra.mxu0 %v3890
      %4025 = vmatpush.bf16.msra.mxu0 %v3889
      %4026 = vmatmul.bf16.gmra.mxu0 %v3697
      %v4027 = vpop.f32.mrf.mxu0
      %v4028 = vadd.f32 %v3939, %v4027
      %v4029 = vpop.f32.mrf.mxu0
      %v4030 = vadd.f32 %v3941, %v4029
      %4031 = vmatmul.bf16.gmra.mxu0 %v3698
      %v4032 = vpop.f32.mrf.mxu0
      %v4033 = vadd.f32 %v3944, %v4032
      %v4034 = vpop.f32.mrf.mxu0
      %v4035 = vadd.f32 %v3946, %v4034
      %4036 = vmatmul.bf16.gmra.mxu0 %v3699
      %v4037 = vpop.f32.mrf.mxu0
      %v4038 = vadd.f32 %v3949, %v4037
      %v4039 = vpop.f32.mrf.mxu0
      %v4040 = vadd.f32 %v3951, %v4039
      %4041 = vmatmul.bf16.gmra.mxu0 %v3700
      %v4042 = vpop.f32.mrf.mxu0
      %v4043 = vadd.f32 %v3954, %v4042
      %v4044 = vpop.f32.mrf.mxu0
      %v4045 = vadd.f32 %v3956, %v4044
      %4046 = vmatmul.bf16.gmra.mxu0 %v3701
      %v4047 = vpop.f32.mrf.mxu0
      %v4048 = vadd.f32 %v3959, %v4047
      %v4049 = vpop.f32.mrf.mxu0
      %v4050 = vadd.f32 %v3961, %v4049
      %4051 = vmatmul.bf16.gmra.mxu0 %v3702
      %v4052 = vpop.f32.mrf.mxu0
      %v4053 = vadd.f32 %v3964, %v4052
      %v4054 = vpop.f32.mrf.mxu0
      %v4055 = vadd.f32 %v3966, %v4054
      %4056 = vmatmul.bf16.gmra.mxu0 %v3703
      %v4057 = vpop.f32.mrf.mxu0
      %v4058 = vadd.f32 %v3969, %v4057
      %v4059 = vpop.f32.mrf.mxu0
      %v4060 = vadd.f32 %v3971, %v4059
      %4061 = vmatmul.bf16.gmra.mxu0 %v3704
      %v4062 = vpop.f32.mrf.mxu0
      %v4063 = vadd.f32 %v3974, %v4062
      %v4064 = vpop.f32.mrf.mxu0
      %v4065 = vadd.f32 %v3976, %v4064
      %4066 = vmatmul.bf16.gmra.mxu0 %v3705
      %v4067 = vpop.f32.mrf.mxu0
      %v4068 = vadd.f32 %v3979, %v4067
      %v4069 = vpop.f32.mrf.mxu0
      %v4070 = vadd.f32 %v3981, %v4069
      %4071 = vmatmul.bf16.gmra.mxu0 %v3706
      %v4072 = vpop.f32.mrf.mxu0
      %v4073 = vadd.f32 %v3984, %v4072
      %v4074 = vpop.f32.mrf.mxu0
      %v4075 = vadd.f32 %v3986, %v4074
      %4076 = vmatmul.bf16.gmra.mxu0 %v3707
      %v4077 = vpop.f32.mrf.mxu0
      %v4078 = vadd.f32 %v3989, %v4077
      %v4079 = vpop.f32.mrf.mxu0
      %v4080 = vadd.f32 %v3991, %v4079
      %4081 = vmatmul.bf16.gmra.mxu0 %v3708
      %v4082 = vpop.f32.mrf.mxu0
      %v4083 = vadd.f32 %v3994, %v4082
      %v4084 = vpop.f32.mrf.mxu0
      %v4085 = vadd.f32 %v3996, %v4084
      %4086 = vmatmul.bf16.gmra.mxu0 %v3709
      %v4087 = vpop.f32.mrf.mxu0
      %v4088 = vadd.f32 %v3999, %v4087
      %v4089 = vpop.f32.mrf.mxu0
      %v4090 = vadd.f32 %v4001, %v4089
      %4091 = vmatmul.bf16.gmra.mxu0 %v3710
      %v4092 = vpop.f32.mrf.mxu0
      %v4093 = vadd.f32 %v4004, %v4092
      %v4094 = vpop.f32.mrf.mxu0
      %v4095 = vadd.f32 %v4006, %v4094
      %4096 = vmatmul.bf16.gmra.mxu0 %v3711
      %v4097 = vpop.f32.mrf.mxu0
      %v4098 = vadd.f32 %v4009, %v4097
      %v4099 = vpop.f32.mrf.mxu0
      %v4100 = vadd.f32 %v4011, %v4099
      %4101 = vmatmul.bf16.gmra.mxu0 %v3730
      %v4102 = vpop.f32.mrf.mxu0
      %v4103 = vadd.f32 %v4014, %v4102
      %v4104 = vpop.f32.mrf.mxu0
      %v4105 = vadd.f32 %v4016, %v4104
      %4106 = vdwg.mxu0
      %4107 = vmatpush.bf16.msra.mxu0 %v3904
      %4108 = vmatpush.bf16.msra.mxu0 %v3903
      %4109 = vmatpush.bf16.msra.mxu0 %v3902
      %4110 = vmatpush.bf16.msra.mxu0 %v3901
      %4111 = vmatpush.bf16.msra.mxu0 %v3900
      %4112 = vmatpush.bf16.msra.mxu0 %v3899
      %4113 = vmatpush.bf16.msra.mxu0 %v3898
      %4114 = vmatpush.bf16.msra.mxu0 %v3897
      %4115 = vmatmul.bf16.gmra.mxu0 %v3698
      %v4116 = vpop.f32.mrf.mxu0
      %v4117 = vadd.f32 %v4028, %v4116
      %v4118 = vpop.f32.mrf.mxu0
      %v4119 = vadd.f32 %v4030, %v4118
      %4120 = vmatmul.bf16.gmra.mxu0 %v3699
      %v4121 = vpop.f32.mrf.mxu0
      %v4122 = vadd.f32 %v4033, %v4121
      %v4123 = vpop.f32.mrf.mxu0
      %v4124 = vadd.f32 %v4035, %v4123
      %4125 = vmatmul.bf16.gmra.mxu0 %v3700
      %v4126 = vpop.f32.mrf.mxu0
      %v4127 = vadd.f32 %v4038, %v4126
      %v4128 = vpop.f32.mrf.mxu0
      %v4129 = vadd.f32 %v4040, %v4128
      %4130 = vmatmul.bf16.gmra.mxu0 %v3701
      %v4131 = vpop.f32.mrf.mxu0
      %v4132 = vadd.f32 %v4043, %v4131
      %v4133 = vpop.f32.mrf.mxu0
      %v4134 = vadd.f32 %v4045, %v4133
      %4135 = vmatmul.bf16.gmra.mxu0 %v3702
      %v4136 = vpop.f32.mrf.mxu0
      %v4137 = vadd.f32 %v4048, %v4136
      %v4138 = vpop.f32.mrf.mxu0
      %v4139 = vadd.f32 %v4050, %v4138
      %4140 = vmatmul.bf16.gmra.mxu0 %v3703
      %v4141 = vpop.f32.mrf.mxu0
      %v4142 = vadd.f32 %v4053, %v4141
      %v4143 = vpop.f32.mrf.mxu0
      %v4144 = vadd.f32 %v4055, %v4143
      %4145 = vmatmul.bf16.gmra.mxu0 %v3704
      %v4146 = vpop.f32.mrf.mxu0
      %v4147 = vadd.f32 %v4058, %v4146
      %v4148 = vpop.f32.mrf.mxu0
      %v4149 = vadd.f32 %v4060, %v4148
      %4150 = vmatmul.bf16.gmra.mxu0 %v3705
      %v4151 = vpop.f32.mrf.mxu0
      %v4152 = vadd.f32 %v4063, %v4151
      %v4153 = vpop.f32.mrf.mxu0
      %v4154 = vadd.f32 %v4065, %v4153
      %4155 = vmatmul.bf16.gmra.mxu0 %v3706
      %v4156 = vpop.f32.mrf.mxu0
      %v4157 = vadd.f32 %v4068, %v4156
      %v4158 = vpop.f32.mrf.mxu0
      %v4159 = vadd.f32 %v4070, %v4158
      %4160 = vmatmul.bf16.gmra.mxu0 %v3707
      %v4161 = vpop.f32.mrf.mxu0
      %v4162 = vadd.f32 %v4073, %v4161
      %v4163 = vpop.f32.mrf.mxu0
      %v4164 = vadd.f32 %v4075, %v4163
      %4165 = vmatmul.bf16.gmra.mxu0 %v3708
      %v4166 = vpop.f32.mrf.mxu0
      %v4167 = vadd.f32 %v4078, %v4166
      %v4168 = vpop.f32.mrf.mxu0
      %v4169 = vadd.f32 %v4080, %v4168
      %4170 = vmatmul.bf16.gmra.mxu0 %v3709
      %v4171 = vpop.f32.mrf.mxu0
      %v4172 = vadd.f32 %v4083, %v4171
      %v4173 = vpop.f32.mrf.mxu0
      %v4174 = vadd.f32 %v4085, %v4173
      %4175 = vmatmul.bf16.gmra.mxu0 %v3710
      %v4176 = vpop.f32.mrf.mxu0
      %v4177 = vadd.f32 %v4088, %v4176
      %v4178 = vpop.f32.mrf.mxu0
      %v4179 = vadd.f32 %v4090, %v4178
      %4180 = vmatmul.bf16.gmra.mxu0 %v3711
      %v4181 = vpop.f32.mrf.mxu0
      %v4182 = vadd.f32 %v4093, %v4181
      %v4183 = vpop.f32.mrf.mxu0
      %v4184 = vadd.f32 %v4095, %v4183
      %4185 = vmatmul.bf16.gmra.mxu0 %v3730
      %v4186 = vpop.f32.mrf.mxu0
      %v4187 = vadd.f32 %v4098, %v4186
      %v4188 = vpop.f32.mrf.mxu0
      %v4189 = vadd.f32 %v4100, %v4188
      %4190 = vmatmul.bf16.gmra.mxu0 %v3734
      %v4191 = vpop.f32.mrf.mxu0
      %v4192 = vadd.f32 %v4103, %v4191
      %v4193 = vpop.f32.mrf.mxu0
      %v4194 = vadd.f32 %v4105, %v4193
      %4195 = vdwg.mxu0
      %v4196 = vadd.f32 %v3212, %v4117
      %v4197 = vadd.f32 %v3212, %v4119
      %v4198 = vadd.f32 %v3212, %v4122
      %v4199 = vadd.f32 %v3212, %v4124
      %v4200 = vadd.f32 %v3212, %v4127
      %v4201 = vadd.f32 %v3212, %v4129
      %v4202 = vadd.f32 %v3212, %v4132
      %v4203 = vadd.f32 %v3212, %v4134
      %v4204 = vadd.f32 %v3212, %v4137
      %v4205 = vadd.f32 %v3212, %v4139
      %v4206 = vadd.f32 %v3212, %v4142
      %v4207 = vadd.f32 %v3212, %v4144
      %v4208 = vadd.f32 %v3212, %v4147
      %v4209 = vadd.f32 %v3212, %v4149
      %v4210 = vadd.f32 %v3212, %v4152
      %v4211 = vadd.f32 %v3212, %v4154
      %v4212 = vadd.f32 %v3212, %v4157
      %v4213 = vadd.f32 %v3212, %v4159
      %v4214 = vadd.f32 %v3212, %v4162
      %v4215 = vadd.f32 %v3212, %v4164
      %v4216 = vadd.f32 %v3212, %v4167
      %v4217 = vadd.f32 %v3212, %v4169
      %v4218 = vadd.f32 %v3212, %v4172
      %v4219 = vadd.f32 %v3212, %v4174
      %v4220 = vadd.f32 %v3212, %v4177
      %v4221 = vadd.f32 %v3212, %v4179
      %v4222 = vadd.f32 %v3212, %v4182
      %v4223 = vadd.f32 %v3212, %v4184
      %v4224 = vadd.f32 %v3212, %v4187
      %v4225 = vadd.f32 %v3212, %v4189
      %v4226 = vadd.f32 %v3212, %v4192
      %v4227 = vadd.f32 %v3212, %v4194
      %v4260 = vunpack.c.l.b16 %v3215
      %v4261 = vunpack.c.l.b16 %v3216
      %v4262 = vunpack.c.l.b16 %v3218
      %v4263 = vunpack.c.l.b16 %v3219
      %v4264 = vunpack.c.l.b16 %v3221
      %v4265 = vunpack.c.l.b16 %v3222
      %v4266 = vunpack.c.l.b16 %v3224
      %v4267 = vunpack.c.l.b16 %v3225
      %v4268 = vunpack.c.l.b16 %v3227
      %v4269 = vunpack.c.l.b16 %v3228
      %v4270 = vunpack.c.l.b16 %v3230
      %v4271 = vunpack.c.l.b16 %v3231
      %v4272 = vunpack.c.l.b16 %v3233
      %v4273 = vunpack.c.l.b16 %v3234
      %v4274 = vunpack.c.l.b16 %v3236
      %v4275 = vunpack.c.l.b16 %v3237
      %v4276 = vunpack.c.l.b16 %v3239
      %v4277 = vunpack.c.l.b16 %v3240
      %v4278 = vunpack.c.l.b16 %v3242
      %v4279 = vunpack.c.l.b16 %v3243
      %v4280 = vunpack.c.l.b16 %v3245
      %v4281 = vunpack.c.l.b16 %v3246
      %v4282 = vunpack.c.l.b16 %v3248
      %v4283 = vunpack.c.l.b16 %v3249
      %v4284 = vunpack.c.l.b16 %v3251
      %v4285 = vunpack.c.l.b16 %v3252
      %v4286 = vunpack.c.l.b16 %v3254
      %v4287 = vunpack.c.l.b16 %v3255
      %v4288 = vunpack.c.l.b16 %v3257
      %v4289 = vunpack.c.l.b16 %v3258
      %v4290 = vunpack.c.l.b16 %v3260
      %v4291 = vunpack.c.l.b16 %v3261
      %v4292 = vpack.c.b16 %v4261, %v4260
      %v4293 = vpack.c.b16 %v4263, %v4262
      %v4294 = vpack.c.b16 %v4265, %v4264
      %v4295 = vpack.c.b16 %v4267, %v4266
      %v4296 = vpack.c.b16 %v4269, %v4268
      %v4297 = vpack.c.b16 %v4271, %v4270
      %v4298 = vpack.c.b16 %v4273, %v4272
      %v4299 = vpack.c.b16 %v4275, %v4274
      %v4300 = vpack.c.b16 %v4277, %v4276
      %v4301 = vpack.c.b16 %v4279, %v4278
      %v4302 = vpack.c.b16 %v4281, %v4280
      %v4303 = vpack.c.b16 %v4283, %v4282
      %v4304 = vpack.c.b16 %v4285, %v4284
      %v4305 = vpack.c.b16 %v4287, %v4286
      %v4306 = vpack.c.b16 %v4289, %v4288
      %v4307 = vpack.c.b16 %v4291, %v4290
      %v4326 = vunpack.c.l.b16 %v3263
      %v4327 = vunpack.c.l.b16 %v3264
      %v4328 = vpack.c.b16 %v4327, %v4326
      %v4332 = vunpack.c.l.b16 %v3266
      %v4333 = vunpack.c.l.b16 %v3267
      %v4334 = vpack.c.b16 %v4333, %v4332
      %s4336 = scalar_lea.vmem %s1, 768
      %v4337 = vld [vmem:[%s4336] sm:$0xf]
      %v4338 = vld [vmem:[%s4336 + $0x4] sm:$0xf]
      %v4339 = vld [vmem:[%s4336 + $0x8] sm:$0xf]
      %v4340 = vld [vmem:[%s4336 + $0xc] sm:$0xf]
      %v4341 = vld [vmem:[%s4336 + $0x10] sm:$0xf]
      %v4342 = vld [vmem:[%s4336 + $0x14] sm:$0xf]
      %v4343 = vld [vmem:[%s4336 + $0x18] sm:$0xf]
      %v4344 = vld [vmem:[%s4336 + $0x1c] sm:$0xf]
      %v4345 = vld [vmem:[%s4336 + $0x20] sm:$0xf]
      %v4346 = vld [vmem:[%s4336 + $0x24] sm:$0xf]
      %v4347 = vld [vmem:[%s4336 + $0x28] sm:$0xf]
      %v4348 = vld [vmem:[%s4336 + $0x2c] sm:$0xf]
      %v4349 = vld [vmem:[%s4336 + $0x30] sm:$0xf]
      %v4350 = vld [vmem:[%s4336 + $0x34] sm:$0xf]
      %v4351 = vld [vmem:[%s4336 + $0x38] sm:$0xf]
      %v4352 = vld [vmem:[%s4336 + $0x3c] sm:$0xf]
      %v4353 = vld [vmem:[%s4336 + $0x40] sm:$0xf]
      %v4354 = vld [vmem:[%s4336 + $0x44] sm:$0xf]
      %v4355 = vld [vmem:[%s4336 + $0x48] sm:$0xf]
      %v4356 = vld [vmem:[%s4336 + $0x4c] sm:$0xf]
      %v4357 = vld [vmem:[%s4336 + $0x50] sm:$0xf]
      %v4358 = vld [vmem:[%s4336 + $0x54] sm:$0xf]
      %v4359 = vld [vmem:[%s4336 + $0x58] sm:$0xf]
      %v4360 = vld [vmem:[%s4336 + $0x5c] sm:$0xf]
      %v4361 = vld [vmem:[%s4336 + $0x60] sm:$0xf]
      %v4362 = vld [vmem:[%s4336 + $0x64] sm:$0xf]
      %v4363 = vld [vmem:[%s4336 + $0x68] sm:$0xf]
      %v4364 = vld [vmem:[%s4336 + $0x6c] sm:$0xf]
      %v4365 = vld [vmem:[%s4336 + $0x70] sm:$0xf]
      %v4366 = vld [vmem:[%s4336 + $0x74] sm:$0xf]
      %v4367 = vld [vmem:[%s4336 + $0x78] sm:$0xf]
      %v4368 = vld [vmem:[%s4336 + $0x7c] sm:$0xf]
      %v4369 = vld [vmem:[%s4336 + $0x80] sm:$0xf]
      %v4370 = vld [vmem:[%s4336 + $0x84] sm:$0xf]
      %v4371 = vld [vmem:[%s4336 + $0x88] sm:$0xf]
      %v4372 = vld [vmem:[%s4336 + $0x8c] sm:$0xf]
      %v4373 = vld [vmem:[%s4336 + $0x90] sm:$0xf]
      %v4374 = vld [vmem:[%s4336 + $0x94] sm:$0xf]
      %v4375 = vld [vmem:[%s4336 + $0x98] sm:$0xf]
      %v4376 = vld [vmem:[%s4336 + $0x9c] sm:$0xf]
      %v4377 = vld [vmem:[%s4336 + $0xa0] sm:$0xf]
      %v4378 = vld [vmem:[%s4336 + $0xa4] sm:$0xf]
      %v4379 = vld [vmem:[%s4336 + $0xa8] sm:$0xf]
      %v4380 = vld [vmem:[%s4336 + $0xac] sm:$0xf]
      %v4381 = vld [vmem:[%s4336 + $0xb0] sm:$0xf]
      %v4382 = vld [vmem:[%s4336 + $0xb4] sm:$0xf]
      %v4383 = vld [vmem:[%s4336 + $0xb8] sm:$0xf]
      %v4384 = vld [vmem:[%s4336 + $0xbc] sm:$0xf]
      %v4433 = vunpack.c.l.b16 %v4337
      %v4434 = vunpack.c.l.b16 %v4338
      %v4435 = vunpack.c.l.b16 %v4339
      %v4436 = vunpack.c.l.b16 %v4340
      %v4437 = vunpack.c.l.b16 %v4341
      %v4438 = vunpack.c.l.b16 %v4342
      %v4439 = vunpack.c.l.b16 %v4343
      %v4440 = vunpack.c.l.b16 %v4344
      %v4441 = vunpack.c.l.b16 %v4345
      %v4442 = vunpack.c.l.b16 %v4346
      %v4443 = vunpack.c.l.b16 %v4347
      %v4444 = vunpack.c.l.b16 %v4348
      %v4445 = vunpack.c.l.b16 %v4349
      %v4446 = vunpack.c.l.b16 %v4350
      %v4447 = vunpack.c.l.b16 %v4351
      %v4448 = vunpack.c.l.b16 %v4352
      %v4449 = vunpack.c.l.b16 %v4353
      %v4450 = vunpack.c.l.b16 %v4354
      %v4451 = vunpack.c.l.b16 %v4355
      %v4452 = vunpack.c.l.b16 %v4356
      %v4453 = vunpack.c.l.b16 %v4357
      %v4454 = vunpack.c.l.b16 %v4358
      %v4455 = vunpack.c.l.b16 %v4359
      %v4456 = vunpack.c.l.b16 %v4360
      %v4457 = vunpack.c.l.b16 %v4361
      %v4458 = vunpack.c.l.b16 %v4362
      %v4459 = vunpack.c.l.b16 %v4363
      %v4460 = vunpack.c.l.b16 %v4364
      %v4461 = vunpack.c.l.b16 %v4365
      %v4462 = vunpack.c.l.b16 %v4366
      %v4463 = vunpack.c.l.b16 %v4367
      %v4464 = vunpack.c.l.b16 %v4368
      %v4465 = vunpack.c.l.b16 %v4369
      %v4466 = vunpack.c.l.b16 %v4370
      %v4467 = vunpack.c.l.b16 %v4371
      %v4468 = vunpack.c.l.b16 %v4372
      %v4469 = vunpack.c.l.b16 %v4373
      %v4470 = vunpack.c.l.b16 %v4374
      %v4471 = vunpack.c.l.b16 %v4375
      %v4472 = vunpack.c.l.b16 %v4376
      %v4473 = vunpack.c.l.b16 %v4377
      %v4474 = vunpack.c.l.b16 %v4378
      %v4475 = vunpack.c.l.b16 %v4379
      %v4476 = vunpack.c.l.b16 %v4380
      %v4477 = vunpack.c.l.b16 %v4381
      %v4478 = vunpack.c.l.b16 %v4382
      %v4479 = vunpack.c.l.b16 %v4383
      %v4480 = vunpack.c.l.b16 %v4384
      %v4481 = vpack.c.b16 %v4434, %v4433
      %v4482 = vpack.c.b16 %v4436, %v4435
      %v4483 = vpack.c.b16 %v4438, %v4437
      %v4484 = vpack.c.b16 %v4440, %v4439
      %v4485 = vpack.c.b16 %v4442, %v4441
      %v4486 = vpack.c.b16 %v4444, %v4443
      %v4487 = vpack.c.b16 %v4446, %v4445
      %v4488 = vpack.c.b16 %v4448, %v4447
      %v4489 = vpack.c.b16 %v4450, %v4449
      %v4490 = vpack.c.b16 %v4452, %v4451
      %v4491 = vpack.c.b16 %v4454, %v4453
      %v4492 = vpack.c.b16 %v4456, %v4455
      %v4493 = vpack.c.b16 %v4458, %v4457
      %v4494 = vpack.c.b16 %v4460, %v4459
      %v4495 = vpack.c.b16 %v4462, %v4461
      %v4496 = vpack.c.b16 %v4464, %v4463
      %v4497 = vpack.c.b16 %v4466, %v4465
      %v4498 = vpack.c.b16 %v4468, %v4467
      %v4499 = vpack.c.b16 %v4470, %v4469
      %v4500 = vpack.c.b16 %v4472, %v4471
      %v4501 = vpack.c.b16 %v4474, %v4473
      %v4502 = vpack.c.b16 %v4476, %v4475
      %v4503 = vpack.c.b16 %v4478, %v4477
      %v4504 = vpack.c.b16 %v4480, %v4479
      %4529 = vmatpush.bf16.msra.mxu0 %v4488
      %4530 = vmatpush.bf16.msra.mxu0 %v4487
      %4531 = vmatpush.bf16.msra.mxu0 %v4486
      %4532 = vmatpush.bf16.msra.mxu0 %v4485
      %4533 = vmatpush.bf16.msra.mxu0 %v4484
      %4534 = vmatpush.bf16.msra.mxu0 %v4483
      %4535 = vmatpush.bf16.msra.mxu0 %v4482
      %4536 = vmatpush.bf16.msra.mxu0 %v4481
      %4537 = vmatmul.bf16.gmra.mxu0 %v4292
      %v4538 = vpop.f32.mrf.mxu0
      %v4539 = vadd.f32 0.0, %v4538
      %v4540 = vpop.f32.mrf.mxu0
      %v4541 = vadd.f32 0.0, %v4540
      %4542 = vmatmul.bf16.gmra.mxu0 %v4293
      %v4543 = vpop.f32.mrf.mxu0
      %v4544 = vadd.f32 0.0, %v4543
      %v4545 = vpop.f32.mrf.mxu0
      %v4546 = vadd.f32 0.0, %v4545
      %4547 = vmatmul.bf16.gmra.mxu0 %v4294
      %v4548 = vpop.f32.mrf.mxu0
      %v4549 = vadd.f32 0.0, %v4548
      %v4550 = vpop.f32.mrf.mxu0
      %v4551 = vadd.f32 0.0, %v4550
      %4552 = vmatmul.bf16.gmra.mxu0 %v4295
      %v4553 = vpop.f32.mrf.mxu0
      %v4554 = vadd.f32 0.0, %v4553
      %v4555 = vpop.f32.mrf.mxu0
      %v4556 = vadd.f32 0.0, %v4555
      %4557 = vmatmul.bf16.gmra.mxu0 %v4296
      %v4558 = vpop.f32.mrf.mxu0
      %v4559 = vadd.f32 0.0, %v4558
      %v4560 = vpop.f32.mrf.mxu0
      %v4561 = vadd.f32 0.0, %v4560
      %4562 = vmatmul.bf16.gmra.mxu0 %v4297
      %v4563 = vpop.f32.mrf.mxu0
      %v4564 = vadd.f32 0.0, %v4563
      %v4565 = vpop.f32.mrf.mxu0
      %v4566 = vadd.f32 0.0, %v4565
      %4567 = vmatmul.bf16.gmra.mxu0 %v4298
      %v4568 = vpop.f32.mrf.mxu0
      %v4569 = vadd.f32 0.0, %v4568
      %v4570 = vpop.f32.mrf.mxu0
      %v4571 = vadd.f32 0.0, %v4570
      %4572 = vmatmul.bf16.gmra.mxu0 %v4299
      %v4573 = vpop.f32.mrf.mxu0
      %v4574 = vadd.f32 0.0, %v4573
      %v4575 = vpop.f32.mrf.mxu0
      %v4576 = vadd.f32 0.0, %v4575
      %4577 = vmatmul.bf16.gmra.mxu0 %v4300
      %v4578 = vpop.f32.mrf.mxu0
      %v4579 = vadd.f32 0.0, %v4578
      %v4580 = vpop.f32.mrf.mxu0
      %v4581 = vadd.f32 0.0, %v4580
      %4582 = vmatmul.bf16.gmra.mxu0 %v4301
      %v4583 = vpop.f32.mrf.mxu0
      %v4584 = vadd.f32 0.0, %v4583
      %v4585 = vpop.f32.mrf.mxu0
      %v4586 = vadd.f32 0.0, %v4585
      %4587 = vmatmul.bf16.gmra.mxu0 %v4302
      %v4588 = vpop.f32.mrf.mxu0
      %v4589 = vadd.f32 0.0, %v4588
      %v4590 = vpop.f32.mrf.mxu0
      %v4591 = vadd.f32 0.0, %v4590
      %4592 = vmatmul.bf16.gmra.mxu0 %v4303
      %v4593 = vpop.f32.mrf.mxu0
      %v4594 = vadd.f32 0.0, %v4593
      %v4595 = vpop.f32.mrf.mxu0
      %v4596 = vadd.f32 0.0, %v4595
      %4597 = vmatmul.bf16.gmra.mxu0 %v4304
      %v4598 = vpop.f32.mrf.mxu0
      %v4599 = vadd.f32 0.0, %v4598
      %v4600 = vpop.f32.mrf.mxu0
      %v4601 = vadd.f32 0.0, %v4600
      %4602 = vmatmul.bf16.gmra.mxu0 %v4305
      %v4603 = vpop.f32.mrf.mxu0
      %v4604 = vadd.f32 0.0, %v4603
      %v4605 = vpop.f32.mrf.mxu0
      %v4606 = vadd.f32 0.0, %v4605
      %4607 = vmatmul.bf16.gmra.mxu0 %v4306
      %v4608 = vpop.f32.mrf.mxu0
      %v4609 = vadd.f32 0.0, %v4608
      %v4610 = vpop.f32.mrf.mxu0
      %v4611 = vadd.f32 0.0, %v4610
      %4612 = vmatmul.bf16.gmra.mxu0 %v4307
      %v4613 = vpop.f32.mrf.mxu0
      %v4614 = vadd.f32 0.0, %v4613
      %v4615 = vpop.f32.mrf.mxu0
      %v4616 = vadd.f32 0.0, %v4615
      %4617 = vdwg.mxu0
      %4618 = vmatpush.bf16.msra.mxu0 %v4496
      %4619 = vmatpush.bf16.msra.mxu0 %v4495
      %4620 = vmatpush.bf16.msra.mxu0 %v4494
      %4621 = vmatpush.bf16.msra.mxu0 %v4493
      %4622 = vmatpush.bf16.msra.mxu0 %v4492
      %4623 = vmatpush.bf16.msra.mxu0 %v4491
      %4624 = vmatpush.bf16.msra.mxu0 %v4490
      %4625 = vmatpush.bf16.msra.mxu0 %v4489
      %4626 = vmatmul.bf16.gmra.mxu0 %v4293
      %v4627 = vpop.f32.mrf.mxu0
      %v4628 = vadd.f32 %v4539, %v4627
      %v4629 = vpop.f32.mrf.mxu0
      %v4630 = vadd.f32 %v4541, %v4629
      %4631 = vmatmul.bf16.gmra.mxu0 %v4294
      %v4632 = vpop.f32.mrf.mxu0
      %v4633 = vadd.f32 %v4544, %v4632
      %v4634 = vpop.f32.mrf.mxu0
      %v4635 = vadd.f32 %v4546, %v4634
      %4636 = vmatmul.bf16.gmra.mxu0 %v4295
      %v4637 = vpop.f32.mrf.mxu0
      %v4638 = vadd.f32 %v4549, %v4637
      %v4639 = vpop.f32.mrf.mxu0
      %v4640 = vadd.f32 %v4551, %v4639
      %4641 = vmatmul.bf16.gmra.mxu0 %v4296
      %v4642 = vpop.f32.mrf.mxu0
      %v4643 = vadd.f32 %v4554, %v4642
      %v4644 = vpop.f32.mrf.mxu0
      %v4645 = vadd.f32 %v4556, %v4644
      %4646 = vmatmul.bf16.gmra.mxu0 %v4297
      %v4647 = vpop.f32.mrf.mxu0
      %v4648 = vadd.f32 %v4559, %v4647
      %v4649 = vpop.f32.mrf.mxu0
      %v4650 = vadd.f32 %v4561, %v4649
      %4651 = vmatmul.bf16.gmra.mxu0 %v4298
      %v4652 = vpop.f32.mrf.mxu0
      %v4653 = vadd.f32 %v4564, %v4652
      %v4654 = vpop.f32.mrf.mxu0
      %v4655 = vadd.f32 %v4566, %v4654
      %4656 = vmatmul.bf16.gmra.mxu0 %v4299
      %v4657 = vpop.f32.mrf.mxu0
      %v4658 = vadd.f32 %v4569, %v4657
      %v4659 = vpop.f32.mrf.mxu0
      %v4660 = vadd.f32 %v4571, %v4659
      %4661 = vmatmul.bf16.gmra.mxu0 %v4300
      %v4662 = vpop.f32.mrf.mxu0
      %v4663 = vadd.f32 %v4574, %v4662
      %v4664 = vpop.f32.mrf.mxu0
      %v4665 = vadd.f32 %v4576, %v4664
      %4666 = vmatmul.bf16.gmra.mxu0 %v4301
      %v4667 = vpop.f32.mrf.mxu0
      %v4668 = vadd.f32 %v4579, %v4667
      %v4669 = vpop.f32.mrf.mxu0
      %v4670 = vadd.f32 %v4581, %v4669
      %4671 = vmatmul.bf16.gmra.mxu0 %v4302
      %v4672 = vpop.f32.mrf.mxu0
      %v4673 = vadd.f32 %v4584, %v4672
      %v4674 = vpop.f32.mrf.mxu0
      %v4675 = vadd.f32 %v4586, %v4674
      %4676 = vmatmul.bf16.gmra.mxu0 %v4303
      %v4677 = vpop.f32.mrf.mxu0
      %v4678 = vadd.f32 %v4589, %v4677
      %v4679 = vpop.f32.mrf.mxu0
      %v4680 = vadd.f32 %v4591, %v4679
      %4681 = vmatmul.bf16.gmra.mxu0 %v4304
      %v4682 = vpop.f32.mrf.mxu0
      %v4683 = vadd.f32 %v4594, %v4682
      %v4684 = vpop.f32.mrf.mxu0
      %v4685 = vadd.f32 %v4596, %v4684
      %4686 = vmatmul.bf16.gmra.mxu0 %v4305
      %v4687 = vpop.f32.mrf.mxu0
      %v4688 = vadd.f32 %v4599, %v4687
      %v4689 = vpop.f32.mrf.mxu0
      %v4690 = vadd.f32 %v4601, %v4689
      %4691 = vmatmul.bf16.gmra.mxu0 %v4306
      %v4692 = vpop.f32.mrf.mxu0
      %v4693 = vadd.f32 %v4604, %v4692
      %v4694 = vpop.f32.mrf.mxu0
      %v4695 = vadd.f32 %v4606, %v4694
      %4696 = vmatmul.bf16.gmra.mxu0 %v4307
      %v4697 = vpop.f32.mrf.mxu0
      %v4698 = vadd.f32 %v4609, %v4697
      %v4699 = vpop.f32.mrf.mxu0
      %v4700 = vadd.f32 %v4611, %v4699
      %4701 = vmatmul.bf16.gmra.mxu0 %v4328
      %v4702 = vpop.f32.mrf.mxu0
      %v4703 = vadd.f32 %v4614, %v4702
      %v4704 = vpop.f32.mrf.mxu0
      %v4705 = vadd.f32 %v4616, %v4704
      %4706 = vdwg.mxu0
      %4707 = vmatpush.bf16.msra.mxu0 %v4504
      %4708 = vmatpush.bf16.msra.mxu0 %v4503
      %4709 = vmatpush.bf16.msra.mxu0 %v4502
      %4710 = vmatpush.bf16.msra.mxu0 %v4501
      %4711 = vmatpush.bf16.msra.mxu0 %v4500
      %4712 = vmatpush.bf16.msra.mxu0 %v4499
      %4713 = vmatpush.bf16.msra.mxu0 %v4498
      %4714 = vmatpush.bf16.msra.mxu0 %v4497
      %4715 = vmatmul.bf16.gmra.mxu0 %v4294
      %v4716 = vpop.f32.mrf.mxu0
      %v4717 = vadd.f32 %v4628, %v4716
      %v4718 = vpop.f32.mrf.mxu0
      %v4719 = vadd.f32 %v4630, %v4718
      %4720 = vmatmul.bf16.gmra.mxu0 %v4295
      %v4721 = vpop.f32.mrf.mxu0
      %v4722 = vadd.f32 %v4633, %v4721
      %v4723 = vpop.f32.mrf.mxu0
      %v4724 = vadd.f32 %v4635, %v4723
      %4725 = vmatmul.bf16.gmra.mxu0 %v4296
      %v4726 = vpop.f32.mrf.mxu0
      %v4727 = vadd.f32 %v4638, %v4726
      %v4728 = vpop.f32.mrf.mxu0
      %v4729 = vadd.f32 %v4640, %v4728
      %4730 = vmatmul.bf16.gmra.mxu0 %v4297
      %v4731 = vpop.f32.mrf.mxu0
      %v4732 = vadd.f32 %v4643, %v4731
      %v4733 = vpop.f32.mrf.mxu0
      %v4734 = vadd.f32 %v4645, %v4733
      %4735 = vmatmul.bf16.gmra.mxu0 %v4298
      %v4736 = vpop.f32.mrf.mxu0
      %v4737 = vadd.f32 %v4648, %v4736
      %v4738 = vpop.f32.mrf.mxu0
      %v4739 = vadd.f32 %v4650, %v4738
      %4740 = vmatmul.bf16.gmra.mxu0 %v4299
      %v4741 = vpop.f32.mrf.mxu0
      %v4742 = vadd.f32 %v4653, %v4741
      %v4743 = vpop.f32.mrf.mxu0
      %v4744 = vadd.f32 %v4655, %v4743
      %4745 = vmatmul.bf16.gmra.mxu0 %v4300
      %v4746 = vpop.f32.mrf.mxu0
      %v4747 = vadd.f32 %v4658, %v4746
      %v4748 = vpop.f32.mrf.mxu0
      %v4749 = vadd.f32 %v4660, %v4748
      %4750 = vmatmul.bf16.gmra.mxu0 %v4301
      %v4751 = vpop.f32.mrf.mxu0
      %v4752 = vadd.f32 %v4663, %v4751
      %v4753 = vpop.f32.mrf.mxu0
      %v4754 = vadd.f32 %v4665, %v4753
      %4755 = vmatmul.bf16.gmra.mxu0 %v4302
      %v4756 = vpop.f32.mrf.mxu0
      %v4757 = vadd.f32 %v4668, %v4756
      %v4758 = vpop.f32.mrf.mxu0
      %v4759 = vadd.f32 %v4670, %v4758
      %4760 = vmatmul.bf16.gmra.mxu0 %v4303
      %v4761 = vpop.f32.mrf.mxu0
      %v4762 = vadd.f32 %v4673, %v4761
      %v4763 = vpop.f32.mrf.mxu0
      %v4764 = vadd.f32 %v4675, %v4763
      %4765 = vmatmul.bf16.gmra.mxu0 %v4304
      %v4766 = vpop.f32.mrf.mxu0
      %v4767 = vadd.f32 %v4678, %v4766
      %v4768 = vpop.f32.mrf.mxu0
      %v4769 = vadd.f32 %v4680, %v4768
      %4770 = vmatmul.bf16.gmra.mxu0 %v4305
      %v4771 = vpop.f32.mrf.mxu0
      %v4772 = vadd.f32 %v4683, %v4771
      %v4773 = vpop.f32.mrf.mxu0
      %v4774 = vadd.f32 %v4685, %v4773
      %4775 = vmatmul.bf16.gmra.mxu0 %v4306
      %v4776 = vpop.f32.mrf.mxu0
      %v4777 = vadd.f32 %v4688, %v4776
      %v4778 = vpop.f32.mrf.mxu0
      %v4779 = vadd.f32 %v4690, %v4778
      %4780 = vmatmul.bf16.gmra.mxu0 %v4307
      %v4781 = vpop.f32.mrf.mxu0
      %v4782 = vadd.f32 %v4693, %v4781
      %v4783 = vpop.f32.mrf.mxu0
      %v4784 = vadd.f32 %v4695, %v4783
      %4785 = vmatmul.bf16.gmra.mxu0 %v4328
      %v4786 = vpop.f32.mrf.mxu0
      %v4787 = vadd.f32 %v4698, %v4786
      %v4788 = vpop.f32.mrf.mxu0
      %v4789 = vadd.f32 %v4700, %v4788
      %4790 = vmatmul.bf16.gmra.mxu0 %v4334
      %v4791 = vpop.f32.mrf.mxu0
      %v4792 = vadd.f32 %v4703, %v4791
      %v4793 = vpop.f32.mrf.mxu0
      %v4794 = vadd.f32 %v4705, %v4793
      %4795 = vdwg.mxu0
      %v4796 = vadd.f32 %v4196, %v4717
      %v4797 = vadd.f32 %v4197, %v4719
      %v4798 = vadd.f32 %v4198, %v4722
      %v4799 = vadd.f32 %v4199, %v4724
      %v4800 = vadd.f32 %v4200, %v4727
      %v4801 = vadd.f32 %v4201, %v4729
      %v4802 = vadd.f32 %v4202, %v4732
      %v4803 = vadd.f32 %v4203, %v4734
      %v4804 = vadd.f32 %v4204, %v4737
      %v4805 = vadd.f32 %v4205, %v4739
      %v4806 = vadd.f32 %v4206, %v4742
      %v4807 = vadd.f32 %v4207, %v4744
      %v4808 = vadd.f32 %v4208, %v4747
      %v4809 = vadd.f32 %v4209, %v4749
      %v4810 = vadd.f32 %v4210, %v4752
      %v4811 = vadd.f32 %v4211, %v4754
      %v4812 = vadd.f32 %v4212, %v4757
      %v4813 = vadd.f32 %v4213, %v4759
      %v4814 = vadd.f32 %v4214, %v4762
      %v4815 = vadd.f32 %v4215, %v4764
      %v4816 = vadd.f32 %v4216, %v4767
      %v4817 = vadd.f32 %v4217, %v4769
      %v4818 = vadd.f32 %v4218, %v4772
      %v4819 = vadd.f32 %v4219, %v4774
      %v4820 = vadd.f32 %v4220, %v4777
      %v4821 = vadd.f32 %v4221, %v4779
      %v4822 = vadd.f32 %v4222, %v4782
      %v4823 = vadd.f32 %v4223, %v4784
      %v4824 = vadd.f32 %v4224, %v4787
      %v4825 = vadd.f32 %v4225, %v4789
      %v4826 = vadd.f32 %v4226, %v4792
      %v4827 = vadd.f32 %v4227, %v4794
      %v4828 = vld [vmem:[#allocation3 + $0x8] sm:$0xf]
      %v4829 = vld [vmem:[#allocation3 + $0xc] sm:$0xf]
      %v4830 = vld [vmem:[#allocation3 + $0x10] sm:$0x1]
      %v4831 = vld [vmem:[#allocation3 + $0x20] sm:$0xf]
      %v4832 = vld [vmem:[#allocation3 + $0x24] sm:$0xf]
      %v4833 = vld [vmem:[#allocation3 + $0x28] sm:$0x1]
      %v4834 = vld [vmem:[#allocation3 + $0x38] sm:$0xf]
      %v4835 = vld [vmem:[#allocation3 + $0x3c] sm:$0xf]
      %v4836 = vld [vmem:[#allocation3 + $0x40] sm:$0x1]
      %v4837 = vld [vmem:[#allocation3 + $0x50] sm:$0xf]
      %v4838 = vld [vmem:[#allocation3 + $0x54] sm:$0xf]
      %v4839 = vld [vmem:[#allocation3 + $0x58] sm:$0x1]
      %v4840 = vld [vmem:[#allocation3 + $0x68] sm:$0xf]
      %v4841 = vld [vmem:[#allocation3 + $0x6c] sm:$0xf]
      %v4842 = vld [vmem:[#allocation3 + $0x70] sm:$0x1]
      %v4843 = vld [vmem:[#allocation3 + $0x80] sm:$0xf]
      %v4844 = vld [vmem:[#allocation3 + $0x84] sm:$0xf]
      %v4845 = vld [vmem:[#allocation3 + $0x88] sm:$0x1]
      %v4846 = vld [vmem:[#allocation3 + $0x98] sm:$0xf]
      %v4847 = vld [vmem:[#allocation3 + $0x9c] sm:$0xf]
      %v4848 = vld [vmem:[#allocation3 + $0xa0] sm:$0x1]
      %v4849 = vld [vmem:[#allocation3 + $0xb0] sm:$0xf]
      %v4850 = vld [vmem:[#allocation3 + $0xb4] sm:$0xf]
      %v4851 = vld [vmem:[#allocation3 + $0xb8] sm:$0x1]
      %v4852 = vld [vmem:[#allocation3 + $0xc8] sm:$0xf]
      %v4853 = vld [vmem:[#allocation3 + $0xcc] sm:$0xf]
      %v4854 = vld [vmem:[#allocation3 + $0xd0] sm:$0x1]
      %v4855 = vld [vmem:[#allocation3 + $0xe0] sm:$0xf]
      %v4856 = vld [vmem:[#allocation3 + $0xe4] sm:$0xf]
      %v4857 = vld [vmem:[#allocation3 + $0xe8] sm:$0x1]
      %v4858 = vld [vmem:[#allocation3 + $0xf8] sm:$0xf]
      %v4859 = vld [vmem:[#allocation3 + $0xfc] sm:$0xf]
      %v4860 = vld [vmem:[#allocation3 + $0x100] sm:$0x1]
      %v4861 = vld [vmem:[#allocation3 + $0x110] sm:$0xf]
      %v4862 = vld [vmem:[#allocation3 + $0x114] sm:$0xf]
      %v4863 = vld [vmem:[#allocation3 + $0x118] sm:$0x1]
      %v4864 = vld [vmem:[#allocation3 + $0x128] sm:$0xf]
      %v4865 = vld [vmem:[#allocation3 + $0x12c] sm:$0xf]
      %v4866 = vld [vmem:[#allocation3 + $0x130] sm:$0x1]
      %v4867 = vld [vmem:[#allocation3 + $0x140] sm:$0xf]
      %v4868 = vld [vmem:[#allocation3 + $0x144] sm:$0xf]
      %v4869 = vld [vmem:[#allocation3 + $0x148] sm:$0x1]
      %v4870 = vld [vmem:[#allocation3 + $0x158] sm:$0xf]
      %v4871 = vld [vmem:[#allocation3 + $0x15c] sm:$0xf]
      %v4872 = vld [vmem:[#allocation3 + $0x160] sm:$0x1]
      %v4873 = vld [vmem:[#allocation3 + $0x170] sm:$0xf]
      %v4874 = vld [vmem:[#allocation3 + $0x174] sm:$0xf]
      %v4875 = vld [vmem:[#allocation3 + $0x178] sm:$0x1]
      %v4876 = vld [vmem:[#allocation3 + $0x188] sm:$0xf]
      %v4877 = vld [vmem:[#allocation3 + $0x18c] sm:$0xf]
      %v4878 = vld [vmem:[#allocation3 + $0x190] sm:$0x1]
      %v4879 = vld [vmem:[#allocation3 + $0x1a0] sm:$0xf]
      %v4880 = vld [vmem:[#allocation3 + $0x1a4] sm:$0xf]
      %v4881 = vld [vmem:[#allocation3 + $0x1a8] sm:$0x1]
      %v4883 = vshrl.u32 %v4828, 16
      %v4885 = vrot.slane %v4883, 4
      %v4886 = vshll.u32 %v4828, 16
      %v4888 = vrot.slane %v4886, 5
      %v4889 = vor.u32 %v4885, %v4888
      %v4890 = vrot.slane %v4889, 4
      %v4892 = vshll.u32 %v4829, 16
      %v4894 = vrot.slane %v4892, 5
      %v4895 = vsel %vm2115, %v4890, %v4894
      %v4896 = vshrl.u32 %v4829, 16
      %v4898 = vrot.slane %v4896, 4
      %v4899 = vor.u32 %v4898, %v4894
      %v4900 = vrot.slane %v4899, 4
      %v4902 = vshll.u32 %v4830, 16
      %v4904 = vrot.slane %v4902, 5
      %v4905 = vsel %vm2115, %v4900, %v4904
      %v4907 = vshrl.u32 %v4831, 16
      %v4909 = vrot.slane %v4907, 4
      %v4910 = vshll.u32 %v4831, 16
      %v4912 = vrot.slane %v4910, 5
      %v4913 = vor.u32 %v4909, %v4912
      %v4914 = vrot.slane %v4913, 4
      %v4916 = vshll.u32 %v4832, 16
      %v4918 = vrot.slane %v4916, 5
      %v4919 = vsel %vm2115, %v4914, %v4918
      %v4920 = vshrl.u32 %v4832, 16
      %v4922 = vrot.slane %v4920, 4
      %v4923 = vor.u32 %v4922, %v4918
      %v4924 = vrot.slane %v4923, 4
      %v4926 = vshll.u32 %v4833, 16
      %v4928 = vrot.slane %v4926, 5
      %v4929 = vsel %vm2115, %v4924, %v4928
      %v4931 = vshrl.u32 %v4834, 16
      %v4933 = vrot.slane %v4931, 4
      %v4934 = vshll.u32 %v4834, 16
      %v4936 = vrot.slane %v4934, 5
      %v4937 = vor.u32 %v4933, %v4936
      %v4938 = vrot.slane %v4937, 4
      %v4940 = vshll.u32 %v4835, 16
      %v4942 = vrot.slane %v4940, 5
      %v4943 = vsel %vm2115, %v4938, %v4942
      %v4944 = vshrl.u32 %v4835, 16
      %v4946 = vrot.slane %v4944, 4
      %v4947 = vor.u32 %v4946, %v4942
      %v4948 = vrot.slane %v4947, 4
      %v4950 = vshll.u32 %v4836, 16
      %v4952 = vrot.slane %v4950, 5
      %v4953 = vsel %vm2115, %v4948, %v4952
      %v4955 = vshrl.u32 %v4837, 16
      %v4957 = vrot.slane %v4955, 4
      %v4958 = vshll.u32 %v4837, 16
      %v4960 = vrot.slane %v4958, 5
      %v4961 = vor.u32 %v4957, %v4960
      %v4962 = vrot.slane %v4961, 4
      %v4964 = vshll.u32 %v4838, 16
      %v4966 = vrot.slane %v4964, 5
      %v4967 = vsel %vm2115, %v4962, %v4966
      %v4968 = vshrl.u32 %v4838, 16
      %v4970 = vrot.slane %v4968, 4
      %v4971 = vor.u32 %v4970, %v4966
      %v4972 = vrot.slane %v4971, 4
      %v4974 = vshll.u32 %v4839, 16
      %v4976 = vrot.slane %v4974, 5
      %v4977 = vsel %vm2115, %v4972, %v4976
      %v4979 = vshrl.u32 %v4840, 16
      %v4981 = vrot.slane %v4979, 4
      %v4982 = vshll.u32 %v4840, 16
      %v4984 = vrot.slane %v4982, 5
      %v4985 = vor.u32 %v4981, %v4984
      %v4986 = vrot.slane %v4985, 4
      %v4988 = vshll.u32 %v4841, 16
      %v4990 = vrot.slane %v4988, 5
      %v4991 = vsel %vm2115, %v4986, %v4990
      %v4992 = vshrl.u32 %v4841, 16
      %v4994 = vrot.slane %v4992, 4
      %v4995 = vor.u32 %v4994, %v4990
      %v4996 = vrot.slane %v4995, 4
      %v4998 = vshll.u32 %v4842, 16
      %v5000 = vrot.slane %v4998, 5
      %v5001 = vsel %vm2115, %v4996, %v5000
      %v5003 = vshrl.u32 %v4843, 16
      %v5005 = vrot.slane %v5003, 4
      %v5006 = vshll.u32 %v4843, 16
      %v5008 = vrot.slane %v5006, 5
      %v5009 = vor.u32 %v5005, %v5008
      %v5010 = vrot.slane %v5009, 4
      %v5012 = vshll.u32 %v4844, 16
      %v5014 = vrot.slane %v5012, 5
      %v5015 = vsel %vm2115, %v5010, %v5014
      %v5016 = vshrl.u32 %v4844, 16
      %v5018 = vrot.slane %v5016, 4
      %v5019 = vor.u32 %v5018, %v5014
      %v5020 = vrot.slane %v5019, 4
      %v5022 = vshll.u32 %v4845, 16
      %v5024 = vrot.slane %v5022, 5
      %v5025 = vsel %vm2115, %v5020, %v5024
      %v5027 = vshrl.u32 %v4846, 16
      %v5029 = vrot.slane %v5027, 4
      %v5030 = vshll.u32 %v4846, 16
      %v5032 = vrot.slane %v5030, 5
      %v5033 = vor.u32 %v5029, %v5032
      %v5034 = vrot.slane %v5033, 4
      %v5036 = vshll.u32 %v4847, 16
      %v5038 = vrot.slane %v5036, 5
      %v5039 = vsel %vm2115, %v5034, %v5038
      %v5040 = vshrl.u32 %v4847, 16
      %v5042 = vrot.slane %v5040, 4
      %v5043 = vor.u32 %v5042, %v5038
      %v5044 = vrot.slane %v5043, 4
      %v5046 = vshll.u32 %v4848, 16
      %v5048 = vrot.slane %v5046, 5
      %v5049 = vsel %vm2115, %v5044, %v5048
      %v5051 = vshrl.u32 %v4849, 16
      %v5053 = vrot.slane %v5051, 4
      %v5054 = vshll.u32 %v4849, 16
      %v5056 = vrot.slane %v5054, 5
      %v5057 = vor.u32 %v5053, %v5056
      %v5058 = vrot.slane %v5057, 4
      %v5060 = vshll.u32 %v4850, 16
      %v5062 = vrot.slane %v5060, 5
      %v5063 = vsel %vm2115, %v5058, %v5062
      %v5064 = vshrl.u32 %v4850, 16
      %v5066 = vrot.slane %v5064, 4
      %v5067 = vor.u32 %v5066, %v5062
      %v5068 = vrot.slane %v5067, 4
      %v5070 = vshll.u32 %v4851, 16
      %v5072 = vrot.slane %v5070, 5
      %v5073 = vsel %vm2115, %v5068, %v5072
      %v5075 = vshrl.u32 %v4852, 16
      %v5077 = vrot.slane %v5075, 4
      %v5078 = vshll.u32 %v4852, 16
      %v5080 = vrot.slane %v5078, 5
      %v5081 = vor.u32 %v5077, %v5080
      %v5082 = vrot.slane %v5081, 4
      %v5084 = vshll.u32 %v4853, 16
      %v5086 = vrot.slane %v5084, 5
      %v5087 = vsel %vm2115, %v5082, %v5086
      %v5088 = vshrl.u32 %v4853, 16
      %v5090 = vrot.slane %v5088, 4
      %v5091 = vor.u32 %v5090, %v5086
      %v5092 = vrot.slane %v5091, 4
      %v5094 = vshll.u32 %v4854, 16
      %v5096 = vrot.slane %v5094, 5
      %v5097 = vsel %vm2115, %v5092, %v5096
      %v5099 = vshrl.u32 %v4855, 16
      %v5101 = vrot.slane %v5099, 4
      %v5102 = vshll.u32 %v4855, 16
      %v5104 = vrot.slane %v5102, 5
      %v5105 = vor.u32 %v5101, %v5104
      %v5106 = vrot.slane %v5105, 4
      %v5108 = vshll.u32 %v4856, 16
      %v5110 = vrot.slane %v5108, 5
      %v5111 = vsel %vm2115, %v5106, %v5110
      %v5112 = vshrl.u32 %v4856, 16
      %v5114 = vrot.slane %v5112, 4
      %v5115 = vor.u32 %v5114, %v5110
      %v5116 = vrot.slane %v5115, 4
      %v5118 = vshll.u32 %v4857, 16
      %v5120 = vrot.slane %v5118, 5
      %v5121 = vsel %vm2115, %v5116, %v5120
      %v5123 = vshrl.u32 %v4858, 16
      %v5125 = vrot.slane %v5123, 4
      %v5126 = vshll.u32 %v4858, 16
      %v5128 = vrot.slane %v5126, 5
      %v5129 = vor.u32 %v5125, %v5128
      %v5130 = vrot.slane %v5129, 4
      %v5132 = vshll.u32 %v4859, 16
      %v5134 = vrot.slane %v5132, 5
      %v5135 = vsel %vm2115, %v5130, %v5134
      %v5136 = vshrl.u32 %v4859, 16
      %v5138 = vrot.slane %v5136, 4
      %v5139 = vor.u32 %v5138, %v5134
      %v5140 = vrot.slane %v5139, 4
      %v5142 = vshll.u32 %v4860, 16
      %v5144 = vrot.slane %v5142, 5
      %v5145 = vsel %vm2115, %v5140, %v5144
      %v5147 = vshrl.u32 %v4861, 16
      %v5149 = vrot.slane %v5147, 4
      %v5150 = vshll.u32 %v4861, 16
      %v5152 = vrot.slane %v5150, 5
      %v5153 = vor.u32 %v5149, %v5152
      %v5154 = vrot.slane %v5153, 4
      %v5156 = vshll.u32 %v4862, 16
      %v5158 = vrot.slane %v5156, 5
      %v5159 = vsel %vm2115, %v5154, %v5158
      %v5160 = vshrl.u32 %v4862, 16
      %v5162 = vrot.slane %v5160, 4
      %v5163 = vor.u32 %v5162, %v5158
      %v5164 = vrot.slane %v5163, 4
      %v5166 = vshll.u32 %v4863, 16
      %v5168 = vrot.slane %v5166, 5
      %v5169 = vsel %vm2115, %v5164, %v5168
      %v5171 = vshrl.u32 %v4864, 16
      %v5173 = vrot.slane %v5171, 4
      %v5174 = vshll.u32 %v4864, 16
      %v5176 = vrot.slane %v5174, 5
      %v5177 = vor.u32 %v5173, %v5176
      %v5178 = vrot.slane %v5177, 4
      %v5180 = vshll.u32 %v4865, 16
      %v5182 = vrot.slane %v5180, 5
      %v5183 = vsel %vm2115, %v5178, %v5182
      %v5184 = vshrl.u32 %v4865, 16
      %v5186 = vrot.slane %v5184, 4
      %v5187 = vor.u32 %v5186, %v5182
      %v5188 = vrot.slane %v5187, 4
      %v5190 = vshll.u32 %v4866, 16
      %v5192 = vrot.slane %v5190, 5
      %v5193 = vsel %vm2115, %v5188, %v5192
      %v5195 = vshrl.u32 %v4867, 16
      %v5197 = vrot.slane %v5195, 4
      %v5198 = vshll.u32 %v4867, 16
      %v5200 = vrot.slane %v5198, 5
      %v5201 = vor.u32 %v5197, %v5200
      %v5202 = vrot.slane %v5201, 4
      %v5204 = vshll.u32 %v4868, 16
      %v5206 = vrot.slane %v5204, 5
      %v5207 = vsel %vm2115, %v5202, %v5206
      %v5208 = vshrl.u32 %v4868, 16
      %v5210 = vrot.slane %v5208, 4
      %v5211 = vor.u32 %v5210, %v5206
      %v5212 = vrot.slane %v5211, 4
      %v5214 = vshll.u32 %v4869, 16
      %v5216 = vrot.slane %v5214, 5
      %v5217 = vsel %vm2115, %v5212, %v5216
      %v5219 = vshrl.u32 %v4870, 16
      %v5221 = vrot.slane %v5219, 4
      %v5222 = vshll.u32 %v4870, 16
      %v5224 = vrot.slane %v5222, 5
      %v5225 = vor.u32 %v5221, %v5224
      %v5226 = vrot.slane %v5225, 4
      %v5228 = vshll.u32 %v4871, 16
      %v5230 = vrot.slane %v5228, 5
      %v5231 = vsel %vm2115, %v5226, %v5230
      %v5232 = vshrl.u32 %v4871, 16
      %v5234 = vrot.slane %v5232, 4
      %v5235 = vor.u32 %v5234, %v5230
      %v5236 = vrot.slane %v5235, 4
      %v5238 = vshll.u32 %v4872, 16
      %v5240 = vrot.slane %v5238, 5
      %v5241 = vsel %vm2115, %v5236, %v5240
      %v5243 = vshrl.u32 %v4873, 16
      %v5245 = vrot.slane %v5243, 4
      %v5246 = vshll.u32 %v4873, 16
      %v5248 = vrot.slane %v5246, 5
      %v5249 = vor.u32 %v5245, %v5248
      %v5250 = vrot.slane %v5249, 4
      %v5252 = vshll.u32 %v4874, 16
      %v5254 = vrot.slane %v5252, 5
      %v5255 = vsel %vm2115, %v5250, %v5254
      %v5256 = vshrl.u32 %v4874, 16
      %v5258 = vrot.slane %v5256, 4
      %v5259 = vor.u32 %v5258, %v5254
      %v5260 = vrot.slane %v5259, 4
      %v5262 = vshll.u32 %v4875, 16
      %v5264 = vrot.slane %v5262, 5
      %v5265 = vsel %vm2115, %v5260, %v5264
      %v5267 = vshrl.u32 %v4876, 16
      %v5269 = vrot.slane %v5267, 4
      %v5270 = vshll.u32 %v4876, 16
      %v5272 = vrot.slane %v5270, 5
      %v5273 = vor.u32 %v5269, %v5272
      %v5274 = vrot.slane %v5273, 4
      %v5276 = vshll.u32 %v4877, 16
      %v5278 = vrot.slane %v5276, 5
      %v5279 = vsel %vm2115, %v5274, %v5278
      %v5280 = vshrl.u32 %v4877, 16
      %v5282 = vrot.slane %v5280, 4
      %v5283 = vor.u32 %v5282, %v5278
      %v5284 = vrot.slane %v5283, 4
      %v5286 = vshll.u32 %v4878, 16
      %v5288 = vrot.slane %v5286, 5
      %v5289 = vsel %vm2115, %v5284, %v5288
      %v5291 = vshrl.u32 %v4879, 16
      %v5293 = vrot.slane %v5291, 4
      %v5294 = vshll.u32 %v4879, 16
      %v5296 = vrot.slane %v5294, 5
      %v5297 = vor.u32 %v5293, %v5296
      %v5298 = vrot.slane %v5297, 4
      %v5300 = vshll.u32 %v4880, 16
      %v5302 = vrot.slane %v5300, 5
      %v5303 = vsel %vm2115, %v5298, %v5302
      %v5304 = vshrl.u32 %v4880, 16
      %v5306 = vrot.slane %v5304, 4
      %v5307 = vor.u32 %v5306, %v5302
      %v5308 = vrot.slane %v5307, 4
      %v5310 = vshll.u32 %v4881, 16
      %v5312 = vrot.slane %v5310, 5
      %v5313 = vsel %vm2115, %v5308, %v5312
      %v5314 = vunpack.c.l.b16 %v4895
      %v5315 = vunpack.c.l.b16 %v4905
      %v5316 = vunpack.c.l.b16 %v4919
      %v5317 = vunpack.c.l.b16 %v4929
      %v5318 = vunpack.c.l.b16 %v4943
      %v5319 = vunpack.c.l.b16 %v4953
      %v5320 = vunpack.c.l.b16 %v4967
      %v5321 = vunpack.c.l.b16 %v4977
      %v5322 = vunpack.c.l.b16 %v4991
      %v5323 = vunpack.c.l.b16 %v5001
      %v5324 = vunpack.c.l.b16 %v5015
      %v5325 = vunpack.c.l.b16 %v5025
      %v5326 = vunpack.c.l.b16 %v5039
      %v5327 = vunpack.c.l.b16 %v5049
      %v5328 = vunpack.c.l.b16 %v5063
      %v5329 = vunpack.c.l.b16 %v5073
      %v5330 = vunpack.c.l.b16 %v5087
      %v5331 = vunpack.c.l.b16 %v5097
      %v5332 = vunpack.c.l.b16 %v5111
      %v5333 = vunpack.c.l.b16 %v5121
      %v5334 = vunpack.c.l.b16 %v5135
      %v5335 = vunpack.c.l.b16 %v5145
      %v5336 = vunpack.c.l.b16 %v5159
      %v5337 = vunpack.c.l.b16 %v5169
      %v5338 = vunpack.c.l.b16 %v5183
      %v5339 = vunpack.c.l.b16 %v5193
      %v5340 = vunpack.c.l.b16 %v5207
      %v5341 = vunpack.c.l.b16 %v5217
      %v5342 = vunpack.c.l.b16 %v5231
      %v5343 = vunpack.c.l.b16 %v5241
      %v5344 = vunpack.c.l.b16 %v5255
      %v5345 = vunpack.c.l.b16 %v5265
      %v5346 = vpack.c.b16 %v5315, %v5314
      %v5347 = vpack.c.b16 %v5317, %v5316
      %v5348 = vpack.c.b16 %v5319, %v5318
      %v5349 = vpack.c.b16 %v5321, %v5320
      %v5350 = vpack.c.b16 %v5323, %v5322
      %v5351 = vpack.c.b16 %v5325, %v5324
      %v5352 = vpack.c.b16 %v5327, %v5326
      %v5353 = vpack.c.b16 %v5329, %v5328
      %v5354 = vpack.c.b16 %v5331, %v5330
      %v5355 = vpack.c.b16 %v5333, %v5332
      %v5356 = vpack.c.b16 %v5335, %v5334
      %v5357 = vpack.c.b16 %v5337, %v5336
      %v5358 = vpack.c.b16 %v5339, %v5338
      %v5359 = vpack.c.b16 %v5341, %v5340
      %v5360 = vpack.c.b16 %v5343, %v5342
      %v5361 = vpack.c.b16 %v5345, %v5344
      %v5378 = vunpack.c.l.b16 %v5279
      %v5379 = vunpack.c.l.b16 %v5289
      %v5380 = vpack.c.b16 %v5379, %v5378
      %v5382 = vunpack.c.l.b16 %v5303
      %v5383 = vunpack.c.l.b16 %v5313
      %v5384 = vpack.c.b16 %v5383, %v5382
      %s5386 = scalar_lea.vmem %s1, 960
      %v5387 = vld [vmem:[%s5386] sm:$0xf]
      %v5388 = vld [vmem:[%s5386 + $0x4] sm:$0xf]
      %v5389 = vld [vmem:[%s5386 + $0x8] sm:$0xf]
      %v5390 = vld [vmem:[%s5386 + $0xc] sm:$0xf]
      %v5391 = vld [vmem:[%s5386 + $0x10] sm:$0xf]
      %v5392 = vld [vmem:[%s5386 + $0x14] sm:$0xf]
      %v5393 = vld [vmem:[%s5386 + $0x18] sm:$0xf]
      %v5394 = vld [vmem:[%s5386 + $0x1c] sm:$0xf]
      %v5395 = vld [vmem:[%s5386 + $0x20] sm:$0xf]
      %v5396 = vld [vmem:[%s5386 + $0x24] sm:$0xf]
      %v5397 = vld [vmem:[%s5386 + $0x28] sm:$0xf]
      %v5398 = vld [vmem:[%s5386 + $0x2c] sm:$0xf]
      %v5399 = vld [vmem:[%s5386 + $0x30] sm:$0xf]
      %v5400 = vld [vmem:[%s5386 + $0x34] sm:$0xf]
      %v5401 = vld [vmem:[%s5386 + $0x38] sm:$0xf]
      %v5402 = vld [vmem:[%s5386 + $0x3c] sm:$0xf]
      %v5403 = vld [vmem:[%s5386 + $0x40] sm:$0xf]
      %v5404 = vld [vmem:[%s5386 + $0x44] sm:$0xf]
      %v5405 = vld [vmem:[%s5386 + $0x48] sm:$0xf]
      %v5406 = vld [vmem:[%s5386 + $0x4c] sm:$0xf]
      %v5407 = vld [vmem:[%s5386 + $0x50] sm:$0xf]
      %v5408 = vld [vmem:[%s5386 + $0x54] sm:$0xf]
      %v5409 = vld [vmem:[%s5386 + $0x58] sm:$0xf]
      %v5410 = vld [vmem:[%s5386 + $0x5c] sm:$0xf]
      %v5411 = vld [vmem:[%s5386 + $0x60] sm:$0xf]
      %v5412 = vld [vmem:[%s5386 + $0x64] sm:$0xf]
      %v5413 = vld [vmem:[%s5386 + $0x68] sm:$0xf]
      %v5414 = vld [vmem:[%s5386 + $0x6c] sm:$0xf]
      %v5415 = vld [vmem:[%s5386 + $0x70] sm:$0xf]
      %v5416 = vld [vmem:[%s5386 + $0x74] sm:$0xf]
      %v5417 = vld [vmem:[%s5386 + $0x78] sm:$0xf]
      %v5418 = vld [vmem:[%s5386 + $0x7c] sm:$0xf]
      %v5419 = vld [vmem:[%s5386 + $0x80] sm:$0xf]
      %v5420 = vld [vmem:[%s5386 + $0x84] sm:$0xf]
      %v5421 = vld [vmem:[%s5386 + $0x88] sm:$0xf]
      %v5422 = vld [vmem:[%s5386 + $0x8c] sm:$0xf]
      %v5423 = vld [vmem:[%s5386 + $0x90] sm:$0xf]
      %v5424 = vld [vmem:[%s5386 + $0x94] sm:$0xf]
      %v5425 = vld [vmem:[%s5386 + $0x98] sm:$0xf]
      %v5426 = vld [vmem:[%s5386 + $0x9c] sm:$0xf]
      %v5427 = vld [vmem:[%s5386 + $0xa0] sm:$0xf]
      %v5428 = vld [vmem:[%s5386 + $0xa4] sm:$0xf]
      %v5429 = vld [vmem:[%s5386 + $0xa8] sm:$0xf]
      %v5430 = vld [vmem:[%s5386 + $0xac] sm:$0xf]
      %v5431 = vld [vmem:[%s5386 + $0xb0] sm:$0xf]
      %v5432 = vld [vmem:[%s5386 + $0xb4] sm:$0xf]
      %v5433 = vld [vmem:[%s5386 + $0xb8] sm:$0xf]
      %v5434 = vld [vmem:[%s5386 + $0xbc] sm:$0xf]
      %v5483 = vunpack.c.l.b16 %v5387
      %v5484 = vunpack.c.l.b16 %v5388
      %v5485 = vunpack.c.l.b16 %v5389
      %v5486 = vunpack.c.l.b16 %v5390
      %v5487 = vunpack.c.l.b16 %v5391
      %v5488 = vunpack.c.l.b16 %v5392
      %v5489 = vunpack.c.l.b16 %v5393
      %v5490 = vunpack.c.l.b16 %v5394
      %v5491 = vunpack.c.l.b16 %v5395
      %v5492 = vunpack.c.l.b16 %v5396
      %v5493 = vunpack.c.l.b16 %v5397
      %v5494 = vunpack.c.l.b16 %v5398
      %v5495 = vunpack.c.l.b16 %v5399
      %v5496 = vunpack.c.l.b16 %v5400
      %v5497 = vunpack.c.l.b16 %v5401
      %v5498 = vunpack.c.l.b16 %v5402
      %v5499 = vunpack.c.l.b16 %v5403
      %v5500 = vunpack.c.l.b16 %v5404
      %v5501 = vunpack.c.l.b16 %v5405
      %v5502 = vunpack.c.l.b16 %v5406
      %v5503 = vunpack.c.l.b16 %v5407
      %v5504 = vunpack.c.l.b16 %v5408
      %v5505 = vunpack.c.l.b16 %v5409
      %v5506 = vunpack.c.l.b16 %v5410
      %v5507 = vunpack.c.l.b16 %v5411
      %v5508 = vunpack.c.l.b16 %v5412
      %v5509 = vunpack.c.l.b16 %v5413
      %v5510 = vunpack.c.l.b16 %v5414
      %v5511 = vunpack.c.l.b16 %v5415
      %v5512 = vunpack.c.l.b16 %v5416
      %v5513 = vunpack.c.l.b16 %v5417
      %v5514 = vunpack.c.l.b16 %v5418
      %v5515 = vunpack.c.l.b16 %v5419
      %v5516 = vunpack.c.l.b16 %v5420
      %v5517 = vunpack.c.l.b16 %v5421
      %v5518 = vunpack.c.l.b16 %v5422
      %v5519 = vunpack.c.l.b16 %v5423
      %v5520 = vunpack.c.l.b16 %v5424
      %v5521 = vunpack.c.l.b16 %v5425
      %v5522 = vunpack.c.l.b16 %v5426
      %v5523 = vunpack.c.l.b16 %v5427
      %v5524 = vunpack.c.l.b16 %v5428
      %v5525 = vunpack.c.l.b16 %v5429
      %v5526 = vunpack.c.l.b16 %v5430
      %v5527 = vunpack.c.l.b16 %v5431
      %v5528 = vunpack.c.l.b16 %v5432
      %v5529 = vunpack.c.l.b16 %v5433
      %v5530 = vunpack.c.l.b16 %v5434
      %v5531 = vpack.c.b16 %v5484, %v5483
      %v5532 = vpack.c.b16 %v5486, %v5485
      %v5533 = vpack.c.b16 %v5488, %v5487
      %v5534 = vpack.c.b16 %v5490, %v5489
      %v5535 = vpack.c.b16 %v5492, %v5491
      %v5536 = vpack.c.b16 %v5494, %v5493
      %v5537 = vpack.c.b16 %v5496, %v5495
      %v5538 = vpack.c.b16 %v5498, %v5497
      %v5539 = vpack.c.b16 %v5500, %v5499
      %v5540 = vpack.c.b16 %v5502, %v5501
      %v5541 = vpack.c.b16 %v5504, %v5503
      %v5542 = vpack.c.b16 %v5506, %v5505
      %v5543 = vpack.c.b16 %v5508, %v5507
      %v5544 = vpack.c.b16 %v5510, %v5509
      %v5545 = vpack.c.b16 %v5512, %v5511
      %v5546 = vpack.c.b16 %v5514, %v5513
      %v5547 = vpack.c.b16 %v5516, %v5515
      %v5548 = vpack.c.b16 %v5518, %v5517
      %v5549 = vpack.c.b16 %v5520, %v5519
      %v5550 = vpack.c.b16 %v5522, %v5521
      %v5551 = vpack.c.b16 %v5524, %v5523
      %v5552 = vpack.c.b16 %v5526, %v5525
      %v5553 = vpack.c.b16 %v5528, %v5527
      %v5554 = vpack.c.b16 %v5530, %v5529
      %5579 = vmatpush.bf16.msra.mxu0 %v5538
      %5580 = vmatpush.bf16.msra.mxu0 %v5537
      %5581 = vmatpush.bf16.msra.mxu0 %v5536
      %5582 = vmatpush.bf16.msra.mxu0 %v5535
      %5583 = vmatpush.bf16.msra.mxu0 %v5534
      %5584 = vmatpush.bf16.msra.mxu0 %v5533
      %5585 = vmatpush.bf16.msra.mxu0 %v5532
      %5586 = vmatpush.bf16.msra.mxu0 %v5531
      %5587 = vmatmul.bf16.gmra.mxu0 %v5346
      %v5588 = vpop.f32.mrf.mxu0
      %v5589 = vadd.f32 0.0, %v5588
      %v5590 = vpop.f32.mrf.mxu0
      %v5591 = vadd.f32 0.0, %v5590
      %5592 = vmatmul.bf16.gmra.mxu0 %v5347
      %v5593 = vpop.f32.mrf.mxu0
      %v5594 = vadd.f32 0.0, %v5593
      %v5595 = vpop.f32.mrf.mxu0
      %v5596 = vadd.f32 0.0, %v5595
      %5597 = vmatmul.bf16.gmra.mxu0 %v5348
      %v5598 = vpop.f32.mrf.mxu0
      %v5599 = vadd.f32 0.0, %v5598
      %v5600 = vpop.f32.mrf.mxu0
      %v5601 = vadd.f32 0.0, %v5600
      %5602 = vmatmul.bf16.gmra.mxu0 %v5349
      %v5603 = vpop.f32.mrf.mxu0
      %v5604 = vadd.f32 0.0, %v5603
      %v5605 = vpop.f32.mrf.mxu0
      %v5606 = vadd.f32 0.0, %v5605
      %5607 = vmatmul.bf16.gmra.mxu0 %v5350
      %v5608 = vpop.f32.mrf.mxu0
      %v5609 = vadd.f32 0.0, %v5608
      %v5610 = vpop.f32.mrf.mxu0
      %v5611 = vadd.f32 0.0, %v5610
      %5612 = vmatmul.bf16.gmra.mxu0 %v5351
      %v5613 = vpop.f32.mrf.mxu0
      %v5614 = vadd.f32 0.0, %v5613
      %v5615 = vpop.f32.mrf.mxu0
      %v5616 = vadd.f32 0.0, %v5615
      %5617 = vmatmul.bf16.gmra.mxu0 %v5352
      %v5618 = vpop.f32.mrf.mxu0
      %v5619 = vadd.f32 0.0, %v5618
      %v5620 = vpop.f32.mrf.mxu0
      %v5621 = vadd.f32 0.0, %v5620
      %5622 = vmatmul.bf16.gmra.mxu0 %v5353
      %v5623 = vpop.f32.mrf.mxu0
      %v5624 = vadd.f32 0.0, %v5623
      %v5625 = vpop.f32.mrf.mxu0
      %v5626 = vadd.f32 0.0, %v5625
      %5627 = vmatmul.bf16.gmra.mxu0 %v5354
      %v5628 = vpop.f32.mrf.mxu0
      %v5629 = vadd.f32 0.0, %v5628
      %v5630 = vpop.f32.mrf.mxu0
      %v5631 = vadd.f32 0.0, %v5630
      %5632 = vmatmul.bf16.gmra.mxu0 %v5355
      %v5633 = vpop.f32.mrf.mxu0
      %v5634 = vadd.f32 0.0, %v5633
      %v5635 = vpop.f32.mrf.mxu0
      %v5636 = vadd.f32 0.0, %v5635
      %5637 = vmatmul.bf16.gmra.mxu0 %v5356
      %v5638 = vpop.f32.mrf.mxu0
      %v5639 = vadd.f32 0.0, %v5638
      %v5640 = vpop.f32.mrf.mxu0
      %v5641 = vadd.f32 0.0, %v5640
      %5642 = vmatmul.bf16.gmra.mxu0 %v5357
      %v5643 = vpop.f32.mrf.mxu0
      %v5644 = vadd.f32 0.0, %v5643
      %v5645 = vpop.f32.mrf.mxu0
      %v5646 = vadd.f32 0.0, %v5645
      %5647 = vmatmul.bf16.gmra.mxu0 %v5358
      %v5648 = vpop.f32.mrf.mxu0
      %v5649 = vadd.f32 0.0, %v5648
      %v5650 = vpop.f32.mrf.mxu0
      %v5651 = vadd.f32 0.0, %v5650
      %5652 = vmatmul.bf16.gmra.mxu0 %v5359
      %v5653 = vpop.f32.mrf.mxu0
      %v5654 = vadd.f32 0.0, %v5653
      %v5655 = vpop.f32.mrf.mxu0
      %v5656 = vadd.f32 0.0, %v5655
      %5657 = vmatmul.bf16.gmra.mxu0 %v5360
      %v5658 = vpop.f32.mrf.mxu0
      %v5659 = vadd.f32 0.0, %v5658
      %v5660 = vpop.f32.mrf.mxu0
      %v5661 = vadd.f32 0.0, %v5660
      %5662 = vmatmul.bf16.gmra.mxu0 %v5361
      %v5663 = vpop.f32.mrf.mxu0
      %v5664 = vadd.f32 0.0, %v5663
      %v5665 = vpop.f32.mrf.mxu0
      %v5666 = vadd.f32 0.0, %v5665
      %5667 = vdwg.mxu0
      %5668 = vmatpush.bf16.msra.mxu0 %v5546
      %5669 = vmatpush.bf16.msra.mxu0 %v5545
      %5670 = vmatpush.bf16.msra.mxu0 %v5544
      %5671 = vmatpush.bf16.msra.mxu0 %v5543
      %5672 = vmatpush.bf16.msra.mxu0 %v5542
      %5673 = vmatpush.bf16.msra.mxu0 %v5541
      %5674 = vmatpush.bf16.msra.mxu0 %v5540
      %5675 = vmatpush.bf16.msra.mxu0 %v5539
      %5676 = vmatmul.bf16.gmra.mxu0 %v5347
      %v5677 = vpop.f32.mrf.mxu0
      %v5678 = vadd.f32 %v5589, %v5677
      %v5679 = vpop.f32.mrf.mxu0
      %v5680 = vadd.f32 %v5591, %v5679
      %5681 = vmatmul.bf16.gmra.mxu0 %v5348
      %v5682 = vpop.f32.mrf.mxu0
      %v5683 = vadd.f32 %v5594, %v5682
      %v5684 = vpop.f32.mrf.mxu0
      %v5685 = vadd.f32 %v5596, %v5684
      %5686 = vmatmul.bf16.gmra.mxu0 %v5349
      %v5687 = vpop.f32.mrf.mxu0
      %v5688 = vadd.f32 %v5599, %v5687
      %v5689 = vpop.f32.mrf.mxu0
      %v5690 = vadd.f32 %v5601, %v5689
      %5691 = vmatmul.bf16.gmra.mxu0 %v5350
      %v5692 = vpop.f32.mrf.mxu0
      %v5693 = vadd.f32 %v5604, %v5692
      %v5694 = vpop.f32.mrf.mxu0
      %v5695 = vadd.f32 %v5606, %v5694
      %5696 = vmatmul.bf16.gmra.mxu0 %v5351
      %v5697 = vpop.f32.mrf.mxu0
      %v5698 = vadd.f32 %v5609, %v5697
      %v5699 = vpop.f32.mrf.mxu0
      %v5700 = vadd.f32 %v5611, %v5699
      %5701 = vmatmul.bf16.gmra.mxu0 %v5352
      %v5702 = vpop.f32.mrf.mxu0
      %v5703 = vadd.f32 %v5614, %v5702
      %v5704 = vpop.f32.mrf.mxu0
      %v5705 = vadd.f32 %v5616, %v5704
      %5706 = vmatmul.bf16.gmra.mxu0 %v5353
      %v5707 = vpop.f32.mrf.mxu0
      %v5708 = vadd.f32 %v5619, %v5707
      %v5709 = vpop.f32.mrf.mxu0
      %v5710 = vadd.f32 %v5621, %v5709
      %5711 = vmatmul.bf16.gmra.mxu0 %v5354
      %v5712 = vpop.f32.mrf.mxu0
      %v5713 = vadd.f32 %v5624, %v5712
      %v5714 = vpop.f32.mrf.mxu0
      %v5715 = vadd.f32 %v5626, %v5714
      %5716 = vmatmul.bf16.gmra.mxu0 %v5355
      %v5717 = vpop.f32.mrf.mxu0
      %v5718 = vadd.f32 %v5629, %v5717
      %v5719 = vpop.f32.mrf.mxu0
      %v5720 = vadd.f32 %v5631, %v5719
      %5721 = vmatmul.bf16.gmra.mxu0 %v5356
      %v5722 = vpop.f32.mrf.mxu0
      %v5723 = vadd.f32 %v5634, %v5722
      %v5724 = vpop.f32.mrf.mxu0
      %v5725 = vadd.f32 %v5636, %v5724
      %5726 = vmatmul.bf16.gmra.mxu0 %v5357
      %v5727 = vpop.f32.mrf.mxu0
      %v5728 = vadd.f32 %v5639, %v5727
      %v5729 = vpop.f32.mrf.mxu0
      %v5730 = vadd.f32 %v5641, %v5729
      %5731 = vmatmul.bf16.gmra.mxu0 %v5358
      %v5732 = vpop.f32.mrf.mxu0
      %v5733 = vadd.f32 %v5644, %v5732
      %v5734 = vpop.f32.mrf.mxu0
      %v5735 = vadd.f32 %v5646, %v5734
      %5736 = vmatmul.bf16.gmra.mxu0 %v5359
      %v5737 = vpop.f32.mrf.mxu0
      %v5738 = vadd.f32 %v5649, %v5737
      %v5739 = vpop.f32.mrf.mxu0
      %v5740 = vadd.f32 %v5651, %v5739
      %5741 = vmatmul.bf16.gmra.mxu0 %v5360
      %v5742 = vpop.f32.mrf.mxu0
      %v5743 = vadd.f32 %v5654, %v5742
      %v5744 = vpop.f32.mrf.mxu0
      %v5745 = vadd.f32 %v5656, %v5744
      %5746 = vmatmul.bf16.gmra.mxu0 %v5361
      %v5747 = vpop.f32.mrf.mxu0
      %v5748 = vadd.f32 %v5659, %v5747
      %v5749 = vpop.f32.mrf.mxu0
      %v5750 = vadd.f32 %v5661, %v5749
      %5751 = vmatmul.bf16.gmra.mxu0 %v5380
      %v5752 = vpop.f32.mrf.mxu0
      %v5753 = vadd.f32 %v5664, %v5752
      %v5754 = vpop.f32.mrf.mxu0
      %v5755 = vadd.f32 %v5666, %v5754
      %5756 = vdwg.mxu0
      %5757 = vmatpush.bf16.msra.mxu0 %v5554
      %5758 = vmatpush.bf16.msra.mxu0 %v5553
      %5759 = vmatpush.bf16.msra.mxu0 %v5552
      %5760 = vmatpush.bf16.msra.mxu0 %v5551
      %5761 = vmatpush.bf16.msra.mxu0 %v5550
      %5762 = vmatpush.bf16.msra.mxu0 %v5549
      %5763 = vmatpush.bf16.msra.mxu0 %v5548
      %5764 = vmatpush.bf16.msra.mxu0 %v5547
      %5765 = vmatmul.bf16.gmra.mxu0 %v5348
      %v5766 = vpop.f32.mrf.mxu0
      %v5767 = vadd.f32 %v5678, %v5766
      %v5768 = vpop.f32.mrf.mxu0
      %v5769 = vadd.f32 %v5680, %v5768
      %5770 = vmatmul.bf16.gmra.mxu0 %v5349
      %v5771 = vpop.f32.mrf.mxu0
      %v5772 = vadd.f32 %v5683, %v5771
      %v5773 = vpop.f32.mrf.mxu0
      %v5774 = vadd.f32 %v5685, %v5773
      %5775 = vmatmul.bf16.gmra.mxu0 %v5350
      %v5776 = vpop.f32.mrf.mxu0
      %v5777 = vadd.f32 %v5688, %v5776
      %v5778 = vpop.f32.mrf.mxu0
      %v5779 = vadd.f32 %v5690, %v5778
      %5780 = vmatmul.bf16.gmra.mxu0 %v5351
      %v5781 = vpop.f32.mrf.mxu0
      %v5782 = vadd.f32 %v5693, %v5781
      %v5783 = vpop.f32.mrf.mxu0
      %v5784 = vadd.f32 %v5695, %v5783
      %5785 = vmatmul.bf16.gmra.mxu0 %v5352
      %v5786 = vpop.f32.mrf.mxu0
      %v5787 = vadd.f32 %v5698, %v5786
      %v5788 = vpop.f32.mrf.mxu0
      %v5789 = vadd.f32 %v5700, %v5788
      %5790 = vmatmul.bf16.gmra.mxu0 %v5353
      %v5791 = vpop.f32.mrf.mxu0
      %v5792 = vadd.f32 %v5703, %v5791
      %v5793 = vpop.f32.mrf.mxu0
      %v5794 = vadd.f32 %v5705, %v5793
      %5795 = vmatmul.bf16.gmra.mxu0 %v5354
      %v5796 = vpop.f32.mrf.mxu0
      %v5797 = vadd.f32 %v5708, %v5796
      %v5798 = vpop.f32.mrf.mxu0
      %v5799 = vadd.f32 %v5710, %v5798
      %5800 = vmatmul.bf16.gmra.mxu0 %v5355
      %v5801 = vpop.f32.mrf.mxu0
      %v5802 = vadd.f32 %v5713, %v5801
      %v5803 = vpop.f32.mrf.mxu0
      %v5804 = vadd.f32 %v5715, %v5803
      %5805 = vmatmul.bf16.gmra.mxu0 %v5356
      %v5806 = vpop.f32.mrf.mxu0
      %v5807 = vadd.f32 %v5718, %v5806
      %v5808 = vpop.f32.mrf.mxu0
      %v5809 = vadd.f32 %v5720, %v5808
      %5810 = vmatmul.bf16.gmra.mxu0 %v5357
      %v5811 = vpop.f32.mrf.mxu0
      %v5812 = vadd.f32 %v5723, %v5811
      %v5813 = vpop.f32.mrf.mxu0
      %v5814 = vadd.f32 %v5725, %v5813
      %5815 = vmatmul.bf16.gmra.mxu0 %v5358
      %v5816 = vpop.f32.mrf.mxu0
      %v5817 = vadd.f32 %v5728, %v5816
      %v5818 = vpop.f32.mrf.mxu0
      %v5819 = vadd.f32 %v5730, %v5818
      %5820 = vmatmul.bf16.gmra.mxu0 %v5359
      %v5821 = vpop.f32.mrf.mxu0
      %v5822 = vadd.f32 %v5733, %v5821
      %v5823 = vpop.f32.mrf.mxu0
      %v5824 = vadd.f32 %v5735, %v5823
      %5825 = vmatmul.bf16.gmra.mxu0 %v5360
      %v5826 = vpop.f32.mrf.mxu0
      %v5827 = vadd.f32 %v5738, %v5826
      %v5828 = vpop.f32.mrf.mxu0
      %v5829 = vadd.f32 %v5740, %v5828
      %5830 = vmatmul.bf16.gmra.mxu0 %v5361
      %v5831 = vpop.f32.mrf.mxu0
      %v5832 = vadd.f32 %v5743, %v5831
      %v5833 = vpop.f32.mrf.mxu0
      %v5834 = vadd.f32 %v5745, %v5833
      %5835 = vmatmul.bf16.gmra.mxu0 %v5380
      %v5836 = vpop.f32.mrf.mxu0
      %v5837 = vadd.f32 %v5748, %v5836
      %v5838 = vpop.f32.mrf.mxu0
      %v5839 = vadd.f32 %v5750, %v5838
      %5840 = vmatmul.bf16.gmra.mxu0 %v5384
      %v5841 = vpop.f32.mrf.mxu0
      %v5842 = vadd.f32 %v5753, %v5841
      %v5843 = vpop.f32.mrf.mxu0
      %v5844 = vadd.f32 %v5755, %v5843
      %5845 = vdwg.mxu0
      %v5846 = vadd.f32 %v4796, %v5767
      %v5847 = vadd.f32 %v4797, %v5769
      %v5848 = vadd.f32 %v4798, %v5772
      %v5849 = vadd.f32 %v4799, %v5774
      %v5850 = vadd.f32 %v4800, %v5777
      %v5851 = vadd.f32 %v4801, %v5779
      %v5852 = vadd.f32 %v4802, %v5782
      %v5853 = vadd.f32 %v4803, %v5784
      %v5854 = vadd.f32 %v4804, %v5787
      %v5855 = vadd.f32 %v4805, %v5789
      %v5856 = vadd.f32 %v4806, %v5792
      %v5857 = vadd.f32 %v4807, %v5794
      %v5858 = vadd.f32 %v4808, %v5797
      %v5859 = vadd.f32 %v4809, %v5799
      %v5860 = vadd.f32 %v4810, %v5802
      %v5861 = vadd.f32 %v4811, %v5804
      %v5862 = vadd.f32 %v4812, %v5807
      %v5863 = vadd.f32 %v4813, %v5809
      %v5864 = vadd.f32 %v4814, %v5812
      %v5865 = vadd.f32 %v4815, %v5814
      %v5866 = vadd.f32 %v4816, %v5817
      %v5867 = vadd.f32 %v4817, %v5819
      %v5868 = vadd.f32 %v4818, %v5822
      %v5869 = vadd.f32 %v4819, %v5824
      %v5870 = vadd.f32 %v4820, %v5827
      %v5871 = vadd.f32 %v4821, %v5829
      %v5872 = vadd.f32 %v4822, %v5832
      %v5873 = vadd.f32 %v4823, %v5834
      %v5874 = vadd.f32 %v4824, %v5837
      %v5875 = vadd.f32 %v4825, %v5839
      %v5876 = vadd.f32 %v4826, %v5842
      %v5877 = vadd.f32 %v4827, %v5844
      %v5878 = vmax.f32 %v5846, 0.0
      %v5879 = vmax.f32 %v5847, 0.0
      %v5880 = vmax.f32 %v5848, 0.0
      %v5881 = vmax.f32 %v5849, 0.0
      %v5882 = vmax.f32 %v5850, 0.0
      %v5883 = vmax.f32 %v5851, 0.0
      %v5884 = vmax.f32 %v5852, 0.0
      %v5885 = vmax.f32 %v5853, 0.0
      %v5886 = vmax.f32 %v5854, 0.0
      %v5887 = vmax.f32 %v5855, 0.0
      %v5888 = vmax.f32 %v5856, 0.0
      %v5889 = vmax.f32 %v5857, 0.0
      %v5890 = vmax.f32 %v5858, 0.0
      %v5891 = vmax.f32 %v5859, 0.0
      %v5892 = vmax.f32 %v5860, 0.0
      %v5893 = vmax.f32 %v5861, 0.0
      %v5894 = vmax.f32 %v5862, 0.0
      %v5895 = vmax.f32 %v5863, 0.0
      %v5896 = vmax.f32 %v5864, 0.0
      %v5897 = vmax.f32 %v5865, 0.0
      %v5898 = vmax.f32 %v5866, 0.0
      %v5899 = vmax.f32 %v5867, 0.0
      %v5900 = vmax.f32 %v5868, 0.0
      %v5901 = vmax.f32 %v5869, 0.0
      %v5902 = vmax.f32 %v5870, 0.0
      %v5903 = vmax.f32 %v5871, 0.0
      %v5904 = vmax.f32 %v5872, 0.0
      %v5905 = vmax.f32 %v5873, 0.0
      %v5906 = vmax.f32 %v5874, 0.0
      %v5907 = vmax.f32 %v5875, 0.0
      %v5908 = vmax.f32 %v5876, 0.0
      %v5909 = vmax.f32 %v5877, 0.0
      %5910 = vst [vmem:[%s170] sm:$0xff] %v5878
      %5911 = vst [vmem:[%s170 + $0x8] sm:$0xff] %v5879
      %5912 = vst [vmem:[%s170 + $0x10] sm:$0xff] %v5880
      %5913 = vst [vmem:[%s170 + $0x18] sm:$0xff] %v5881
      %5914 = vst [vmem:[%s170 + $0x20] sm:$0xff] %v5882
      %5915 = vst [vmem:[%s170 + $0x28] sm:$0xff] %v5883
      %5916 = vst [vmem:[%s170 + $0x30] sm:$0xff] %v5884
      %5917 = vst [vmem:[%s170 + $0x38] sm:$0xff] %v5885
      %5918 = vst [vmem:[%s170 + $0x40] sm:$0xff] %v5886
      %5919 = vst [vmem:[%s170 + $0x48] sm:$0xff] %v5887
      %5920 = vst [vmem:[%s170 + $0x50] sm:$0xff] %v5888
      %5921 = vst [vmem:[%s170 + $0x58] sm:$0xff] %v5889
      %5922 = vst [vmem:[%s170 + $0x60] sm:$0xff] %v5890
      %5923 = vst [vmem:[%s170 + $0x68] sm:$0xff] %v5891
      %5924 = vst [vmem:[%s170 + $0x70] sm:$0xff] %v5892
      %5925 = vst [vmem:[%s170 + $0x78] sm:$0xff] %v5893
      %5926 = vst [vmem:[%s170 + $0x80] sm:$0xff] %v5894
      %5927 = vst [vmem:[%s170 + $0x88] sm:$0xff] %v5895
      %5928 = vst [vmem:[%s170 + $0x90] sm:$0xff] %v5896
      %5929 = vst [vmem:[%s170 + $0x98] sm:$0xff] %v5897
      %5930 = vst [vmem:[%s170 + $0xa0] sm:$0xff] %v5898
      %5931 = vst [vmem:[%s170 + $0xa8] sm:$0xff] %v5899
      %5932 = vst [vmem:[%s170 + $0xb0] sm:$0xff] %v5900
      %5933 = vst [vmem:[%s170 + $0xb8] sm:$0xff] %v5901
      %5934 = vst [vmem:[%s170 + $0xc0] sm:$0xff] %v5902
      %5935 = vst [vmem:[%s170 + $0xc8] sm:$0xff] %v5903
      %5936 = vst [vmem:[%s170 + $0xd0] sm:$0xff] %v5904
      %5937 = vst [vmem:[%s170 + $0xd8] sm:$0xff] %v5905
      %5938 = vst [vmem:[%s170 + $0xe0] sm:$0xff] %v5906
      %5939 = vst [vmem:[%s170 + $0xe8] sm:$0xff] %v5907
      %5940 = vst [vmem:[%s170 + $0xf0] sm:$0xff] %v5908
      %5941 = vst [vmem:[%s170 + $0xf8] sm:$0xff] %v5909
      %p5942 = scmp.lt.s32.totalorder %s14, 1
      %s5943 = scalar_select %p5942, %s14, 1
      %s5944 = smul.addr %s5943, 32
      %s5945 = smul.addr %s5944, 8
      %s5946 = scalar_lea.vmem %s3, %s5945
      // Predicated region
      $region33: #{vgg_block_forward.1} parent=31 // pred_check
        %p5947 = pneg %p100
      $region34: #{vgg_block_forward.1} parent=31 // pred_check_branch
        %5949 = sbr.rel (%p5947) target = $region36
      $region35: #{vgg_block_forward.1} parent=31 // pred_region
        _
      $region36: #{vgg_block_forward.1} parent=31 // pred_fallthru
        _
    $region32: #{vgg_block_forward.1} parent=5 // pred_fallthru
      _
    %p5950 = scmp.le.s32.totalorder 2, %s9
    // Predicated region
    $region37: #{vgg_block_forward.1} parent=5 // pred_check
      %p5951 = pneg %p5950
    $region38: #{vgg_block_forward.1} parent=5 // pred_check_branch
      %5953 = sbr.rel (%p5951) target = $region40
    $region39: #{vgg_block_forward.1} parent=5 // pred_region
      %s5954 = ssub.s32 %s9, 2
      // Predicated region
      $region41: #{vgg_block_forward.1} parent=39 // pred_check
        %p5955 = pneg %p106
      $region42: #{vgg_block_forward.1} parent=39 // pred_check_branch
        %5957 = sbr.rel (%p5955) target = $region44
      $region43: #{vgg_block_forward.1} parent=39 // pred_region
        %p5958 = scmp.lt.s32.totalorder %s15, 1
        %s5959 = scalar_select %p5958, %s15, 1
        %s5960 = smul.addr %s5959, 32
        %s5961 = smul.addr %s5960, 8
        %s5962 = scalar_lea.vmem %s3, %s5961
      $region44: #{vgg_block_forward.1} parent=39 // pred_fallthru
        _
    $region40: #{vgg_block_forward.1} parent=5 // pred_fallthru
      _
  $region6: #{vgg_block_forward.1} parent=0 // loop_footer
    %s13 = sadd.s32 1, %s9
  $region7: #{vgg_block_forward.1} parent=0 // loop_footer_branch
    %8 = sbr.rel target = $region3
  $region8: #{vgg_block_forward.1} parent=0 // loop_exit
    _

</llo_original>
